<compile_context>
chip_gen: v5e
topology: v5e:2x2
jax: 0.10.0
libtpu: 0.0.40
codegen_flags: <defaults>
</compile_context>

<pallas_src>
import functools

import jax
import jax.numpy as jnp
from jax.experimental import pallas as pl
from jax.experimental.pallas import tpu as pltpu

# ------------------------- scaled-down config -------------------------
HIDDEN   = 128   # stand-in for HIDDEN_STATE = 768
N_LAYERS = 2     # stand-in for 12
N_HEADS  = 4     # stand-in for 12
HEAD_DIM = HIDDEN // N_HEADS
FFN_DIM  = 256   # stand-in for 3072
POOL_DIM = 128   # stand-in for 512 (attention-pool hidden)
VOCAB    = 100
MAX_POS  = 64
LN_EPS   = 1e-7  # config.update({'layer_norm_eps': 1e-07}) in the reference
PAD_IDX  = 1     # roberta padding_idx

BATCH = 2
SEQ   = 8

VMEM_LIMIT_BYTES = 64 * 1024 * 1024   # explicit scoped-VMEM budget (fits v5e/v6e/v7x)


def _pick_batch_tile(B, S, target_rows=512):
    """Largest divisor of B such that Bt*S stays within a few hundred MXU rows."""
    bt = 1
    for d in range(1, B + 1):
        if B % d == 0 and d * S <= max(target_rows, S):
            bt = d
    return bt


# ============================ in-kernel helpers ============================

def _ln(x, g, b):
    """LayerNorm over the last axis, f32 statistics."""
    mean = jnp.mean(x, axis=-1, keepdims=True)
    var = jnp.mean(jnp.square(x - mean), axis=-1, keepdims=True)
    return (x - mean) * jax.lax.rsqrt(var + LN_EPS) * g + b


def _gelu(y):
    # TODO(synk): HF roberta uses exact (erf) GELU; tanh approximation used here.
    c = 0.7978845608028654
    return 0.5 * y * (1.0 + jnp.tanh(c * (y + 0.044715 * y * y * y)))


# ============================ encoder layer kernel ============================

def _encoder_layer_kernel(x_ref, bias_ref,
                          ln0g_ref, ln0b_ref,
                          wqkv_ref, bqkv_ref, wo_ref, bo_ref,
                          ln1g_ref, ln1b_ref,
                          wf1_ref, bf1_ref, wf2_ref, bf2_ref,
                          ln2g_ref, ln2b_ref,
                          o_ref, *, apply_input_ln):
    """One full transformer layer for a (Bt, S, H) batch tile.

    Matmuls run on (Bt*S, H) rows; attention is batched over the tile with heads
    as lane slices, and each head's output is accumulated straight into the
    output projection (no lane-axis concatenate)."""
    Bt, S, H = x_ref.shape
    x2 = x_ref[...].astype(jnp.float32).reshape(Bt * S, H)      # (Bt*S, H)
    if apply_input_ln:                                          # embedding LN fused into layer 0
        x2 = _ln(x2, ln0g_ref[...], ln0b_ref[...])
    bias = bias_ref[...]                                        # (Bt, S) additive key mask

    # ---- fused QKV projection (bf16 MXU, f32 accumulation); Q is pre-scaled ----
    qkv = jnp.dot(x2.astype(jnp.bfloat16), wqkv_ref[...],
                  preferred_element_type=jnp.float32) + bqkv_ref[...]   # (Bt*S, 3H)
    qkv3 = qkv.reshape(Bt, S, 3 * H)

    # ---- per-head attention, accumulating into the output projection ----
    proj = jnp.zeros((Bt * S, H), jnp.float32)
    for h in range(N_HEADS):
        q_lo = h * HEAD_DIM
        qh = qkv3[:, :, q_lo:q_lo + HEAD_DIM].astype(jnp.bfloat16)              # (Bt, S, dH)
        kh = qkv3[:, :, H + q_lo:H + q_lo + HEAD_DIM].astype(jnp.bfloat16)
        vh = qkv3[:, :, 2 * H + q_lo:2 * H + q_lo + HEAD_DIM].astype(jnp.bfloat16)

        s = jnp.einsum('bqd,bkd->bqk', qh, kh,
                       preferred_element_type=jnp.float32)                      # (Bt, S, S)
        s = s + bias[:, None, :]
        s = s - jnp.max(s, axis=-1, keepdims=True)
        p = jnp.exp(s)
        p = p / jnp.sum(p, axis=-1, keepdims=True)
        ho = jnp.einsum('bqk,bkd->bqd', p.astype(jnp.bfloat16), vh,
                        preferred_element_type=jnp.float32)                     # (Bt, S, dH)
        proj = proj + jnp.dot(ho.reshape(Bt * S, HEAD_DIM).astype(jnp.bfloat16),
                              wo_ref[q_lo:q_lo + HEAD_DIM, :],
                              preferred_element_type=jnp.float32)

    # ---- output projection bias + residual + LayerNorm ----
    h1 = _ln(proj + bo_ref[...] + x2, ln1g_ref[...], ln1b_ref[...])             # (Bt*S, H)

    # ---- fused FFN: matmul -> GELU -> matmul -> residual -> LayerNorm ----
    ff = jnp.dot(h1.astype(jnp.bfloat16), wf1_ref[...],
                 preferred_element_type=jnp.float32) + bf1_ref[...]
    ff = _gelu(ff)
    ff = jnp.dot(ff.astype(jnp.bfloat16), wf2_ref[...],
                 preferred_element_type=jnp.float32) + bf2_ref[...]
    o_ref[...] = _ln(ff + h1, ln2g_ref[...], ln2b_ref[...]).reshape(Bt, S, H)


def encoder_layer(h, attn_bias, lp, ln0_g, ln0_b, apply_input_ln):
    B, S, H = h.shape
    bt = _pick_batch_tile(B, S)
    x_spec = pl.BlockSpec((bt, S, H), lambda b: (b, 0, 0))
    cw = lambda shape: pl.BlockSpec(shape, lambda b: (0, 0))   # VMEM-resident weights
    kernel = functools.partial(_encoder_layer_kernel, apply_input_ln=apply_input_ln)
    return pl.pallas_call(
        kernel,
        out_shape=jax.ShapeDtypeStruct((B, S, H), jnp.float32),
        grid=(B // bt,),
        in_specs=[
            x_spec,
            pl.BlockSpec((bt, S), lambda b: (b, 0)),
            cw((1, H)), cw((1, H)),                  # embedding LN (used by layer 0 only)
            cw((H, 3 * H)), cw((1, 3 * H)),
            cw((H, H)), cw((1, H)),
            cw((1, H)), cw((1, H)),
            cw((H, FFN_DIM)), cw((1, FFN_DIM)),
            cw((FFN_DIM, H)), cw((1, H)),
            cw((1, H)), cw((1, H)),
        ],
        out_specs=x_spec,
        compiler_params=pltpu.CompilerParams(
            dimension_semantics=("parallel",),
            vmem_limit_bytes=VMEM_LIMIT_BYTES),
    )(h, attn_bias, ln0_g, ln0_b,
      lp["wqkv"], lp["bqkv"], lp["wo"], lp["bo"],
      lp["ln1_g"], lp["ln1_b"],
      lp["wf1"], lp["bf1"], lp["wf2"], lp["bf2"],
      lp["ln2_g"], lp["ln2_b"])


# ============================ attention-pool + regressor ============================

def _pool_head_kernel(x_ref, w1_ref, b1_ref, w2_ref, b2_ref, wr_ref, br_ref, o_ref):
    """Fused attention-pool + regressor on a (Bt, S, H) tile.

    Scores are lane-dense (Bt, S); softmax uses lane reductions; the context
    vector is a batched MXU contraction.  NOTE: as in the original LitModel head,
    the pooling softmax does NOT mask padded positions."""
    Bt, S, H = x_ref.shape
    A = w1_ref.shape[1]
    x = x_ref[...]                                                # (Bt, S, H) f32

    hid = jnp.tanh(jnp.dot(x.reshape(Bt * S, H).astype(jnp.bfloat16), w1_ref[...],
                           preferred_element_type=jnp.float32) + b1_ref[...])   # (Bt*S, A)
    # score projection (A -> 1) as lane reduce; scores stay lane-dense as (Bt, S)
    s = jnp.sum(hid.reshape(Bt, S, A) * w2_ref[...], axis=-1) + b2_ref[...]     # (Bt, S)
    # softmax over the sequence axis (lane reductions), exact division
    s = s - jnp.max(s, axis=-1, keepdims=True)
    p = jnp.exp(s)
    w = p / jnp.sum(p, axis=-1, keepdims=True)                                  # (Bt, S)
    # context vector: (Bt,1,S) x (Bt,S,H) -> (Bt,1,H) on the MXU
    ctx = jnp.einsum('bqs,bsh->bqh', w[:, None, :], x,
                     preferred_element_type=jnp.float32).reshape(Bt, H)
    # regressor (H -> 1) as multiply + lane reduce
    o_ref[...] = jnp.sum(ctx * wr_ref[...], axis=-1, keepdims=True) + br_ref[...]


def pool_head(x, w1, b1, w2_row, b2, wr_row, br):
    B, S, H = x.shape
    A = w1.shape[1]
    bt = _pick_batch_tile(B, S)
    cw = lambda shape: pl.BlockSpec(shape, lambda b: (0, 0))
    return pl.pallas_call(
        _pool_head_kernel,
        out_shape=jax.ShapeDtypeStruct((B, 1), jnp.float32),
        grid=(B // bt,),
        in_specs=[
            pl.BlockSpec((bt, S, H), lambda b: (b, 0, 0)),
            cw((H, A)), cw((1, A)),
            cw((1, A)), cw((1, 1)),
            cw((1, H)), cw((1, 1)),
        ],
        out_specs=pl.BlockSpec((bt, 1), lambda b: (b, 0)),
        compiler_params=pltpu.CompilerParams(
            dimension_semantics=("parallel",),
            vmem_limit_bytes=VMEM_LIMIT_BYTES),
    )(x, w1, b1, w2_row, b2, wr_row, br)


# ============================ model (glue in JAX) ============================

def lit_model_forward(params, input_ids, attention_mask):
    B, S = input_ids.shape
    mask_f32 = attention_mask.astype(jnp.float32)
    # additive key-mask bias, precomputed once (padded keys vanish in encoder softmax)
    attn_bias = (1.0 - mask_f32) * (-1e9)                         # (B, S)

    # roberta position ids: cumsum over (input_ids != padding_idx), offset by padding_idx
    not_pad = (input_ids != PAD_IDX).astype(jnp.int32)
    pos_ids = jnp.cumsum(not_pad, axis=1) * not_pad + PAD_IDX

    # embeddings (table lookups are glue; the embedding LN is fused into layer 0)
    h = (params["word_emb"][input_ids]
         + params["pos_emb"][pos_ids]
         + params["type_emb"][0][None, None, :])                  # (B, S, H) f32

    for li, lp in enumerate(params["layers"]):
        h = encoder_layer(h, attn_bias, lp,
                          params["emb_ln_g"], params["emb_ln_b"],
                          apply_input_ln=(li == 0))

    # attention pooling head + regressor (single fused, batch-tiled Pallas kernel)
    return pool_head(h,
                     params["att_w1"], params["att_b1"],
                     params["att_w2_row"], params["att_b2"],
                     params["reg_w_row"], params["reg_b"])


# ============================ deterministic init ============================

def _init_dense(key, din, dout, scale=0.02):
    k1, k2 = jax.random.split(key)
    return (jax.random.normal(k1, (din, dout), jnp.float32) * scale,
            jax.random.normal(k2, (1, dout), jnp.float32) * scale)


def init_params(key):
    keys = jax.random.split(key, 4 + N_LAYERS)
    params = {
        "word_emb": jax.random.normal(keys[0], (VOCAB, HIDDEN), jnp.float32) * 0.02,
        "pos_emb":  jax.random.normal(keys[1], (MAX_POS, HIDDEN), jnp.float32) * 0.02,
        "type_emb": jax.random.normal(keys[2], (1, HIDDEN), jnp.float32) * 0.02,
        "emb_ln_g": jnp.ones((1, HIDDEN), jnp.float32),
        "emb_ln_b": jnp.zeros((1, HIDDEN), jnp.float32),
        "layers": [],
    }
    ones = jnp.ones((1, HIDDEN), jnp.float32)
    zeros = jnp.zeros((1, HIDDEN), jnp.float32)
    attn_scale = 1.0 / (HEAD_DIM ** 0.5)
    for li in range(N_LAYERS):
        ks = jax.random.split(keys[3 + li], 6)
        wq, bq = _init_dense(ks[0], HIDDEN, HIDDEN)
        wk, bk = _init_dense(ks[1], HIDDEN, HIDDEN)
        wv, bv = _init_dense(ks[2], HIDDEN, HIDDEN)
        wo, bo = _init_dense(ks[3], HIDDEN, HIDDEN)
        wf1, bf1 = _init_dense(ks[4], HIDDEN, FFN_DIM)
        wf2, bf2 = _init_dense(ks[5], FFN_DIM, HIDDEN)
        # fold the 1/sqrt(head_dim) attention scale into the Q projection
        wq = wq * attn_scale
        bq = bq * attn_scale
        params["layers"].append({
            # fused QKV weights (bf16 for the MXU); biases / LN params stay f32
            "wqkv": jnp.concatenate([wq, wk, wv], axis=1).astype(jnp.bfloat16),
            "bqkv": jnp.concatenate([bq, bk, bv], axis=1),
            "wo": wo.astype(jnp.bfloat16), "bo": bo,
            "ln1_g": ones, "ln1_b": zeros,
            "wf1": wf1.astype(jnp.bfloat16), "bf1": bf1,
            "wf2": wf2.astype(jnp.bfloat16), "bf2": bf2,
            "ln2_g": ones, "ln2_b": zeros,
        })
    kh1, kh2, kh3 = jax.random.split(keys[3 + N_LAYERS], 3)
    w1, b1 = _init_dense(kh1, HIDDEN, POOL_DIM)
    w2, b2 = _init_dense(kh2, POOL_DIM, 1)
    wr, br = _init_dense(kh3, HIDDEN, 1)
    params["att_w1"] = w1.astype(jnp.bfloat16)
    params["att_b1"] = b1
    params["att_w2_row"] = w2.T          # (1, POOL_DIM): lane-dense row form
    params["att_b2"] = b2                # (1, 1)
    params["reg_w_row"] = wr.T           # (1, HIDDEN)
    params["reg_b"] = br                 # (1, 1)
    return params


# ============================ main ============================

if __name__ == "__main__":
    key = jax.random.PRNGKey(0)
    params = init_params(key)

    kid, _ = jax.random.split(key)
    input_ids = jax.random.randint(kid, (BATCH, SEQ), 0, VOCAB, dtype=jnp.int32)
    attention_mask = jnp.array(
        [[1] * SEQ,
         [1] * (SEQ - 2) + [0] * 2], dtype=jnp.int32)
    # padded positions carry the pad token id, as in real roberta inputs
    input_ids = jnp.where(attention_mask == 1, input_ids, PAD_IDX)

    fwd = jax.jit(lit_model_forward)
    out = fwd(params, input_ids, attention_mask)
    out = jax.block_until_ready(out)

    assert out.shape == (BATCH, 1), out.shape
    assert bool(jnp.all(jnp.isfinite(out)))
    print("KERNEL_OK")
</pallas_src>

<mosaic_0001>
module attributes {stable_mosaic.version = 11 : i64} {
  func.func @_pool_head_kernel(%arg0: i32, %arg1: memref<2x8x128xf32, #tpu.memory_space<vmem>>, %arg2: memref<128x128xbf16, #tpu.memory_space<vmem>>, %arg3: memref<1x128xf32, #tpu.memory_space<vmem>>, %arg4: memref<1x128xf32, #tpu.memory_space<vmem>>, %arg5: memref<1x1xf32, #tpu.memory_space<vmem>>, %arg6: memref<1x128xf32, #tpu.memory_space<vmem>>, %arg7: memref<1x1xf32, #tpu.memory_space<vmem>>, %arg8: memref<2x1xf32, #tpu.memory_space<vmem>>) attributes {dimension_semantics = [#tpu.dimension_semantics<parallel>], iteration_bounds = array<i64: 1>, scalar_prefetch = 0 : i64, scratch_operands = 0 : i64, tpu.core_type = #tpu.core_type<tc>, window_params = [{transform_indices = @transform_0, window_bounds = array<i64: 2, 8, 128>}, {pipeline_mode = #tpu.pipeline_mode<synchronous>, transform_indices = @transform_1, window_bounds = array<i64: 128, 128>}, {pipeline_mode = #tpu.pipeline_mode<synchronous>, transform_indices = @transform_2, window_bounds = array<i64: 1, 128>}, {pipeline_mode = #tpu.pipeline_mode<synchronous>, transform_indices = @transform_3, window_bounds = array<i64: 1, 128>}, {pipeline_mode = #tpu.pipeline_mode<synchronous>, transform_indices = @transform_4, window_bounds = array<i64: 1, 1>}, {pipeline_mode = #tpu.pipeline_mode<synchronous>, transform_indices = @transform_5, window_bounds = array<i64: 1, 128>}, {pipeline_mode = #tpu.pipeline_mode<synchronous>, transform_indices = @transform_6, window_bounds = array<i64: 1, 1>}, {transform_indices = @transform_7, window_bounds = array<i64: 2, 1>}]} {
    %c0 = arith.constant 0 : index
    %c0_0 = arith.constant 0 : index
    %c0_1 = arith.constant 0 : index
    %0 = vector.load %arg1[%c0, %c0_0, %c0_1] : memref<2x8x128xf32, #tpu.memory_space<vmem>>, vector<2x8x128xf32>
    %1 = vector.shape_cast %0 : vector<2x8x128xf32> to vector<16x128xf32>
    %2 = arith.truncf %1 : vector<16x128xf32> to vector<16x128xbf16>
    %c0_2 = arith.constant 0 : index
    %c0_3 = arith.constant 0 : index
    %3 = vector.load %arg2[%c0_2, %c0_3] : memref<128x128xbf16, #tpu.memory_space<vmem>>, vector<128x128xbf16>
    %cst = arith.constant dense<0.000000e+00> : vector<16x128xf32>
    %4 = tpu.matmul %2, %3, %cst {dimension_numbers = #tpu.dot_dimension_numbers<[1], [0], [0], [1], [0, 0, 1, 1], [], []>} : vector<16x128xbf16>, vector<128x128xbf16>, vector<16x128xf32> -> vector<16x128xf32>
    %c0_4 = arith.constant 0 : index
    %c0_5 = arith.constant 0 : index
    %5 = vector.load %arg3[%c0_4, %c0_5] : memref<1x128xf32, #tpu.memory_space<vmem>>, vector<1x128xf32>
    %6 = vector.broadcast %5 : vector<1x128xf32> to vector<16x128xf32>
    %7 = arith.addf %4, %6 : vector<16x128xf32>
    %8 = math.tanh %7 : vector<16x128xf32>
    %9 = vector.shape_cast %8 : vector<16x128xf32> to vector<2x8x128xf32>
    %c0_6 = arith.constant 0 : index
    %c0_7 = arith.constant 0 : index
    %10 = vector.load %arg4[%c0_6, %c0_7] : memref<1x128xf32, #tpu.memory_space<vmem>>, vector<1x128xf32>
    %11 = vector.shape_cast %10 : vector<1x128xf32> to vector<1x1x128xf32>
    %12 = vector.broadcast %11 : vector<1x1x128xf32> to vector<2x8x128xf32>
    %13 = arith.mulf %9, %12 : vector<2x8x128xf32>
    %cst_8 = arith.constant dense<0.000000e+00> : vector<2x8xf32>
    %14 = vector.multi_reduction <add>, %13, %cst_8 [2] : vector<2x8x128xf32> to vector<2x8xf32>
    %c0_9 = arith.constant 0 : index
    %c0_10 = arith.constant 0 : index
    %15 = vector.load %arg5[%c0_9, %c0_10] : memref<1x1xf32, #tpu.memory_space<vmem>>, vector<1x1xf32>
    %16 = vector.broadcast %15 : vector<1x1xf32> to vector<2x8xf32>
    %17 = arith.addf %14, %16 : vector<2x8xf32>
    %cst_11 = arith.constant dense<0xFF800000> : vector<2xf32>
    %18 = vector.multi_reduction <maximumf>, %17, %cst_11 [1] : vector<2x8xf32> to vector<2xf32>
    %19 = vector.shape_cast %18 : vector<2xf32> to vector<2x1xf32>
    %20 = vector.broadcast %19 : vector<2x1xf32> to vector<2x8xf32>
    %21 = arith.subf %17, %20 : vector<2x8xf32>
    %22 = math.exp %21 : vector<2x8xf32>
    %cst_12 = arith.constant dense<0.000000e+00> : vector<2xf32>
    %23 = vector.multi_reduction <add>, %22, %cst_12 [1] : vector<2x8xf32> to vector<2xf32>
    %24 = vector.shape_cast %23 : vector<2xf32> to vector<2x1xf32>
    %25 = vector.broadcast %24 : vector<2x1xf32> to vector<2x8xf32>
    %26 = arith.divf %22, %25 : vector<2x8xf32>
    %27 = vector.shape_cast %26 : vector<2x8xf32> to vector<2x1x8xf32>
    "tpu.trace_start"() <{level = 10 : i32, message = "bqs,bsh->bqh"}> : () -> ()
    %cst_13 = arith.constant dense<0.000000e+00> : vector<2x1x128xf32>
    %28 = tpu.matmul %27, %0, %cst_13 {dimension_numbers = #tpu.dot_dimension_numbers<[2], [1], [1], [2], [0, 0, 0, 1, 1, 2], [0], [0]>} : vector<2x1x8xf32>, vector<2x8x128xf32>, vector<2x1x128xf32> -> vector<2x1x128xf32>
    "tpu.trace_stop"() : () -> ()
    %29 = vector.shape_cast %28 : vector<2x1x128xf32> to vector<2x128xf32>
    %c0_14 = arith.constant 0 : index
    %c0_15 = arith.constant 0 : index
    %30 = vector.load %arg6[%c0_14, %c0_15] : memref<1x128xf32, #tpu.memory_space<vmem>>, vector<1x128xf32>
    %31 = vector.broadcast %30 : vector<1x128xf32> to vector<2x128xf32>
    %32 = arith.mulf %29, %31 : vector<2x128xf32>
    %cst_16 = arith.constant dense<0.000000e+00> : vector<2xf32>
    %33 = vector.multi_reduction <add>, %32, %cst_16 [1] : vector<2x128xf32> to vector<2xf32>
    %34 = vector.shape_cast %33 : vector<2xf32> to vector<2x1xf32>
    %c0_17 = arith.constant 0 : index
    %c0_18 = arith.constant 0 : index
    %35 = vector.load %arg7[%c0_17, %c0_18] : memref<1x1xf32, #tpu.memory_space<vmem>>, vector<1x1xf32>
    %36 = vector.broadcast %35 : vector<1x1xf32> to vector<2x1xf32>
    %37 = arith.addf %34, %36 : vector<2x1xf32>
    %c0_19 = arith.constant 0 : index
    %c0_20 = arith.constant 0 : index
    %38 = vector.load %arg8[%c0_19, %c0_20] : memref<2x1xf32, #tpu.memory_space<vmem>>, vector<2x1xf32>
    tpu.vector_store %arg8[%c0_19, %c0_20], %37 {strides = array<i32>} : memref<2x1xf32, #tpu.memory_space<vmem>>, vector<2x1xf32>,
    return
  }
  func.func @transform_0(%arg0: i32) -> (i32, i32, i32) {
    %c0_i32 = arith.constant 0 : i32
    %c0_i32_0 = arith.constant 0 : i32
    %c0_i32_1 = arith.constant 0 : i32
    return %arg0, %c0_i32, %c0_i32_0 : i32, i32, i32
  }
  func.func @transform_1(%arg0: i32) -> (i32, i32) {
    %c0_i32 = arith.constant 0 : i32
    %c0_i32_0 = arith.constant 0 : i32
    %c0_i32_1 = arith.constant 0 : i32
    return %c0_i32, %c0_i32_0 : i32, i32
  }
  func.func @transform_2(%arg0: i32) -> (i32, i32) {
    %c0_i32 = arith.constant 0 : i32
    %c0_i32_0 = arith.constant 0 : i32
    %c0_i32_1 = arith.constant 0 : i32
    return %c0_i32, %c0_i32_0 : i32, i32
  }
  func.func @transform_3(%arg0: i32) -> (i32, i32) {
    %c0_i32 = arith.constant 0 : i32
    %c0_i32_0 = arith.constant 0 : i32
    %c0_i32_1 = arith.constant 0 : i32
    return %c0_i32, %c0_i32_0 : i32, i32
  }
  func.func @transform_4(%arg0: i32) -> (i32, i32) {
    %c0_i32 = arith.constant 0 : i32
    %c0_i32_0 = arith.constant 0 : i32
    %c0_i32_1 = arith.constant 0 : i32
    return %c0_i32, %c0_i32_0 : i32, i32
  }
  func.func @transform_5(%arg0: i32) -> (i32, i32) {
    %c0_i32 = arith.constant 0 : i32
    %c0_i32_0 = arith.constant 0 : i32
    %c0_i32_1 = arith.constant 0 : i32
    return %c0_i32, %c0_i32_0 : i32, i32
  }
  func.func @transform_6(%arg0: i32) -> (i32, i32) {
    %c0_i32 = arith.constant 0 : i32
    %c0_i32_0 = arith.constant 0 : i32
    %c0_i32_1 = arith.constant 0 : i32
    return %c0_i32, %c0_i32_0 : i32, i32
  }
  func.func @transform_7(%arg0: i32) -> (i32, i32) {
    %c0_i32 = arith.constant 0 : i32
    %c0_i32_0 = arith.constant 0 : i32
    return %arg0, %c0_i32 : i32, i32
  }
}

module attributes {stable_mosaic.version = 11 : i64} {
  func.func @_encoder_layer_kernel(%arg0: i32, %arg1: memref<2x8x128xf32, #tpu.memory_space<vmem>>, %arg2: memref<2x8xf32, #tpu.memory_space<vmem>>, %arg3: memref<1x128xf32, #tpu.memory_space<vmem>>, %arg4: memref<1x128xf32, #tpu.memory_space<vmem>>, %arg5: memref<128x384xbf16, #tpu.memory_space<vmem>>, %arg6: memref<1x384xf32, #tpu.memory_space<vmem>>, %arg7: memref<128x128xbf16, #tpu.memory_space<vmem>>, %arg8: memref<1x128xf32, #tpu.memory_space<vmem>>, %arg9: memref<1x128xf32, #tpu.memory_space<vmem>>, %arg10: memref<1x128xf32, #tpu.memory_space<vmem>>, %arg11: memref<128x256xbf16, #tpu.memory_space<vmem>>, %arg12: memref<1x256xf32, #tpu.memory_space<vmem>>, %arg13: memref<256x128xbf16, #tpu.memory_space<vmem>>, %arg14: memref<1x128xf32, #tpu.memory_space<vmem>>, %arg15: memref<1x128xf32, #tpu.memory_space<vmem>>, %arg16: memref<1x128xf32, #tpu.memory_space<vmem>>, %arg17: memref<2x8x128xf32, #tpu.memory_space<vmem>>) attributes {dimension_semantics = [#tpu.dimension_semantics<parallel>], iteration_bounds = array<i64: 1>, scalar_prefetch = 0 : i64, scratch_operands = 0 : i64, tpu.core_type = #tpu.core_type<tc>, window_params = [{transform_indices = @transform_0, window_bounds = array<i64: 2, 8, 128>}, {transform_indices = @transform_1, window_bounds = array<i64: 2, 8>}, {pipeline_mode = #tpu.pipeline_mode<synchronous>, transform_indices = @transform_2, window_bounds = array<i64: 1, 128>}, {pipeline_mode = #tpu.pipeline_mode<synchronous>, transform_indices = @transform_3, window_bounds = array<i64: 1, 128>}, {pipeline_mode = #tpu.pipeline_mode<synchronous>, transform_indices = @transform_4, window_bounds = array<i64: 128, 384>}, {pipeline_mode = #tpu.pipeline_mode<synchronous>, transform_indices = @transform_5, window_bounds = array<i64: 1, 384>}, {pipeline_mode = #tpu.pipeline_mode<synchronous>, transform_indices = @transform_6, window_bounds = array<i64: 128, 128>}, {pipeline_mode = #tpu.pipeline_mode<synchronous>, transform_indices = @transform_7, window_bounds = array<i64: 1, 128>}, {pipeline_mode = #tpu.pipeline_mode<synchronous>, transform_indices = @transform_8, window_bounds = array<i64: 1, 128>}, {pipeline_mode = #tpu.pipeline_mode<synchronous>, transform_indices = @transform_9, window_bounds = array<i64: 1, 128>}, {pipeline_mode = #tpu.pipeline_mode<synchronous>, transform_indices = @transform_10, window_bounds = array<i64: 128, 256>}, {pipeline_mode = #tpu.pipeline_mode<synchronous>, transform_indices = @transform_11, window_bounds = array<i64: 1, 256>}, {pipeline_mode = #tpu.pipeline_mode<synchronous>, transform_indices = @transform_12, window_bounds = array<i64: 256, 128>}, {pipeline_mode = #tpu.pipeline_mode<synchronous>, transform_indices = @transform_13, window_bounds = array<i64: 1, 128>}, {pipeline_mode = #tpu.pipeline_mode<synchronous>, transform_indices = @transform_14, window_bounds = array<i64: 1, 128>}, {pipeline_mode = #tpu.pipeline_mode<synchronous>, transform_indices = @transform_15, window_bounds = array<i64: 1, 128>}, {transform_indices = @transform_16, window_bounds = array<i64: 2, 8, 128>}]} {
    %c0 = arith.constant 0 : index
    %c0_0 = arith.constant 0 : index
    %c0_1 = arith.constant 0 : index
    %0 = vector.load %arg1[%c0, %c0_0, %c0_1] : memref<2x8x128xf32, #tpu.memory_space<vmem>>, vector<2x8x128xf32>
    %1 = vector.shape_cast %0 : vector<2x8x128xf32> to vector<16x128xf32>
    %c0_2 = arith.constant 0 : index
    %c0_3 = arith.constant 0 : index
    %2 = vector.load %arg2[%c0_2, %c0_3] : memref<2x8xf32, #tpu.memory_space<vmem>>, vector<2x8xf32>
    %3 = arith.truncf %1 : vector<16x128xf32> to vector<16x128xbf16>
    %c0_4 = arith.constant 0 : index
    %c0_5 = arith.constant 0 : index
    %4 = vector.load %arg5[%c0_4, %c0_5] : memref<128x384xbf16, #tpu.memory_space<vmem>>, vector<128x384xbf16>
    %cst = arith.constant dense<0.000000e+00> : vector<16x384xf32>
    %5 = tpu.matmul %3, %4, %cst {dimension_numbers = #tpu.dot_dimension_numbers<[1], [0], [0], [1], [0, 0, 1, 1], [], []>} : vector<16x128xbf16>, vector<128x384xbf16>, vector<16x384xf32> -> vector<16x384xf32>
    %c0_6 = arith.constant 0 : index
    %c0_7 = arith.constant 0 : index
    %6 = vector.load %arg6[%c0_6, %c0_7] : memref<1x384xf32, #tpu.memory_space<vmem>>, vector<1x384xf32>
    %7 = vector.broadcast %6 : vector<1x384xf32> to vector<16x384xf32>
    %8 = arith.addf %5, %7 : vector<16x384xf32>
    %9 = vector.shape_cast %8 : vector<16x384xf32> to vector<2x8x384xf32>
    %cst_8 = arith.constant 0.000000e+00 : f32
    %10 = vector.broadcast %cst_8 : f32 to vector<16x128xf32>
    %11 = vector.extract_strided_slice %9 {offsets = [0, 0, 0], sizes = [2, 8, 32], strides = [1, 1, 1]} : vector<2x8x384xf32> to vector<2x8x32xf32>
    %12 = arith.truncf %11 : vector<2x8x32xf32> to vector<2x8x32xbf16>
    %13 = vector.extract_strided_slice %9 {offsets = [0, 0, 128], sizes = [2, 8, 32], strides = [1, 1, 1]} : vector<2x8x384xf32> to vector<2x8x32xf32>
    %14 = arith.truncf %13 : vector<2x8x32xf32> to vector<2x8x32xbf16>
    %15 = vector.extract_strided_slice %9 {offsets = [0, 0, 256], sizes = [2, 8, 32], strides = [1, 1, 1]} : vector<2x8x384xf32> to vector<2x8x32xf32>
    %16 = arith.truncf %15 : vector<2x8x32xf32> to vector<2x8x32xbf16>
    "tpu.trace_start"() <{level = 10 : i32, message = "bqd,bkd->bqk"}> : () -> ()
    %cst_9 = arith.constant dense<0.000000e+00> : vector<2x8x8xf32>
    %17 = tpu.matmul %12, %14, %cst_9 {dimension_numbers = #tpu.dot_dimension_numbers<[2], [2], [1], [1], [0, 0, 0, 1, 1, 1], [0], [0]>} : vector<2x8x32xbf16>, vector<2x8x32xbf16>, vector<2x8x8xf32> -> vector<2x8x8xf32>
    "tpu.trace_stop"() : () -> ()
    %18 = vector.shape_cast %2 : vector<2x8xf32> to vector<2x1x8xf32>
    %19 = vector.broadcast %18 : vector<2x1x8xf32> to vector<2x8x8xf32>
    %20 = arith.addf %17, %19 : vector<2x8x8xf32>
    %cst_10 = arith.constant dense<0xFF800000> : vector<2x8xf32>
    %21 = vector.multi_reduction <maximumf>, %20, %cst_10 [2] : vector<2x8x8xf32> to vector<2x8xf32>
    %22 = vector.shape_cast %21 : vector<2x8xf32> to vector<2x8x1xf32>
    %23 = vector.broadcast %22 : vector<2x8x1xf32> to vector<2x8x8xf32>
    %24 = arith.subf %20, %23 : vector<2x8x8xf32>
    %25 = math.exp %24 : vector<2x8x8xf32>
    %cst_11 = arith.constant dense<0.000000e+00> : vector<2x8xf32>
    %26 = vector.multi_reduction <add>, %25, %cst_11 [2] : vector<2x8x8xf32> to vector<2x8xf32>
    %27 = vector.shape_cast %26 : vector<2x8xf32> to vector<2x8x1xf32>
    %28 = vector.broadcast %27 : vector<2x8x1xf32> to vector<2x8x8xf32>
    %29 = arith.divf %25, %28 : vector<2x8x8xf32>
    %30 = arith.truncf %29 : vector<2x8x8xf32> to vector<2x8x8xbf16>
    "tpu.trace_start"() <{level = 10 : i32, message = "bqk,bkd->bqd"}> : () -> ()
    %cst_12 = arith.constant dense<0.000000e+00> : vector<2x8x32xf32>
    %31 = tpu.matmul %30, %16, %cst_12 {dimension_numbers = #tpu.dot_dimension_numbers<[2], [1], [1], [2], [0, 0, 0, 1, 1, 2], [0], [0]>} : vector<2x8x8xbf16>, vector<2x8x32xbf16>, vector<2x8x32xf32> -> vector<2x8x32xf32>
    "tpu.trace_stop"() : () -> ()
    %32 = vector.shape_cast %31 : vector<2x8x32xf32> to vector<16x32xf32>
    %33 = arith.truncf %32 : vector<16x32xf32> to vector<16x32xbf16>
    %c0_13 = arith.constant 0 : index
    %c0_14 = arith.constant 0 : index
    %34 = vector.load %arg7[%c0_13, %c0_14] : memref<128x128xbf16, #tpu.memory_space<vmem>>, vector<32x128xbf16>
    %cst_15 = arith.constant dense<0.000000e+00> : vector<16x128xf32>
    %35 = tpu.matmul %33, %34, %cst_15 {dimension_numbers = #tpu.dot_dimension_numbers<[1], [0], [0], [1], [0, 0, 1, 1], [], []>} : vector<16x32xbf16>, vector<32x128xbf16>, vector<16x128xf32> -> vector<16x128xf32>
    %36 = arith.addf %10, %35 : vector<16x128xf32>
    %37 = vector.extract_strided_slice %9 {offsets = [0, 0, 32], sizes = [2, 8, 32], strides = [1, 1, 1]} : vector<2x8x384xf32> to vector<2x8x32xf32>
    %38 = arith.truncf %37 : vector<2x8x32xf32> to vector<2x8x32xbf16>
    %39 = vector.extract_strided_slice %9 {offsets = [0, 0, 160], sizes = [2, 8, 32], strides = [1, 1, 1]} : vector<2x8x384xf32> to vector<2x8x32xf32>
    %40 = arith.truncf %39 : vector<2x8x32xf32> to vector<2x8x32xbf16>
    %41 = vector.extract_strided_slice %9 {offsets = [0, 0, 288], sizes = [2, 8, 32], strides = [1, 1, 1]} : vector<2x8x384xf32> to vector<2x8x32xf32>
    %42 = arith.truncf %41 : vector<2x8x32xf32> to vector<2x8x32xbf16>
    "tpu.trace_start"() <{level = 10 : i32, message = "bqd,bkd->bqk"}> : () -> ()
    %cst_16 = arith.constant dense<0.000000e+00> : vector<2x8x8xf32>
    %43 = tpu.matmul %38, %40, %cst_16 {dimension_numbers = #tpu.dot_dimension_numbers<[2], [2], [1], [1], [0, 0, 0, 1, 1, 1], [0], [0]>} : vector<2x8x32xbf16>, vector<2x8x32xbf16>, vector<2x8x8xf32> -> vector<2x8x8xf32>
    "tpu.trace_stop"() : () -> ()
    %44 = vector.shape_cast %2 : vector<2x8xf32> to vector<2x1x8xf32>
    %45 = vector.broadcast %44 : vector<2x1x8xf32> to vector<2x8x8xf32>
    %46 = arith.addf %43, %45 : vector<2x8x8xf32>
    %cst_17 = arith.constant dense<0xFF800000> : vector<2x8xf32>
    %47 = vector.multi_reduction <maximumf>, %46, %cst_17 [2] : vector<2x8x8xf32> to vector<2x8xf32>
    %48 = vector.shape_cast %47 : vector<2x8xf32> to vector<2x8x1xf32>
    %49 = vector.broadcast %48 : vector<2x8x1xf32> to vector<2x8x8xf32>
    %50 = arith.subf %46, %49 : vector<2x8x8xf32>
    %51 = math.exp %50 : vector<2x8x8xf32>
    %cst_18 = arith.constant dense<0.000000e+00> : vector<2x8xf32>
    %52 = vector.multi_reduction <add>, %51, %cst_18 [2] : vector<2x8x8xf32> to vector<2x8xf32>
    %53 = vector.shape_cast %52 : vector<2x8xf32> to vector<2x8x1xf32>
    %54 = vector.broadcast %53 : vector<2x8x1xf32> to vector<2x8x8xf32>
    %55 = arith.divf %51, %54 : vector<2x8x8xf32>
    %56 = arith.truncf %55 : vector<2x8x8xf32> to vector<2x8x8xbf16>
    "tpu.trace_start"() <{level = 10 : i32, message = "bqk,bkd->bqd"}> : () -> ()
    %cst_19 = arith.constant dense<0.000000e+00> : vector<2x8x32xf32>
    %57 = tpu.matmul %56, %42, %cst_19 {dimension_numbers = #tpu.dot_dimension_numbers<[2], [1], [1], [2], [0, 0, 0, 1, 1, 2], [0], [0]>} : vector<2x8x8xbf16>, vector<2x8x32xbf16>, vector<2x8x32xf32> -> vector<2x8x32xf32>
    "tpu.trace_stop"() : () -> ()
    %58 = vector.shape_cast %57 : vector<2x8x32xf32> to vector<16x32xf32>
    %59 = arith.truncf %58 : vector<16x32xf32> to vector<16x32xbf16>
    %c32 = arith.constant 32 : index
    %c0_20 = arith.constant 0 : index
    %60 = vector.load %arg7[%c32, %c0_20] : memref<128x128xbf16, #tpu.memory_space<vmem>>, vector<32x128xbf16>
    %cst_21 = arith.constant dense<0.000000e+00> : vector<16x128xf32>
    %61 = tpu.matmul %59, %60, %cst_21 {dimension_numbers = #tpu.dot_dimension_numbers<[1], [0], [0], [1], [0, 0, 1, 1], [], []>} : vector<16x32xbf16>, vector<32x128xbf16>, vector<16x128xf32> -> vector<16x128xf32>
    %62 = arith.addf %36, %61 : vector<16x128xf32>
    %63 = vector.extract_strided_slice %9 {offsets = [0, 0, 64], sizes = [2, 8, 32], strides = [1, 1, 1]} : vector<2x8x384xf32> to vector<2x8x32xf32>
    %64 = arith.truncf %63 : vector<2x8x32xf32> to vector<2x8x32xbf16>
    %65 = vector.extract_strided_slice %9 {offsets = [0, 0, 192], sizes = [2, 8, 32], strides = [1, 1, 1]} : vector<2x8x384xf32> to vector<2x8x32xf32>
    %66 = arith.truncf %65 : vector<2x8x32xf32> to vector<2x8x32xbf16>
    %67 = vector.extract_strided_slice %9 {offsets = [0, 0, 320], sizes = [2, 8, 32], strides = [1, 1, 1]} : vector<2x8x384xf32> to vector<2x8x32xf32>
    %68 = arith.truncf %67 : vector<2x8x32xf32> to vector<2x8x32xbf16>
    "tpu.trace_start"() <{level = 10 : i32, message = "bqd,bkd->bqk"}> : () -> ()
    %cst_22 = arith.constant dense<0.000000e+00> : vector<2x8x8xf32>
    %69 = tpu.matmul %64, %66, %cst_22 {dimension_numbers = #tpu.dot_dimension_numbers<[2], [2], [1], [1], [0, 0, 0, 1, 1, 1], [0], [0]>} : vector<2x8x32xbf16>, vector<2x8x32xbf16>, vector<2x8x8xf32> -> vector<2x8x8xf32>
    "tpu.trace_stop"() : () -> ()
    %70 = vector.shape_cast %2 : vector<2x8xf32> to vector<2x1x8xf32>
    %71 = vector.broadcast %70 : vector<2x1x8xf32> to vector<2x8x8xf32>
    %72 = arith.addf %69, %71 : vector<2x8x8xf32>
    %cst_23 = arith.constant dense<0xFF800000> : vector<2x8xf32>
    %73 = vector.multi_reduction <maximumf>, %72, %cst_23 [2] : vector<2x8x8xf32> to vector<2x8xf32>
    %74 = vector.shape_cast %73 : vector<2x8xf32> to vector<2x8x1xf32>
    %75 = vector.broadcast %74 : vector<2x8x1xf32> to vector<2x8x8xf32>
    %76 = arith.subf %72, %75 : vector<2x8x8xf32>
    %77 = math.exp %76 : vector<2x8x8xf32>
    %cst_24 = arith.constant dense<0.000000e+00> : vector<2x8xf32>
    %78 = vector.multi_reduction <add>, %77, %cst_24 [2] : vector<2x8x8xf32> to vector<2x8xf32>
    %79 = vector.shape_cast %78 : vector<2x8xf32> to vector<2x8x1xf32>
    %80 = vector.broadcast %79 : vector<2x8x1xf32> to vector<2x8x8xf32>
    %81 = arith.divf %77, %80 : vector<2x8x8xf32>
    %82 = arith.truncf %81 : vector<2x8x8xf32> to vector<2x8x8xbf16>
    "tpu.trace_start"() <{level = 10 : i32, message = "bqk,bkd->bqd"}> : () -> ()
    %cst_25 = arith.constant dense<0.000000e+00> : vector<2x8x32xf32>
    %83 = tpu.matmul %82, %68, %cst_25 {dimension_numbers = #tpu.dot_dimension_numbers<[2], [1], [1], [2], [0, 0, 0, 1, 1, 2], [0], [0]>} : vector<2x8x8xbf16>, vector<2x8x32xbf16>, vector<2x8x32xf32> -> vector<2x8x32xf32>
    "tpu.trace_stop"() : () -> ()
    %84 = vector.shape_cast %83 : vector<2x8x32xf32> to vector<16x32xf32>
    %85 = arith.truncf %84 : vector<16x32xf32> to vector<16x32xbf16>
    %c64 = arith.constant 64 : index
    %c0_26 = arith.constant 0 : index
    %86 = vector.load %arg7[%c64, %c0_26] : memref<128x128xbf16, #tpu.memory_space<vmem>>, vector<32x128xbf16>
    %cst_27 = arith.constant dense<0.000000e+00> : vector<16x128xf32>
    %87 = tpu.matmul %85, %86, %cst_27 {dimension_numbers = #tpu.dot_dimension_numbers<[1], [0], [0], [1], [0, 0, 1, 1], [], []>} : vector<16x32xbf16>, vector<32x128xbf16>, vector<16x128xf32> -> vector<16x128xf32>
    %88 = arith.addf %62, %87 : vector<16x128xf32>
    %89 = vector.extract_strided_slice %9 {offsets = [0, 0, 96], sizes = [2, 8, 32], strides = [1, 1, 1]} : vector<2x8x384xf32> to vector<2x8x32xf32>
    %90 = arith.truncf %89 : vector<2x8x32xf32> to vector<2x8x32xbf16>
    %91 = vector.extract_strided_slice %9 {offsets = [0, 0, 224], sizes = [2, 8, 32], strides = [1, 1, 1]} : vector<2x8x384xf32> to vector<2x8x32xf32>
    %92 = arith.truncf %91 : vector<2x8x32xf32> to vector<2x8x32xbf16>
    %93 = vector.extract_strided_slice %9 {offsets = [0, 0, 352], sizes = [2, 8, 32], strides = [1, 1, 1]} : vector<2x8x384xf32> to vector<2x8x32xf32>
    %94 = arith.truncf %93 : vector<2x8x32xf32> to vector<2x8x32xbf16>
    "tpu.trace_start"() <{level = 10 : i32, message = "bqd,bkd->bqk"}> : () -> ()
    %cst_28 = arith.constant dense<0.000000e+00> : vector<2x8x8xf32>
    %95 = tpu.matmul %90, %92, %cst_28 {dimension_numbers = #tpu.dot_dimension_numbers<[2], [2], [1], [1], [0, 0, 0, 1, 1, 1], [0], [0]>} : vector<2x8x32xbf16>, vector<2x8x32xbf16>, vector<2x8x8xf32> -> vector<2x8x8xf32>
    "tpu.trace_stop"() : () -> ()
    %96 = vector.shape_cast %2 : vector<2x8xf32> to vector<2x1x8xf32>
    %97 = vector.broadcast %96 : vector<2x1x8xf32> to vector<2x8x8xf32>
    %98 = arith.addf %95, %97 : vector<2x8x8xf32>
    %cst_29 = arith.constant dense<0xFF800000> : vector<2x8xf32>
    %99 = vector.multi_reduction <maximumf>, %98, %cst_29 [2] : vector<2x8x8xf32> to vector<2x8xf32>
    %100 = vector.shape_cast %99 : vector<2x8xf32> to vector<2x8x1xf32>
    %101 = vector.broadcast %100 : vector<2x8x1xf32> to vector<2x8x8xf32>
    %102 = arith.subf %98, %101 : vector<2x8x8xf32>
    %103 = math.exp %102 : vector<2x8x8xf32>
    %cst_30 = arith.constant dense<0.000000e+00> : vector<2x8xf32>
    %104 = vector.multi_reduction <add>, %103, %cst_30 [2] : vector<2x8x8xf32> to vector<2x8xf32>
    %105 = vector.shape_cast %104 : vector<2x8xf32> to vector<2x8x1xf32>
    %106 = vector.broadcast %105 : vector<2x8x1xf32> to vector<2x8x8xf32>
    %107 = arith.divf %103, %106 : vector<2x8x8xf32>
    %108 = arith.truncf %107 : vector<2x8x8xf32> to vector<2x8x8xbf16>
    "tpu.trace_start"() <{level = 10 : i32, message = "bqk,bkd->bqd"}> : () -> ()
    %cst_31 = arith.constant dense<0.000000e+00> : vector<2x8x32xf32>
    %109 = tpu.matmul %108, %94, %cst_31 {dimension_numbers = #tpu.dot_dimension_numbers<[2], [1], [1], [2], [0, 0, 0, 1, 1, 2], [0], [0]>} : vector<2x8x8xbf16>, vector<2x8x32xbf16>, vector<2x8x32xf32> -> vector<2x8x32xf32>
    "tpu.trace_stop"() : () -> ()
    %110 = vector.shape_cast %109 : vector<2x8x32xf32> to vector<16x32xf32>
    %111 = arith.truncf %110 : vector<16x32xf32> to vector<16x32xbf16>
    %c96 = arith.constant 96 : index
    %c0_32 = arith.constant 0 : index
    %112 = vector.load %arg7[%c96, %c0_32] : memref<128x128xbf16, #tpu.memory_space<vmem>>, vector<32x128xbf16>
    %cst_33 = arith.constant dense<0.000000e+00> : vector<16x128xf32>
    %113 = tpu.matmul %111, %112, %cst_33 {dimension_numbers = #tpu.dot_dimension_numbers<[1], [0], [0], [1], [0, 0, 1, 1], [], []>} : vector<16x32xbf16>, vector<32x128xbf16>, vector<16x128xf32> -> vector<16x128xf32>
    %114 = arith.addf %88, %113 : vector<16x128xf32>
    %c0_34 = arith.constant 0 : index
    %c0_35 = arith.constant 0 : index
    %115 = vector.load %arg8[%c0_34, %c0_35] : memref<1x128xf32, #tpu.memory_space<vmem>>, vector<1x128xf32>
    %116 = vector.broadcast %115 : vector<1x128xf32> to vector<16x128xf32>
    %117 = arith.addf %114, %116 : vector<16x128xf32>
    %118 = arith.addf %117, %1 : vector<16x128xf32>
    %c0_36 = arith.constant 0 : index
    %c0_37 = arith.constant 0 : index
    %119 = vector.load %arg9[%c0_36, %c0_37] : memref<1x128xf32, #tpu.memory_space<vmem>>, vector<1x128xf32>
    %c0_38 = arith.constant 0 : index
    %c0_39 = arith.constant 0 : index
    %120 = vector.load %arg10[%c0_38, %c0_39] : memref<1x128xf32, #tpu.memory_space<vmem>>, vector<1x128xf32>
    %cst_40 = arith.constant dense<0.000000e+00> : vector<16xf32>
    %121 = vector.multi_reduction <add>, %118, %cst_40 [1] : vector<16x128xf32> to vector<16xf32>
    %122 = vector.shape_cast %121 : vector<16xf32> to vector<16x1xf32>
    %cst_41 = arith.constant 1.280000e+02 : f32
    %123 = vector.broadcast %cst_41 : f32 to vector<16x1xf32>
    %124 = arith.divf %122, %123 : vector<16x1xf32>
    %125 = vector.broadcast %124 : vector<16x1xf32> to vector<16x128xf32>
    %126 = arith.subf %118, %125 : vector<16x128xf32>
    %127 = arith.mulf %126, %126 : vector<16x128xf32>
    %cst_42 = arith.constant dense<0.000000e+00> : vector<16xf32>
    %128 = vector.multi_reduction <add>, %127, %cst_42 [1] : vector<16x128xf32> to vector<16xf32>
    %129 = vector.shape_cast %128 : vector<16xf32> to vector<16x1xf32>
    %cst_43 = arith.constant 1.280000e+02 : f32
    %130 = vector.broadcast %cst_43 : f32 to vector<16x1xf32>
    %131 = arith.divf %129, %130 : vector<16x1xf32>
    %132 = vector.broadcast %124 : vector<16x1xf32> to vector<16x128xf32>
    %133 = arith.subf %118, %132 : vector<16x128xf32>
    %cst_44 = arith.constant 1.000000e-07 : f32
    %134 = vector.broadcast %cst_44 : f32 to vector<16x1xf32>
    %135 = arith.addf %131, %134 : vector<16x1xf32>
    %136 = math.rsqrt %135 : vector<16x1xf32>
    %137 = vector.broadcast %136 : vector<16x1xf32> to vector<16x128xf32>
    %138 = arith.mulf %133, %137 : vector<16x128xf32>
    %139 = vector.broadcast %119 : vector<1x128xf32> to vector<16x128xf32>
    %140 = arith.mulf %138, %139 : vector<16x128xf32>
    %141 = vector.broadcast %120 : vector<1x128xf32> to vector<16x128xf32>
    %142 = arith.addf %140, %141 : vector<16x128xf32>
    %143 = arith.truncf %142 : vector<16x128xf32> to vector<16x128xbf16>
    %c0_45 = arith.constant 0 : index
    %c0_46 = arith.constant 0 : index
    %144 = vector.load %arg11[%c0_45, %c0_46] : memref<128x256xbf16, #tpu.memory_space<vmem>>, vector<128x256xbf16>
    %cst_47 = arith.constant dense<0.000000e+00> : vector<16x256xf32>
    %145 = tpu.matmul %143, %144, %cst_47 {dimension_numbers = #tpu.dot_dimension_numbers<[1], [0], [0], [1], [0, 0, 1, 1], [], []>} : vector<16x128xbf16>, vector<128x256xbf16>, vector<16x256xf32> -> vector<16x256xf32>
    %c0_48 = arith.constant 0 : index
    %c0_49 = arith.constant 0 : index
    %146 = vector.load %arg12[%c0_48, %c0_49] : memref<1x256xf32, #tpu.memory_space<vmem>>, vector<1x256xf32>
    %147 = vector.broadcast %146 : vector<1x256xf32> to vector<16x256xf32>
    %148 = arith.addf %145, %147 : vector<16x256xf32>
    %cst_50 = arith.constant 5.000000e-01 : f32
    %149 = vector.broadcast %cst_50 : f32 to vector<16x256xf32>
    %150 = arith.mulf %149, %148 : vector<16x256xf32>
    %cst_51 = arith.constant 4.471500e-02 : f32
    %151 = vector.broadcast %cst_51 : f32 to vector<16x256xf32>
    %152 = arith.mulf %151, %148 : vector<16x256xf32>
    %153 = arith.mulf %152, %148 : vector<16x256xf32>
    %154 = arith.mulf %153, %148 : vector<16x256xf32>
    %155 = arith.addf %148, %154 : vector<16x256xf32>
    %cst_52 = arith.constant 0.797884583 : f32
    %156 = vector.broadcast %cst_52 : f32 to vector<16x256xf32>
    %157 = arith.mulf %156, %155 : vector<16x256xf32>
    %158 = math.tanh %157 : vector<16x256xf32>
    %cst_53 = arith.constant 1.000000e+00 : f32
    %159 = vector.broadcast %cst_53 : f32 to vector<16x256xf32>
    %160 = arith.addf %159, %158 : vector<16x256xf32>
    %161 = arith.mulf %150, %160 : vector<16x256xf32>
    %162 = arith.truncf %161 : vector<16x256xf32> to vector<16x256xbf16>
    %c0_54 = arith.constant 0 : index
    %c0_55 = arith.constant 0 : index
    %163 = vector.load %arg13[%c0_54, %c0_55] : memref<256x128xbf16, #tpu.memory_space<vmem>>, vector<256x128xbf16>
    %cst_56 = arith.constant dense<0.000000e+00> : vector<16x128xf32>
    %164 = tpu.matmul %162, %163, %cst_56 {dimension_numbers = #tpu.dot_dimension_numbers<[1], [0], [0], [1], [0, 0, 1, 1], [], []>} : vector<16x256xbf16>, vector<256x128xbf16>, vector<16x128xf32> -> vector<16x128xf32>
    %c0_57 = arith.constant 0 : index
    %c0_58 = arith.constant 0 : index
    %165 = vector.load %arg14[%c0_57, %c0_58] : memref<1x128xf32, #tpu.memory_space<vmem>>, vector<1x128xf32>
    %166 = vector.broadcast %165 : vector<1x128xf32> to vector<16x128xf32>
    %167 = arith.addf %164, %166 : vector<16x128xf32>
    %168 = arith.addf %167, %142 : vector<16x128xf32>
    %c0_59 = arith.constant 0 : index
    %c0_60 = arith.constant 0 : index
    %169 = vector.load %arg15[%c0_59, %c0_60] : memref<1x128xf32, #tpu.memory_space<vmem>>, vector<1x128xf32>
    %c0_61 = arith.constant 0 : index
    %c0_62 = arith.constant 0 : index
    %170 = vector.load %arg16[%c0_61, %c0_62] : memref<1x128xf32, #tpu.memory_space<vmem>>, vector<1x128xf32>
    %cst_63 = arith.constant dense<0.000000e+00> : vector<16xf32>
    %171 = vector.multi_reduction <add>, %168, %cst_63 [1] : vector<16x128xf32> to vector<16xf32>
    %172 = vector.shape_cast %171 : vector<16xf32> to vector<16x1xf32>
    %cst_64 = arith.constant 1.280000e+02 : f32
    %173 = vector.broadcast %cst_64 : f32 to vector<16x1xf32>
    %174 = arith.divf %172, %173 : vector<16x1xf32>
    %175 = vector.broadcast %174 : vector<16x1xf32> to vector<16x128xf32>
    %176 = arith.subf %168, %175 : vector<16x128xf32>
    %177 = arith.mulf %176, %176 : vector<16x128xf32>
    %cst_65 = arith.constant dense<0.000000e+00> : vector<16xf32>
    %178 = vector.multi_reduction <add>, %177, %cst_65 [1] : vector<16x128xf32> to vector<16xf32>
    %179 = vector.shape_cast %178 : vector<16xf32> to vector<16x1xf32>
    %cst_66 = arith.constant 1.280000e+02 : f32
    %180 = vector.broadcast %cst_66 : f32 to vector<16x1xf32>
    %181 = arith.divf %179, %180 : vector<16x1xf32>
    %182 = vector.broadcast %174 : vector<16x1xf32> to vector<16x128xf32>
    %183 = arith.subf %168, %182 : vector<16x128xf32>
    %cst_67 = arith.constant 1.000000e-07 : f32
    %184 = vector.broadcast %cst_67 : f32 to vector<16x1xf32>
    %185 = arith.addf %181, %184 : vector<16x1xf32>
    %186 = math.rsqrt %185 : vector<16x1xf32>
    %187 = vector.broadcast %186 : vector<16x1xf32> to vector<16x128xf32>
    %188 = arith.mulf %183, %187 : vector<16x128xf32>
    %189 = vector.broadcast %169 : vector<1x128xf32> to vector<16x128xf32>
    %190 = arith.mulf %188, %189 : vector<16x128xf32>
    %191 = vector.broadcast %170 : vector<1x128xf32> to vector<16x128xf32>
    %192 = arith.addf %190, %191 : vector<16x128xf32>
    %193 = vector.shape_cast %192 : vector<16x128xf32> to vector<2x8x128xf32>
    %c0_68 = arith.constant 0 : index
    %c0_69 = arith.constant 0 : index
    %c0_70 = arith.constant 0 : index
    %194 = vector.load %arg17[%c0_68, %c0_69, %c0_70] : memref<2x8x128xf32, #tpu.memory_space<vmem>>, vector<2x8x128xf32>
    tpu.vector_store %arg17[%c0_68, %c0_69, %c0_70], %193 {strides = array<i32>} : memref<2x8x128xf32, #tpu.memory_space<vmem>>, vector<2x8x128xf32>,
    return
  }
  func.func @transform_0(%arg0: i32) -> (i32, i32, i32) {
    %c0_i32 = arith.constant 0 : i32
    %c0_i32_0 = arith.constant 0 : i32
    %c0_i32_1 = arith.constant 0 : i32
    return %arg0, %c0_i32, %c0_i32_0 : i32, i32, i32
  }
  func.func @transform_1(%arg0: i32) -> (i32, i32) {
    %c0_i32 = arith.constant 0 : i32
    %c0_i32_0 = arith.constant 0 : i32
    return %arg0, %c0_i32 : i32, i32
  }
  func.func @transform_2(%arg0: i32) -> (i32, i32) {
    %c0_i32 = arith.constant 0 : i32
    %c0_i32_0 = arith.constant 0 : i32
    %c0_i32_1 = arith.constant 0 : i32
    return %c0_i32, %c0_i32_0 : i32, i32
  }
  func.func @transform_3(%arg0: i32) -> (i32, i32) {
    %c0_i32 = arith.constant 0 : i32
    %c0_i32_0 = arith.constant 0 : i32
    %c0_i32_1 = arith.constant 0 : i32
    return %c0_i32, %c0_i32_0 : i32, i32
  }
  func.func @transform_4(%arg0: i32) -> (i32, i32) {
    %c0_i32 = arith.constant 0 : i32
    %c0_i32_0 = arith.constant 0 : i32
    %c0_i32_1 = arith.constant 0 : i32
    return %c0_i32, %c0_i32_0 : i32, i32
  }
  func.func @transform_5(%arg0: i32) -> (i32, i32) {
    %c0_i32 = arith.constant 0 : i32
    %c0_i32_0 = arith.constant 0 : i32
    %c0_i32_1 = arith.constant 0 : i32
    return %c0_i32, %c0_i32_0 : i32, i32
  }
  func.func @transform_6(%arg0: i32) -> (i32, i32) {
    %c0_i32 = arith.constant 0 : i32
    %c0_i32_0 = arith.constant 0 : i32
    %c0_i32_1 = arith.constant 0 : i32
    return %c0_i32, %c0_i32_0 : i32, i32
  }
  func.func @transform_7(%arg0: i32) -> (i32, i32) {
    %c0_i32 = arith.constant 0 : i32
    %c0_i32_0 = arith.constant 0 : i32
    %c0_i32_1 = arith.constant 0 : i32
    return %c0_i32, %c0_i32_0 : i32, i32
  }
  func.func @transform_8(%arg0: i32) -> (i32, i32) {
    %c0_i32 = arith.constant 0 : i32
    %c0_i32_0 = arith.constant 0 : i32
    %c0_i32_1 = arith.constant 0 : i32
    return %c0_i32, %c0_i32_0 : i32, i32
  }
  func.func @transform_9(%arg0: i32) -> (i32, i32) {
    %c0_i32 = arith.constant 0 : i32
    %c0_i32_0 = arith.constant 0 : i32
    %c0_i32_1 = arith.constant 0 : i32
    return %c0_i32, %c0_i32_0 : i32, i32
  }
  func.func @transform_10(%arg0: i32) -> (i32, i32) {
    %c0_i32 = arith.constant 0 : i32
    %c0_i32_0 = arith.constant 0 : i32
    %c0_i32_1 = arith.constant 0 : i32
    return %c0_i32, %c0_i32_0 : i32, i32
  }
  func.func @transform_11(%arg0: i32) -> (i32, i32) {
    %c0_i32 = arith.constant 0 : i32
    %c0_i32_0 = arith.constant 0 : i32
    %c0_i32_1 = arith.constant 0 : i32
    return %c0_i32, %c0_i32_0 : i32, i32
  }
  func.func @transform_12(%arg0: i32) -> (i32, i32) {
    %c0_i32 = arith.constant 0 : i32
    %c0_i32_0 = arith.constant 0 : i32
    %c0_i32_1 = arith.constant 0 : i32
    return %c0_i32, %c0_i32_0 : i32, i32
  }
  func.func @transform_13(%arg0: i32) -> (i32, i32) {
    %c0_i32 = arith.constant 0 : i32
    %c0_i32_0 = arith.constant 0 : i32
    %c0_i32_1 = arith.constant 0 : i32
    return %c0_i32, %c0_i32_0 : i32, i32
  }
  func.func @transform_14(%arg0: i32) -> (i32, i32) {
    %c0_i32 = arith.constant 0 : i32
    %c0_i32_0 = arith.constant 0 : i32
    %c0_i32_1 = arith.constant 0 : i32
    return %c0_i32, %c0_i32_0 : i32, i32
  }
  func.func @transform_15(%arg0: i32) -> (i32, i32) {
    %c0_i32 = arith.constant 0 : i32
    %c0_i32_0 = arith.constant 0 : i32
    %c0_i32_1 = arith.constant 0 : i32
    return %c0_i32, %c0_i32_0 : i32, i32
  }
  func.func @transform_16(%arg0: i32) -> (i32, i32, i32) {
    %c0_i32 = arith.constant 0 : i32
    %c0_i32_0 = arith.constant 0 : i32
    %c0_i32_1 = arith.constant 0 : i32
    return %arg0, %c0_i32, %c0_i32_0 : i32, i32, i32
  }
}

module attributes {stable_mosaic.version = 11 : i64} {
  func.func @_encoder_layer_kernel(%arg0: i32, %arg1: memref<2x8x128xf32, #tpu.memory_space<vmem>>, %arg2: memref<2x8xf32, #tpu.memory_space<vmem>>, %arg3: memref<1x128xf32, #tpu.memory_space<vmem>>, %arg4: memref<1x128xf32, #tpu.memory_space<vmem>>, %arg5: memref<128x384xbf16, #tpu.memory_space<vmem>>, %arg6: memref<1x384xf32, #tpu.memory_space<vmem>>, %arg7: memref<128x128xbf16, #tpu.memory_space<vmem>>, %arg8: memref<1x128xf32, #tpu.memory_space<vmem>>, %arg9: memref<1x128xf32, #tpu.memory_space<vmem>>, %arg10: memref<1x128xf32, #tpu.memory_space<vmem>>, %arg11: memref<128x256xbf16, #tpu.memory_space<vmem>>, %arg12: memref<1x256xf32, #tpu.memory_space<vmem>>, %arg13: memref<256x128xbf16, #tpu.memory_space<vmem>>, %arg14: memref<1x128xf32, #tpu.memory_space<vmem>>, %arg15: memref<1x128xf32, #tpu.memory_space<vmem>>, %arg16: memref<1x128xf32, #tpu.memory_space<vmem>>, %arg17: memref<2x8x128xf32, #tpu.memory_space<vmem>>) attributes {dimension_semantics = [#tpu.dimension_semantics<parallel>], iteration_bounds = array<i64: 1>, scalar_prefetch = 0 : i64, scratch_operands = 0 : i64, tpu.core_type = #tpu.core_type<tc>, window_params = [{transform_indices = @transform_0, window_bounds = array<i64: 2, 8, 128>}, {transform_indices = @transform_1, window_bounds = array<i64: 2, 8>}, {pipeline_mode = #tpu.pipeline_mode<synchronous>, transform_indices = @transform_2, window_bounds = array<i64: 1, 128>}, {pipeline_mode = #tpu.pipeline_mode<synchronous>, transform_indices = @transform_3, window_bounds = array<i64: 1, 128>}, {pipeline_mode = #tpu.pipeline_mode<synchronous>, transform_indices = @transform_4, window_bounds = array<i64: 128, 384>}, {pipeline_mode = #tpu.pipeline_mode<synchronous>, transform_indices = @transform_5, window_bounds = array<i64: 1, 384>}, {pipeline_mode = #tpu.pipeline_mode<synchronous>, transform_indices = @transform_6, window_bounds = array<i64: 128, 128>}, {pipeline_mode = #tpu.pipeline_mode<synchronous>, transform_indices = @transform_7, window_bounds = array<i64: 1, 128>}, {pipeline_mode = #tpu.pipeline_mode<synchronous>, transform_indices = @transform_8, window_bounds = array<i64: 1, 128>}, {pipeline_mode = #tpu.pipeline_mode<synchronous>, transform_indices = @transform_9, window_bounds = array<i64: 1, 128>}, {pipeline_mode = #tpu.pipeline_mode<synchronous>, transform_indices = @transform_10, window_bounds = array<i64: 128, 256>}, {pipeline_mode = #tpu.pipeline_mode<synchronous>, transform_indices = @transform_11, window_bounds = array<i64: 1, 256>}, {pipeline_mode = #tpu.pipeline_mode<synchronous>, transform_indices = @transform_12, window_bounds = array<i64: 256, 128>}, {pipeline_mode = #tpu.pipeline_mode<synchronous>, transform_indices = @transform_13, window_bounds = array<i64: 1, 128>}, {pipeline_mode = #tpu.pipeline_mode<synchronous>, transform_indices = @transform_14, window_bounds = array<i64: 1, 128>}, {pipeline_mode = #tpu.pipeline_mode<synchronous>, transform_indices = @transform_15, window_bounds = array<i64: 1, 128>}, {transform_indices = @transform_16, window_bounds = array<i64: 2, 8, 128>}]} {
    %c0 = arith.constant 0 : index
    %c0_0 = arith.constant 0 : index
    %c0_1 = arith.constant 0 : index
    %0 = vector.load %arg1[%c0, %c0_0, %c0_1] : memref<2x8x128xf32, #tpu.memory_space<vmem>>, vector<2x8x128xf32>
    %1 = vector.shape_cast %0 : vector<2x8x128xf32> to vector<16x128xf32>
    %c0_2 = arith.constant 0 : index
    %c0_3 = arith.constant 0 : index
    %2 = vector.load %arg3[%c0_2, %c0_3] : memref<1x128xf32, #tpu.memory_space<vmem>>, vector<1x128xf32>
    %c0_4 = arith.constant 0 : index
    %c0_5 = arith.constant 0 : index
    %3 = vector.load %arg4[%c0_4, %c0_5] : memref<1x128xf32, #tpu.memory_space<vmem>>, vector<1x128xf32>
    %cst = arith.constant dense<0.000000e+00> : vector<16xf32>
    %4 = vector.multi_reduction <add>, %1, %cst [1] : vector<16x128xf32> to vector<16xf32>
    %5 = vector.shape_cast %4 : vector<16xf32> to vector<16x1xf32>
    %cst_6 = arith.constant 1.280000e+02 : f32
    %6 = vector.broadcast %cst_6 : f32 to vector<16x1xf32>
    %7 = arith.divf %5, %6 : vector<16x1xf32>
    %8 = vector.broadcast %7 : vector<16x1xf32> to vector<16x128xf32>
    %9 = arith.subf %1, %8 : vector<16x128xf32>
    %10 = arith.mulf %9, %9 : vector<16x128xf32>
    %cst_7 = arith.constant dense<0.000000e+00> : vector<16xf32>
    %11 = vector.multi_reduction <add>, %10, %cst_7 [1] : vector<16x128xf32> to vector<16xf32>
    %12 = vector.shape_cast %11 : vector<16xf32> to vector<16x1xf32>
    %cst_8 = arith.constant 1.280000e+02 : f32
    %13 = vector.broadcast %cst_8 : f32 to vector<16x1xf32>
    %14 = arith.divf %12, %13 : vector<16x1xf32>
    %15 = vector.broadcast %7 : vector<16x1xf32> to vector<16x128xf32>
    %16 = arith.subf %1, %15 : vector<16x128xf32>
    %cst_9 = arith.constant 1.000000e-07 : f32
    %17 = vector.broadcast %cst_9 : f32 to vector<16x1xf32>
    %18 = arith.addf %14, %17 : vector<16x1xf32>
    %19 = math.rsqrt %18 : vector<16x1xf32>
    %20 = vector.broadcast %19 : vector<16x1xf32> to vector<16x128xf32>
    %21 = arith.mulf %16, %20 : vector<16x128xf32>
    %22 = vector.broadcast %2 : vector<1x128xf32> to vector<16x128xf32>
    %23 = arith.mulf %21, %22 : vector<16x128xf32>
    %24 = vector.broadcast %3 : vector<1x128xf32> to vector<16x128xf32>
    %25 = arith.addf %23, %24 : vector<16x128xf32>
    %c0_10 = arith.constant 0 : index
    %c0_11 = arith.constant 0 : index
    %26 = vector.load %arg2[%c0_10, %c0_11] : memref<2x8xf32, #tpu.memory_space<vmem>>, vector<2x8xf32>
    %27 = arith.truncf %25 : vector<16x128xf32> to vector<16x128xbf16>
    %c0_12 = arith.constant 0 : index
    %c0_13 = arith.constant 0 : index
    %28 = vector.load %arg5[%c0_12, %c0_13] : memref<128x384xbf16, #tpu.memory_space<vmem>>, vector<128x384xbf16>
    %cst_14 = arith.constant dense<0.000000e+00> : vector<16x384xf32>
    %29 = tpu.matmul %27, %28, %cst_14 {dimension_numbers = #tpu.dot_dimension_numbers<[1], [0], [0], [1], [0, 0, 1, 1], [], []>} : vector<16x128xbf16>, vector<128x384xbf16>, vector<16x384xf32> -> vector<16x384xf32>
    %c0_15 = arith.constant 0 : index
    %c0_16 = arith.constant 0 : index
    %30 = vector.load %arg6[%c0_15, %c0_16] : memref<1x384xf32, #tpu.memory_space<vmem>>, vector<1x384xf32>
    %31 = vector.broadcast %30 : vector<1x384xf32> to vector<16x384xf32>
    %32 = arith.addf %29, %31 : vector<16x384xf32>
    %33 = vector.shape_cast %32 : vector<16x384xf32> to vector<2x8x384xf32>
    %cst_17 = arith.constant 0.000000e+00 : f32
    %34 = vector.broadcast %cst_17 : f32 to vector<16x128xf32>
    %35 = vector.extract_strided_slice %33 {offsets = [0, 0, 0], sizes = [2, 8, 32], strides = [1, 1, 1]} : vector<2x8x384xf32> to vector<2x8x32xf32>
    %36 = arith.truncf %35 : vector<2x8x32xf32> to vector<2x8x32xbf16>
    %37 = vector.extract_strided_slice %33 {offsets = [0, 0, 128], sizes = [2, 8, 32], strides = [1, 1, 1]} : vector<2x8x384xf32> to vector<2x8x32xf32>
    %38 = arith.truncf %37 : vector<2x8x32xf32> to vector<2x8x32xbf16>
    %39 = vector.extract_strided_slice %33 {offsets = [0, 0, 256], sizes = [2, 8, 32], strides = [1, 1, 1]} : vector<2x8x384xf32> to vector<2x8x32xf32>
    %40 = arith.truncf %39 : vector<2x8x32xf32> to vector<2x8x32xbf16>
    "tpu.trace_start"() <{level = 10 : i32, message = "bqd,bkd->bqk"}> : () -> ()
    %cst_18 = arith.constant dense<0.000000e+00> : vector<2x8x8xf32>
    %41 = tpu.matmul %36, %38, %cst_18 {dimension_numbers = #tpu.dot_dimension_numbers<[2], [2], [1], [1], [0, 0, 0, 1, 1, 1], [0], [0]>} : vector<2x8x32xbf16>, vector<2x8x32xbf16>, vector<2x8x8xf32> -> vector<2x8x8xf32>
    "tpu.trace_stop"() : () -> ()
    %42 = vector.shape_cast %26 : vector<2x8xf32> to vector<2x1x8xf32>
    %43 = vector.broadcast %42 : vector<2x1x8xf32> to vector<2x8x8xf32>
    %44 = arith.addf %41, %43 : vector<2x8x8xf32>
    %cst_19 = arith.constant dense<0xFF800000> : vector<2x8xf32>
    %45 = vector.multi_reduction <maximumf>, %44, %cst_19 [2] : vector<2x8x8xf32> to vector<2x8xf32>
    %46 = vector.shape_cast %45 : vector<2x8xf32> to vector<2x8x1xf32>
    %47 = vector.broadcast %46 : vector<2x8x1xf32> to vector<2x8x8xf32>
    %48 = arith.subf %44, %47 : vector<2x8x8xf32>
    %49 = math.exp %48 : vector<2x8x8xf32>
    %cst_20 = arith.constant dense<0.000000e+00> : vector<2x8xf32>
    %50 = vector.multi_reduction <add>, %49, %cst_20 [2] : vector<2x8x8xf32> to vector<2x8xf32>
    %51 = vector.shape_cast %50 : vector<2x8xf32> to vector<2x8x1xf32>
    %52 = vector.broadcast %51 : vector<2x8x1xf32> to vector<2x8x8xf32>
    %53 = arith.divf %49, %52 : vector<2x8x8xf32>
    %54 = arith.truncf %53 : vector<2x8x8xf32> to vector<2x8x8xbf16>
    "tpu.trace_start"() <{level = 10 : i32, message = "bqk,bkd->bqd"}> : () -> ()
    %cst_21 = arith.constant dense<0.000000e+00> : vector<2x8x32xf32>
    %55 = tpu.matmul %54, %40, %cst_21 {dimension_numbers = #tpu.dot_dimension_numbers<[2], [1], [1], [2], [0, 0, 0, 1, 1, 2], [0], [0]>} : vector<2x8x8xbf16>, vector<2x8x32xbf16>, vector<2x8x32xf32> -> vector<2x8x32xf32>
    "tpu.trace_stop"() : () -> ()
    %56 = vector.shape_cast %55 : vector<2x8x32xf32> to vector<16x32xf32>
    %57 = arith.truncf %56 : vector<16x32xf32> to vector<16x32xbf16>
    %c0_22 = arith.constant 0 : index
    %c0_23 = arith.constant 0 : index
    %58 = vector.load %arg7[%c0_22, %c0_23] : memref<128x128xbf16, #tpu.memory_space<vmem>>, vector<32x128xbf16>
    %cst_24 = arith.constant dense<0.000000e+00> : vector<16x128xf32>
    %59 = tpu.matmul %57, %58, %cst_24 {dimension_numbers = #tpu.dot_dimension_numbers<[1], [0], [0], [1], [0, 0, 1, 1], [], []>} : vector<16x32xbf16>, vector<32x128xbf16>, vector<16x128xf32> -> vector<16x128xf32>
    %60 = arith.addf %34, %59 : vector<16x128xf32>
    %61 = vector.extract_strided_slice %33 {offsets = [0, 0, 32], sizes = [2, 8, 32], strides = [1, 1, 1]} : vector<2x8x384xf32> to vector<2x8x32xf32>
    %62 = arith.truncf %61 : vector<2x8x32xf32> to vector<2x8x32xbf16>
    %63 = vector.extract_strided_slice %33 {offsets = [0, 0, 160], sizes = [2, 8, 32], strides = [1, 1, 1]} : vector<2x8x384xf32> to vector<2x8x32xf32>
    %64 = arith.truncf %63 : vector<2x8x32xf32> to vector<2x8x32xbf16>
    %65 = vector.extract_strided_slice %33 {offsets = [0, 0, 288], sizes = [2, 8, 32], strides = [1, 1, 1]} : vector<2x8x384xf32> to vector<2x8x32xf32>
    %66 = arith.truncf %65 : vector<2x8x32xf32> to vector<2x8x32xbf16>
    "tpu.trace_start"() <{level = 10 : i32, message = "bqd,bkd->bqk"}> : () -> ()
    %cst_25 = arith.constant dense<0.000000e+00> : vector<2x8x8xf32>
    %67 = tpu.matmul %62, %64, %cst_25 {dimension_numbers = #tpu.dot_dimension_numbers<[2], [2], [1], [1], [0, 0, 0, 1, 1, 1], [0], [0]>} : vector<2x8x32xbf16>, vector<2x8x32xbf16>, vector<2x8x8xf32> -> vector<2x8x8xf32>
    "tpu.trace_stop"() : () -> ()
    %68 = vector.shape_cast %26 : vector<2x8xf32> to vector<2x1x8xf32>
    %69 = vector.broadcast %68 : vector<2x1x8xf32> to vector<2x8x8xf32>
    %70 = arith.addf %67, %69 : vector<2x8x8xf32>
    %cst_26 = arith.constant dense<0xFF800000> : vector<2x8xf32>
    %71 = vector.multi_reduction <maximumf>, %70, %cst_26 [2] : vector<2x8x8xf32> to vector<2x8xf32>
    %72 = vector.shape_cast %71 : vector<2x8xf32> to vector<2x8x1xf32>
    %73 = vector.broadcast %72 : vector<2x8x1xf32> to vector<2x8x8xf32>
    %74 = arith.subf %70, %73 : vector<2x8x8xf32>
    %75 = math.exp %74 : vector<2x8x8xf32>
    %cst_27 = arith.constant dense<0.000000e+00> : vector<2x8xf32>
    %76 = vector.multi_reduction <add>, %75, %cst_27 [2] : vector<2x8x8xf32> to vector<2x8xf32>
    %77 = vector.shape_cast %76 : vector<2x8xf32> to vector<2x8x1xf32>
    %78 = vector.broadcast %77 : vector<2x8x1xf32> to vector<2x8x8xf32>
    %79 = arith.divf %75, %78 : vector<2x8x8xf32>
    %80 = arith.truncf %79 : vector<2x8x8xf32> to vector<2x8x8xbf16>
    "tpu.trace_start"() <{level = 10 : i32, message = "bqk,bkd->bqd"}> : () -> ()
    %cst_28 = arith.constant dense<0.000000e+00> : vector<2x8x32xf32>
    %81 = tpu.matmul %80, %66, %cst_28 {dimension_numbers = #tpu.dot_dimension_numbers<[2], [1], [1], [2], [0, 0, 0, 1, 1, 2], [0], [0]>} : vector<2x8x8xbf16>, vector<2x8x32xbf16>, vector<2x8x32xf32> -> vector<2x8x32xf32>
    "tpu.trace_stop"() : () -> ()
    %82 = vector.shape_cast %81 : vector<2x8x32xf32> to vector<16x32xf32>
    %83 = arith.truncf %82 : vector<16x32xf32> to vector<16x32xbf16>
    %c32 = arith.constant 32 : index
    %c0_29 = arith.constant 0 : index
    %84 = vector.load %arg7[%c32, %c0_29] : memref<128x128xbf16, #tpu.memory_space<vmem>>, vector<32x128xbf16>
    %cst_30 = arith.constant dense<0.000000e+00> : vector<16x128xf32>
    %85 = tpu.matmul %83, %84, %cst_30 {dimension_numbers = #tpu.dot_dimension_numbers<[1], [0], [0], [1], [0, 0, 1, 1], [], []>} : vector<16x32xbf16>, vector<32x128xbf16>, vector<16x128xf32> -> vector<16x128xf32>
    %86 = arith.addf %60, %85 : vector<16x128xf32>
    %87 = vector.extract_strided_slice %33 {offsets = [0, 0, 64], sizes = [2, 8, 32], strides = [1, 1, 1]} : vector<2x8x384xf32> to vector<2x8x32xf32>
    %88 = arith.truncf %87 : vector<2x8x32xf32> to vector<2x8x32xbf16>
    %89 = vector.extract_strided_slice %33 {offsets = [0, 0, 192], sizes = [2, 8, 32], strides = [1, 1, 1]} : vector<2x8x384xf32> to vector<2x8x32xf32>
    %90 = arith.truncf %89 : vector<2x8x32xf32> to vector<2x8x32xbf16>
    %91 = vector.extract_strided_slice %33 {offsets = [0, 0, 320], sizes = [2, 8, 32], strides = [1, 1, 1]} : vector<2x8x384xf32> to vector<2x8x32xf32>
    %92 = arith.truncf %91 : vector<2x8x32xf32> to vector<2x8x32xbf16>
    "tpu.trace_start"() <{level = 10 : i32, message = "bqd,bkd->bqk"}> : () -> ()
    %cst_31 = arith.constant dense<0.000000e+00> : vector<2x8x8xf32>
    %93 = tpu.matmul %88, %90, %cst_31 {dimension_numbers = #tpu.dot_dimension_numbers<[2], [2], [1], [1], [0, 0, 0, 1, 1, 1], [0], [0]>} : vector<2x8x32xbf16>, vector<2x8x32xbf16>, vector<2x8x8xf32> -> vector<2x8x8xf32>
    "tpu.trace_stop"() : () -> ()
    %94 = vector.shape_cast %26 : vector<2x8xf32> to vector<2x1x8xf32>
    %95 = vector.broadcast %94 : vector<2x1x8xf32> to vector<2x8x8xf32>
    %96 = arith.addf %93, %95 : vector<2x8x8xf32>
    %cst_32 = arith.constant dense<0xFF800000> : vector<2x8xf32>
    %97 = vector.multi_reduction <maximumf>, %96, %cst_32 [2] : vector<2x8x8xf32> to vector<2x8xf32>
    %98 = vector.shape_cast %97 : vector<2x8xf32> to vector<2x8x1xf32>
    %99 = vector.broadcast %98 : vector<2x8x1xf32> to vector<2x8x8xf32>
    %100 = arith.subf %96, %99 : vector<2x8x8xf32>
    %101 = math.exp %100 : vector<2x8x8xf32>
    %cst_33 = arith.constant dense<0.000000e+00> : vector<2x8xf32>
    %102 = vector.multi_reduction <add>, %101, %cst_33 [2] : vector<2x8x8xf32> to vector<2x8xf32>
    %103 = vector.shape_cast %102 : vector<2x8xf32> to vector<2x8x1xf32>
    %104 = vector.broadcast %103 : vector<2x8x1xf32> to vector<2x8x8xf32>
    %105 = arith.divf %101, %104 : vector<2x8x8xf32>
    %106 = arith.truncf %105 : vector<2x8x8xf32> to vector<2x8x8xbf16>
    "tpu.trace_start"() <{level = 10 : i32, message = "bqk,bkd->bqd"}> : () -> ()
    %cst_34 = arith.constant dense<0.000000e+00> : vector<2x8x32xf32>
    %107 = tpu.matmul %106, %92, %cst_34 {dimension_numbers = #tpu.dot_dimension_numbers<[2], [1], [1], [2], [0, 0, 0, 1, 1, 2], [0], [0]>} : vector<2x8x8xbf16>, vector<2x8x32xbf16>, vector<2x8x32xf32> -> vector<2x8x32xf32>
    "tpu.trace_stop"() : () -> ()
    %108 = vector.shape_cast %107 : vector<2x8x32xf32> to vector<16x32xf32>
    %109 = arith.truncf %108 : vector<16x32xf32> to vector<16x32xbf16>
    %c64 = arith.constant 64 : index
    %c0_35 = arith.constant 0 : index
    %110 = vector.load %arg7[%c64, %c0_35] : memref<128x128xbf16, #tpu.memory_space<vmem>>, vector<32x128xbf16>
    %cst_36 = arith.constant dense<0.000000e+00> : vector<16x128xf32>
    %111 = tpu.matmul %109, %110, %cst_36 {dimension_numbers = #tpu.dot_dimension_numbers<[1], [0], [0], [1], [0, 0, 1, 1], [], []>} : vector<16x32xbf16>, vector<32x128xbf16>, vector<16x128xf32> -> vector<16x128xf32>
    %112 = arith.addf %86, %111 : vector<16x128xf32>
    %113 = vector.extract_strided_slice %33 {offsets = [0, 0, 96], sizes = [2, 8, 32], strides = [1, 1, 1]} : vector<2x8x384xf32> to vector<2x8x32xf32>
    %114 = arith.truncf %113 : vector<2x8x32xf32> to vector<2x8x32xbf16>
    %115 = vector.extract_strided_slice %33 {offsets = [0, 0, 224], sizes = [2, 8, 32], strides = [1, 1, 1]} : vector<2x8x384xf32> to vector<2x8x32xf32>
    %116 = arith.truncf %115 : vector<2x8x32xf32> to vector<2x8x32xbf16>
    %117 = vector.extract_strided_slice %33 {offsets = [0, 0, 352], sizes = [2, 8, 32], strides = [1, 1, 1]} : vector<2x8x384xf32> to vector<2x8x32xf32>
    %118 = arith.truncf %117 : vector<2x8x32xf32> to vector<2x8x32xbf16>
    "tpu.trace_start"() <{level = 10 : i32, message = "bqd,bkd->bqk"}> : () -> ()
    %cst_37 = arith.constant dense<0.000000e+00> : vector<2x8x8xf32>
    %119 = tpu.matmul %114, %116, %cst_37 {dimension_numbers = #tpu.dot_dimension_numbers<[2], [2], [1], [1], [0, 0, 0, 1, 1, 1], [0], [0]>} : vector<2x8x32xbf16>, vector<2x8x32xbf16>, vector<2x8x8xf32> -> vector<2x8x8xf32>
    "tpu.trace_stop"() : () -> ()
    %120 = vector.shape_cast %26 : vector<2x8xf32> to vector<2x1x8xf32>
    %121 = vector.broadcast %120 : vector<2x1x8xf32> to vector<2x8x8xf32>
    %122 = arith.addf %119, %121 : vector<2x8x8xf32>
    %cst_38 = arith.constant dense<0xFF800000> : vector<2x8xf32>
    %123 = vector.multi_reduction <maximumf>, %122, %cst_38 [2] : vector<2x8x8xf32> to vector<2x8xf32>
    %124 = vector.shape_cast %123 : vector<2x8xf32> to vector<2x8x1xf32>
    %125 = vector.broadcast %124 : vector<2x8x1xf32> to vector<2x8x8xf32>
    %126 = arith.subf %122, %125 : vector<2x8x8xf32>
    %127 = math.exp %126 : vector<2x8x8xf32>
    %cst_39 = arith.constant dense<0.000000e+00> : vector<2x8xf32>
    %128 = vector.multi_reduction <add>, %127, %cst_39 [2] : vector<2x8x8xf32> to vector<2x8xf32>
    %129 = vector.shape_cast %128 : vector<2x8xf32> to vector<2x8x1xf32>
    %130 = vector.broadcast %129 : vector<2x8x1xf32> to vector<2x8x8xf32>
    %131 = arith.divf %127, %130 : vector<2x8x8xf32>
    %132 = arith.truncf %131 : vector<2x8x8xf32> to vector<2x8x8xbf16>
    "tpu.trace_start"() <{level = 10 : i32, message = "bqk,bkd->bqd"}> : () -> ()
    %cst_40 = arith.constant dense<0.000000e+00> : vector<2x8x32xf32>
    %133 = tpu.matmul %132, %118, %cst_40 {dimension_numbers = #tpu.dot_dimension_numbers<[2], [1], [1], [2], [0, 0, 0, 1, 1, 2], [0], [0]>} : vector<2x8x8xbf16>, vector<2x8x32xbf16>, vector<2x8x32xf32> -> vector<2x8x32xf32>
    "tpu.trace_stop"() : () -> ()
    %134 = vector.shape_cast %133 : vector<2x8x32xf32> to vector<16x32xf32>
    %135 = arith.truncf %134 : vector<16x32xf32> to vector<16x32xbf16>
    %c96 = arith.constant 96 : index
    %c0_41 = arith.constant 0 : index
    %136 = vector.load %arg7[%c96, %c0_41] : memref<128x128xbf16, #tpu.memory_space<vmem>>, vector<32x128xbf16>
    %cst_42 = arith.constant dense<0.000000e+00> : vector<16x128xf32>
    %137 = tpu.matmul %135, %136, %cst_42 {dimension_numbers = #tpu.dot_dimension_numbers<[1], [0], [0], [1], [0, 0, 1, 1], [], []>} : vector<16x32xbf16>, vector<32x128xbf16>, vector<16x128xf32> -> vector<16x128xf32>
    %138 = arith.addf %112, %137 : vector<16x128xf32>
    %c0_43 = arith.constant 0 : index
    %c0_44 = arith.constant 0 : index
    %139 = vector.load %arg8[%c0_43, %c0_44] : memref<1x128xf32, #tpu.memory_space<vmem>>, vector<1x128xf32>
    %140 = vector.broadcast %139 : vector<1x128xf32> to vector<16x128xf32>
    %141 = arith.addf %138, %140 : vector<16x128xf32>
    %142 = arith.addf %141, %25 : vector<16x128xf32>
    %c0_45 = arith.constant 0 : index
    %c0_46 = arith.constant 0 : index
    %143 = vector.load %arg9[%c0_45, %c0_46] : memref<1x128xf32, #tpu.memory_space<vmem>>, vector<1x128xf32>
    %c0_47 = arith.constant 0 : index
    %c0_48 = arith.constant 0 : index
    %144 = vector.load %arg10[%c0_47, %c0_48] : memref<1x128xf32, #tpu.memory_space<vmem>>, vector<1x128xf32>
    %cst_49 = arith.constant dense<0.000000e+00> : vector<16xf32>
    %145 = vector.multi_reduction <add>, %142, %cst_49 [1] : vector<16x128xf32> to vector<16xf32>
    %146 = vector.shape_cast %145 : vector<16xf32> to vector<16x1xf32>
    %cst_50 = arith.constant 1.280000e+02 : f32
    %147 = vector.broadcast %cst_50 : f32 to vector<16x1xf32>
    %148 = arith.divf %146, %147 : vector<16x1xf32>
    %149 = vector.broadcast %148 : vector<16x1xf32> to vector<16x128xf32>
    %150 = arith.subf %142, %149 : vector<16x128xf32>
    %151 = arith.mulf %150, %150 : vector<16x128xf32>
    %cst_51 = arith.constant dense<0.000000e+00> : vector<16xf32>
    %152 = vector.multi_reduction <add>, %151, %cst_51 [1] : vector<16x128xf32> to vector<16xf32>
    %153 = vector.shape_cast %152 : vector<16xf32> to vector<16x1xf32>
    %cst_52 = arith.constant 1.280000e+02 : f32
    %154 = vector.broadcast %cst_52 : f32 to vector<16x1xf32>
    %155 = arith.divf %153, %154 : vector<16x1xf32>
    %156 = vector.broadcast %148 : vector<16x1xf32> to vector<16x128xf32>
    %157 = arith.subf %142, %156 : vector<16x128xf32>
    %cst_53 = arith.constant 1.000000e-07 : f32
    %158 = vector.broadcast %cst_53 : f32 to vector<16x1xf32>
    %159 = arith.addf %155, %158 : vector<16x1xf32>
    %160 = math.rsqrt %159 : vector<16x1xf32>
    %161 = vector.broadcast %160 : vector<16x1xf32> to vector<16x128xf32>
    %162 = arith.mulf %157, %161 : vector<16x128xf32>
    %163 = vector.broadcast %143 : vector<1x128xf32> to vector<16x128xf32>
    %164 = arith.mulf %162, %163 : vector<16x128xf32>
    %165 = vector.broadcast %144 : vector<1x128xf32> to vector<16x128xf32>
    %166 = arith.addf %164, %165 : vector<16x128xf32>
    %167 = arith.truncf %166 : vector<16x128xf32> to vector<16x128xbf16>
    %c0_54 = arith.constant 0 : index
    %c0_55 = arith.constant 0 : index
    %168 = vector.load %arg11[%c0_54, %c0_55] : memref<128x256xbf16, #tpu.memory_space<vmem>>, vector<128x256xbf16>
    %cst_56 = arith.constant dense<0.000000e+00> : vector<16x256xf32>
    %169 = tpu.matmul %167, %168, %cst_56 {dimension_numbers = #tpu.dot_dimension_numbers<[1], [0], [0], [1], [0, 0, 1, 1], [], []>} : vector<16x128xbf16>, vector<128x256xbf16>, vector<16x256xf32> -> vector<16x256xf32>
    %c0_57 = arith.constant 0 : index
    %c0_58 = arith.constant 0 : index
    %170 = vector.load %arg12[%c0_57, %c0_58] : memref<1x256xf32, #tpu.memory_space<vmem>>, vector<1x256xf32>
    %171 = vector.broadcast %170 : vector<1x256xf32> to vector<16x256xf32>
    %172 = arith.addf %169, %171 : vector<16x256xf32>
    %cst_59 = arith.constant 5.000000e-01 : f32
    %173 = vector.broadcast %cst_59 : f32 to vector<16x256xf32>
    %174 = arith.mulf %173, %172 : vector<16x256xf32>
    %cst_60 = arith.constant 4.471500e-02 : f32
    %175 = vector.broadcast %cst_60 : f32 to vector<16x256xf32>
    %176 = arith.mulf %175, %172 : vector<16x256xf32>
    %177 = arith.mulf %176, %172 : vector<16x256xf32>
    %178 = arith.mulf %177, %172 : vector<16x256xf32>
    %179 = arith.addf %172, %178 : vector<16x256xf32>
    %cst_61 = arith.constant 0.797884583 : f32
    %180 = vector.broadcast %cst_61 : f32 to vector<16x256xf32>
    %181 = arith.mulf %180, %179 : vector<16x256xf32>
    %182 = math.tanh %181 : vector<16x256xf32>
    %cst_62 = arith.constant 1.000000e+00 : f32
    %183 = vector.broadcast %cst_62 : f32 to vector<16x256xf32>
    %184 = arith.addf %183, %182 : vector<16x256xf32>
    %185 = arith.mulf %174, %184 : vector<16x256xf32>
    %186 = arith.truncf %185 : vector<16x256xf32> to vector<16x256xbf16>
    %c0_63 = arith.constant 0 : index
    %c0_64 = arith.constant 0 : index
    %187 = vector.load %arg13[%c0_63, %c0_64] : memref<256x128xbf16, #tpu.memory_space<vmem>>, vector<256x128xbf16>
    %cst_65 = arith.constant dense<0.000000e+00> : vector<16x128xf32>
    %188 = tpu.matmul %186, %187, %cst_65 {dimension_numbers = #tpu.dot_dimension_numbers<[1], [0], [0], [1], [0, 0, 1, 1], [], []>} : vector<16x256xbf16>, vector<256x128xbf16>, vector<16x128xf32> -> vector<16x128xf32>
    %c0_66 = arith.constant 0 : index
    %c0_67 = arith.constant 0 : index
    %189 = vector.load %arg14[%c0_66, %c0_67] : memref<1x128xf32, #tpu.memory_space<vmem>>, vector<1x128xf32>
    %190 = vector.broadcast %189 : vector<1x128xf32> to vector<16x128xf32>
    %191 = arith.addf %188, %190 : vector<16x128xf32>
    %192 = arith.addf %191, %166 : vector<16x128xf32>
    %c0_68 = arith.constant 0 : index
    %c0_69 = arith.constant 0 : index
    %193 = vector.load %arg15[%c0_68, %c0_69] : memref<1x128xf32, #tpu.memory_space<vmem>>, vector<1x128xf32>
    %c0_70 = arith.constant 0 : index
    %c0_71 = arith.constant 0 : index
    %194 = vector.load %arg16[%c0_70, %c0_71] : memref<1x128xf32, #tpu.memory_space<vmem>>, vector<1x128xf32>
    %cst_72 = arith.constant dense<0.000000e+00> : vector<16xf32>
    %195 = vector.multi_reduction <add>, %192, %cst_72 [1] : vector<16x128xf32> to vector<16xf32>
    %196 = vector.shape_cast %195 : vector<16xf32> to vector<16x1xf32>
    %cst_73 = arith.constant 1.280000e+02 : f32
    %197 = vector.broadcast %cst_73 : f32 to vector<16x1xf32>
    %198 = arith.divf %196, %197 : vector<16x1xf32>
    %199 = vector.broadcast %198 : vector<16x1xf32> to vector<16x128xf32>
    %200 = arith.subf %192, %199 : vector<16x128xf32>
    %201 = arith.mulf %200, %200 : vector<16x128xf32>
    %cst_74 = arith.constant dense<0.000000e+00> : vector<16xf32>
    %202 = vector.multi_reduction <add>, %201, %cst_74 [1] : vector<16x128xf32> to vector<16xf32>
    %203 = vector.shape_cast %202 : vector<16xf32> to vector<16x1xf32>
    %cst_75 = arith.constant 1.280000e+02 : f32
    %204 = vector.broadcast %cst_75 : f32 to vector<16x1xf32>
    %205 = arith.divf %203, %204 : vector<16x1xf32>
    %206 = vector.broadcast %198 : vector<16x1xf32> to vector<16x128xf32>
    %207 = arith.subf %192, %206 : vector<16x128xf32>
    %cst_76 = arith.constant 1.000000e-07 : f32
    %208 = vector.broadcast %cst_76 : f32 to vector<16x1xf32>
    %209 = arith.addf %205, %208 : vector<16x1xf32>
    %210 = math.rsqrt %209 : vector<16x1xf32>
    %211 = vector.broadcast %210 : vector<16x1xf32> to vector<16x128xf32>
    %212 = arith.mulf %207, %211 : vector<16x128xf32>
    %213 = vector.broadcast %193 : vector<1x128xf32> to vector<16x128xf32>
    %214 = arith.mulf %212, %213 : vector<16x128xf32>
    %215 = vector.broadcast %194 : vector<1x128xf32> to vector<16x128xf32>
    %216 = arith.addf %214, %215 : vector<16x128xf32>
    %217 = vector.shape_cast %216 : vector<16x128xf32> to vector<2x8x128xf32>
    %c0_77 = arith.constant 0 : index
    %c0_78 = arith.constant 0 : index
    %c0_79 = arith.constant 0 : index
    %218 = vector.load %arg17[%c0_77, %c0_78, %c0_79] : memref<2x8x128xf32, #tpu.memory_space<vmem>>, vector<2x8x128xf32>
    tpu.vector_store %arg17[%c0_77, %c0_78, %c0_79], %217 {strides = array<i32>} : memref<2x8x128xf32, #tpu.memory_space<vmem>>, vector<2x8x128xf32>,
    return
  }
  func.func @transform_0(%arg0: i32) -> (i32, i32, i32) {
    %c0_i32 = arith.constant 0 : i32
    %c0_i32_0 = arith.constant 0 : i32
    %c0_i32_1 = arith.constant 0 : i32
    return %arg0, %c0_i32, %c0_i32_0 : i32, i32, i32
  }
  func.func @transform_1(%arg0: i32) -> (i32, i32) {
    %c0_i32 = arith.constant 0 : i32
    %c0_i32_0 = arith.constant 0 : i32
    return %arg0, %c0_i32 : i32, i32
  }
  func.func @transform_2(%arg0: i32) -> (i32, i32) {
    %c0_i32 = arith.constant 0 : i32
    %c0_i32_0 = arith.constant 0 : i32
    %c0_i32_1 = arith.constant 0 : i32
    return %c0_i32, %c0_i32_0 : i32, i32
  }
  func.func @transform_3(%arg0: i32) -> (i32, i32) {
    %c0_i32 = arith.constant 0 : i32
    %c0_i32_0 = arith.constant 0 : i32
    %c0_i32_1 = arith.constant 0 : i32
    return %c0_i32, %c0_i32_0 : i32, i32
  }
  func.func @transform_4(%arg0: i32) -> (i32, i32) {
    %c0_i32 = arith.constant 0 : i32
    %c0_i32_0 = arith.constant 0 : i32
    %c0_i32_1 = arith.constant 0 : i32
    return %c0_i32, %c0_i32_0 : i32, i32
  }
  func.func @transform_5(%arg0: i32) -> (i32, i32) {
    %c0_i32 = arith.constant 0 : i32
    %c0_i32_0 = arith.constant 0 : i32
    %c0_i32_1 = arith.constant 0 : i32
    return %c0_i32, %c0_i32_0 : i32, i32
  }
  func.func @transform_6(%arg0: i32) -> (i32, i32) {
    %c0_i32 = arith.constant 0 : i32
    %c0_i32_0 = arith.constant 0 : i32
    %c0_i32_1 = arith.constant 0 : i32
    return %c0_i32, %c0_i32_0 : i32, i32
  }
  func.func @transform_7(%arg0: i32) -> (i32, i32) {
    %c0_i32 = arith.constant 0 : i32
    %c0_i32_0 = arith.constant 0 : i32
    %c0_i32_1 = arith.constant 0 : i32
    return %c0_i32, %c0_i32_0 : i32, i32
  }
  func.func @transform_8(%arg0: i32) -> (i32, i32) {
    %c0_i32 = arith.constant 0 : i32
    %c0_i32_0 = arith.constant 0 : i32
    %c0_i32_1 = arith.constant 0 : i32
    return %c0_i32, %c0_i32_0 : i32, i32
  }
  func.func @transform_9(%arg0: i32) -> (i32, i32) {
    %c0_i32 = arith.constant 0 : i32
    %c0_i32_0 = arith.constant 0 : i32
    %c0_i32_1 = arith.constant 0 : i32
    return %c0_i32, %c0_i32_0 : i32, i32
  }
  func.func @transform_10(%arg0: i32) -> (i32, i32) {
    %c0_i32 = arith.constant 0 : i32
    %c0_i32_0 = arith.constant 0 : i32
    %c0_i32_1 = arith.constant 0 : i32
    return %c0_i32, %c0_i32_0 : i32, i32
  }
  func.func @transform_11(%arg0: i32) -> (i32, i32) {
    %c0_i32 = arith.constant 0 : i32
    %c0_i32_0 = arith.constant 0 : i32
    %c0_i32_1 = arith.constant 0 : i32
    return %c0_i32, %c0_i32_0 : i32, i32
  }
  func.func @transform_12(%arg0: i32) -> (i32, i32) {
    %c0_i32 = arith.constant 0 : i32
    %c0_i32_0 = arith.constant 0 : i32
    %c0_i32_1 = arith.constant 0 : i32
    return %c0_i32, %c0_i32_0 : i32, i32
  }
  func.func @transform_13(%arg0: i32) -> (i32, i32) {
    %c0_i32 = arith.constant 0 : i32
    %c0_i32_0 = arith.constant 0 : i32
    %c0_i32_1 = arith.constant 0 : i32
    return %c0_i32, %c0_i32_0 : i32, i32
  }
  func.func @transform_14(%arg0: i32) -> (i32, i32) {
    %c0_i32 = arith.constant 0 : i32
    %c0_i32_0 = arith.constant 0 : i32
    %c0_i32_1 = arith.constant 0 : i32
    return %c0_i32, %c0_i32_0 : i32, i32
  }
  func.func @transform_15(%arg0: i32) -> (i32, i32) {
    %c0_i32 = arith.constant 0 : i32
    %c0_i32_0 = arith.constant 0 : i32
    %c0_i32_1 = arith.constant 0 : i32
    return %c0_i32, %c0_i32_0 : i32, i32
  }
  func.func @transform_16(%arg0: i32) -> (i32, i32, i32) {
    %c0_i32 = arith.constant 0 : i32
    %c0_i32_0 = arith.constant 0 : i32
    %c0_i32_1 = arith.constant 0 : i32
    return %arg0, %c0_i32, %c0_i32_0 : i32, i32, i32
  }
}

</mosaic_0001>

<llo_original>
// kernel: lit_model_forward.5
$region0: #{lit_model_forward.5}
  #allocation0 [shape = 'u32[]', space=smem, size = 0x4, offset = 0x4, fixed_abs, tag = 'smem constant byte address 0x4 - core index']
  #allocation1 [shape = 'u32[72,128]{1,0:T(1,128)}', space=vmem, size = 0x9000, scoped, tag = 'internal scratch']
  #allocation2 [shape = 'f32[1,1]{1,0:T(1,128)S(1)}', space=vmem, size = 0x200, scoped, tag = 'scoped memory for lit_model_forward.5']
  #allocation3 [shape = 'f32[1,1]{1,0:T(1,128)S(1)}', space=vmem, size = 0x200, scoped, tag = 'scoped memory for lit_model_forward.5']
  %s0 = inlined_call_operand.vmem [shape: f32[2,8,128], index: 0, kind: input, shape index: {}]
  %s1 = inlined_call_operand.hbm [shape: bf16[128,128], index: 1, kind: input, shape index: {}]
  %s2 = inlined_call_operand.vmem [shape: f32[1,128], index: 2, kind: input, shape index: {}]
  %s3 = inlined_call_operand.vmem [shape: f32[1,128], index: 3, kind: input, shape index: {}]
  %s4 = inlined_call_operand.<no memory space> [shape: f32[1,1], index: 4, kind: input, shape index: {}]
  %s5 = inlined_call_operand.vmem [shape: f32[1,128], index: 5, kind: input, shape index: {}]
  %s6 = inlined_call_operand.<no memory space> [shape: f32[1,1], index: 6, kind: input, shape index: {}]
  %s7 = inlined_call_operand.vmem [shape: f32[2,1], index: 7, kind: output, shape index: {}]
  %s8 = sld [smem:[#allocation0]]
  $region42: #{lit_model_forward.5} parent=0
    _
  %s10 = ssub.s32 1, %s8
  %s11 = scalar_select 0, %s10, %s8
  %v12 = vstv %s4
  %13 = vst [vmem:[#allocation2] sm:$0x1] %v12
  %v14 = vstv %s6
  %15 = vst [vmem:[#allocation3] sm:$0x1] %v14
  $region1: #{lit_model_forward.5} parent=0
    #allocation4 [shape = 'u8[32768]{0}', space=vmem, size = 0x8000, scoped, tag = 'input window, operand 1, single buffered']
    #allocation5 [shape = 's32[1]{0}', space=sflag, size = 0x4, scoped, tag = 'scoped memory for lit_model_forward.5']
    %16 = vsyncpa [#allocation5], 0
    // Predicated region
    $region2: #{lit_model_forward.5} parent=1 // pred_check
      _
    $region3: #{lit_model_forward.5} parent=1 // pred_check_branch
      %18 = sbr.rel (0) target = $region5
    $region4: #{lit_model_forward.5} parent=1 // pred_region
      _
    $region5: #{lit_model_forward.5} parent=1 // pred_fallthru
      _
    // Predicated region
    $region6: #{lit_model_forward.5} parent=1 // pred_check
      _
    $region7: #{lit_model_forward.5} parent=1 // pred_check_branch
      %20 = sbr.rel (0) target = $region9
    $region8: #{lit_model_forward.5} parent=1 // pred_region
      %22 = vsyncadd [#allocation5], 0
      %s23 = sshll.u32 %s1, 4
      %s24 = int_to_ptr.hbm [resolvable:$true] %s23
      %s25 = sshll.u32 [#allocation4], 4
      %s26 = int_to_ptr.vmem [resolvable:$true] %s25
      %31 = dma.hbm_to_vmem [thread:$0]  %s24, 1024, %s26, [#allocation5], 64, 64, 4
    $region9: #{lit_model_forward.5} parent=1 // pred_fallthru
      _
    // Predicated region
    $region10: #{lit_model_forward.5} parent=1 // pred_check
      _
    $region11: #{lit_model_forward.5} parent=1 // pred_check_branch
      %33 = sbr.rel (0) target = $region13
    $region12: #{lit_model_forward.5} parent=1 // pred_region
      _
    $region13: #{lit_model_forward.5} parent=1 // pred_fallthru
      _
    // Predicated region
    $region14: #{lit_model_forward.5} parent=1 // pred_check
      _
    $region15: #{lit_model_forward.5} parent=1 // pred_check_branch
      %35 = sbr.rel (0) target = $region17
    $region16: #{lit_model_forward.5} parent=1 // pred_region
      _
    $region17: #{lit_model_forward.5} parent=1 // pred_fallthru
      _
    // Predicated region
    $region18: #{lit_model_forward.5} parent=1 // pred_check
      _
    $region19: #{lit_model_forward.5} parent=1 // pred_check_branch
      %37 = sbr.rel (0) target = $region21
    $region20: #{lit_model_forward.5} parent=1 // pred_region
      _
    $region21: #{lit_model_forward.5} parent=1 // pred_fallthru
      _
    // Predicated region
    $region22: #{lit_model_forward.5} parent=1 // pred_check
      _
    $region23: #{lit_model_forward.5} parent=1 // pred_check_branch
      %39 = sbr.rel (0) target = $region25
    $region24: #{lit_model_forward.5} parent=1 // pred_region
      _
    $region25: #{lit_model_forward.5} parent=1 // pred_fallthru
      _
    // Predicated region
    $region26: #{lit_model_forward.5} parent=1 // pred_check
      _
    $region27: #{lit_model_forward.5} parent=1 // pred_check_branch
      %41 = sbr.rel (0) target = $region29
    $region28: #{lit_model_forward.5} parent=1 // pred_region
      _
    $region29: #{lit_model_forward.5} parent=1 // pred_fallthru
      _
    // Predicated region
    $region30: #{lit_model_forward.5} parent=1 // pred_check
      _
    $region31: #{lit_model_forward.5} parent=1 // pred_check_branch
      %43 = sbr.rel (0) target = $region33
    $region32: #{lit_model_forward.5} parent=1 // pred_region
      %45 = dma.done [#allocation5], 1024
    $region33: #{lit_model_forward.5} parent=1 // pred_fallthru
      _
    %v46 = vld [vmem:[%s0] sm:$0xff]
    %v47 = vld [vmem:[%s0 + $0x8] sm:$0xff]
    %v48 = vpack.c.bf16 %v47, %v46
    %v49 = vld [vmem:[#allocation4] sm:$0xf]
    %v50 = vld [vmem:[#allocation4 + $0x4] sm:$0xf]
    %v51 = vld [vmem:[#allocation4 + $0x8] sm:$0xf]
    %v52 = vld [vmem:[#allocation4 + $0xc] sm:$0xf]
    %v53 = vld [vmem:[#allocation4 + $0x10] sm:$0xf]
    %v54 = vld [vmem:[#allocation4 + $0x14] sm:$0xf]
    %v55 = vld [vmem:[#allocation4 + $0x18] sm:$0xf]
    %v56 = vld [vmem:[#allocation4 + $0x1c] sm:$0xf]
    %v57 = vld [vmem:[#allocation4 + $0x20] sm:$0xf]
    %v58 = vld [vmem:[#allocation4 + $0x24] sm:$0xf]
    %v59 = vld [vmem:[#allocation4 + $0x28] sm:$0xf]
    %v60 = vld [vmem:[#allocation4 + $0x2c] sm:$0xf]
    %v61 = vld [vmem:[#allocation4 + $0x30] sm:$0xf]
    %v62 = vld [vmem:[#allocation4 + $0x34] sm:$0xf]
    %v63 = vld [vmem:[#allocation4 + $0x38] sm:$0xf]
    %v64 = vld [vmem:[#allocation4 + $0x3c] sm:$0xf]
    %v65 = vld [vmem:[%s2] sm:$0x1]
    %v67 = vperm.slane %v65, 0
    %v85 = vunpack.c.l.b16 %v49
    %v86 = vunpack.c.l.b16 %v50
    %v87 = vunpack.c.l.b16 %v51
    %v88 = vunpack.c.l.b16 %v52
    %v89 = vunpack.c.l.b16 %v53
    %v90 = vunpack.c.l.b16 %v54
    %v91 = vunpack.c.l.b16 %v55
    %v92 = vunpack.c.l.b16 %v56
    %v93 = vunpack.c.l.b16 %v57
    %v94 = vunpack.c.l.b16 %v58
    %v95 = vunpack.c.l.b16 %v59
    %v96 = vunpack.c.l.b16 %v60
    %v97 = vunpack.c.l.b16 %v61
    %v98 = vunpack.c.l.b16 %v62
    %v99 = vunpack.c.l.b16 %v63
    %v100 = vunpack.c.l.b16 %v64
    %v101 = vpack.c.b16 %v86, %v85
    %v102 = vpack.c.b16 %v88, %v87
    %v103 = vpack.c.b16 %v90, %v89
    %v104 = vpack.c.b16 %v92, %v91
    %v105 = vpack.c.b16 %v94, %v93
    %v106 = vpack.c.b16 %v96, %v95
    %v107 = vpack.c.b16 %v98, %v97
    %v108 = vpack.c.b16 %v100, %v99
    %117 = vmatpush.bf16.msra.mxu0 %v108
    %118 = vmatpush.bf16.msra.mxu0 %v107
    %119 = vmatpush.bf16.msra.mxu0 %v106
    %120 = vmatpush.bf16.msra.mxu0 %v105
    %121 = vmatpush.bf16.msra.mxu0 %v104
    %122 = vmatpush.bf16.msra.mxu0 %v103
    %123 = vmatpush.bf16.msra.mxu0 %v102
    %124 = vmatpush.bf16.msra.mxu0 %v101
    %125 = vmatmul.bf16.gmra.mxu0 %v48
    %v126 = vpop.f32.mrf.mxu0
    %v127 = vadd.f32 %v67, %v126
    %v128 = vpop.f32.mrf.mxu0
    %v129 = vadd.f32 %v67, %v128
    %130 = vdwg.mxu0
    %v131 = vtanh.pop %v127
    %v132 = vtanh.pop %v129
    %v133 = vld [vmem:[%s3] sm:$0x1]
    %v135 = vperm.slane %v133, 0
    %v137 = vmul.f32 %v131, %v135
    %v138 = vmul.f32 %v132, %v135
    %139 = vadd.xlane.f32.xlu0 %v137
    %v140 = vpop.xlane.xlu0 %139
    %141 = vadd.xlane.f32.xlu0 %v138
    %v142 = vpop.xlane.xlu0 %141
    %v143 = vld [vmem:[#allocation2] sm:$0x1]
    %v145 = vperm.slane %v143, 0
    %146 = vset.pattern.permute.xlu0 0
    %147 = vperm.xlu0 %146, %v145
    %v148 = vpop.permute.xlu0 %147
    %v150 = vadd.f32 %v140, %v148
    %v151 = vadd.f32 %v142, %v148
    %v154 = vlaneseq
    %v155 = vand.u32 %v154, 127
    %v156 = vperm.slane %v150, %v155
    %v157 = vperm.slane %v151, %v155
    %vm158 = vcmask 1041409
    %v159 = vsel %vm158, %v157, %v156
    %vm161 = vcmask 58368
    %v162 = vsel %vm161, %v159, -inf
    %163 = vmax.xlane.f32.xlu0 %v162
    %v164 = vpop.xlane.xlu0 %163
    %v166 = vperm.slane %v164, 0
    %v167 = vperm.slane %v164, 1
    %v170 = vsub.f32 %v150, %v166
    %v171 = vsub.f32 %v151, %v167
    %v172 = vmul.f32 %v170, 1.442695
    %v173 = vpow.pop %v172
    %v174 = vmul.f32 %v171, 1.442695
    %v175 = vpow.pop %v174
    %178 = vset.pattern.permute.xlu0 0
    %179 = vperm.xlu0 %178, %v173
    %v180 = vpop.permute.xlu0 %179
    %181 = vset.pattern.permute.xlu0 0
    %182 = vperm.xlu0 %181, %v175
    %v183 = vpop.permute.xlu0 %182
    %v184 = vperm.slane %v180, %v155
    %v185 = vperm.slane %v183, %v155
    %v186 = vsel %vm158, %v185, %v184
    %v188 = vsel %vm161, %v186, 0.0
    %189 = vadd.xlane.f32.xlu0 %v188
    %v190 = vpop.xlane.xlu0 %189
    %v192 = vperm.slane %v190, 0
    %v193 = vperm.slane %v190, 1
    %v196 = vrcp.pop %v192
    %v197 = vmul.f32 %v192, %v196
    %v198 = vsub.f32 1.0, %v197
    %v199 = vmul.f32 %v196, %v198
    %v200 = vadd.f32 %v196, %v199
    %vm201 = vweird.f32 %v192
    %vm202 = vweird.f32 %v196
    %vm203 = vmor %vm201, %vm202
    %v204 = vsel %vm203, %v196, %v200
    %v205 = vand.u32 2147483647, %v192
    %vm206 = vcmp.eq.f32.partialorder %v205, 8.507059e+37
    %v207 = vand.u32 %v192, 2147483648
    %v208 = vor.u32 1.1754944e-38, %v207
    %v209 = vsel %vm206, %v208, %v204
    %v210 = vmul.f32 %v173, %v209
    %v211 = vrcp.pop %v193
    %v212 = vmul.f32 %v193, %v211
    %v213 = vsub.f32 1.0, %v212
    %v214 = vmul.f32 %v211, %v213
    %v215 = vadd.f32 %v211, %v214
    %vm216 = vweird.f32 %v193
    %vm217 = vweird.f32 %v211
    %vm218 = vmor %vm216, %vm217
    %v219 = vsel %vm218, %v211, %v215
    %v220 = vand.u32 2147483647, %v193
    %vm221 = vcmp.eq.f32.partialorder %v220, 8.507059e+37
    %v222 = vand.u32 %v193, 2147483648
    %v223 = vor.u32 1.1754944e-38, %v222
    %v224 = vsel %vm221, %v223, %v219
    %v225 = vmul.f32 %v175, %v224
    %227 = vset.pattern.permute.xlu0 0
    %228 = vperm.xlu0 %227, %v210
    %v229 = vpop.permute.xlu0 %228
    %v230 = vperm.slane %v229, %v155
    %vm231 = vcmask 64512
    %v232 = vsel %vm231, %v230, 0
    %234 = vmatpush.msra.mxu0 0.0
    %235 = vmatpush.msra.mxu0 0.0
    %236 = vmatpush.msra.mxu0 0.0
    %237 = vmatpush.msra.mxu0 0.0
    %238 = vmatpush.msra.mxu0 0.0
    %239 = vmatpush.msra.mxu0 0.0
    %240 = vmatpush.msra.mxu0 0.0
    %241 = vmatpush.msra.mxu0 0.0
    %242 = vmatpush.msra.mxu0 0.0
    %243 = vmatpush.msra.mxu0 0.0
    %244 = vmatpush.msra.mxu0 0.0
    %245 = vmatpush.msra.mxu0 0.0
    %246 = vmatpush.msra.mxu0 0.0
    %247 = vmatpush.msra.mxu0 0.0
    %248 = vmatpush.msra.mxu0 0.0
    %249 = vmatpush.msra.mxu0 %v46
    %250 = vmatmul.f32.gmra.mxu0 %v232
    %v251 = vpop.f32.mrf.mxu0
    %v252 = vadd.f32 0.0, %v251
    %253 = vdwg.mxu0
    %255 = vset.pattern.permute.xlu0 0
    %256 = vperm.xlu0 %255, %v225
    %v257 = vpop.permute.xlu0 %256
    %v258 = vperm.slane %v257, %v155
    %v259 = vsel %vm231, %v258, 0
    %261 = vmatpush.msra.mxu0 0.0
    %262 = vmatpush.msra.mxu0 0.0
    %263 = vmatpush.msra.mxu0 0.0
    %264 = vmatpush.msra.mxu0 0.0
    %265 = vmatpush.msra.mxu0 0.0
    %266 = vmatpush.msra.mxu0 0.0
    %267 = vmatpush.msra.mxu0 0.0
    %268 = vmatpush.msra.mxu0 0.0
    %269 = vmatpush.msra.mxu0 0.0
    %270 = vmatpush.msra.mxu0 0.0
    %271 = vmatpush.msra.mxu0 0.0
    %272 = vmatpush.msra.mxu0 0.0
    %273 = vmatpush.msra.mxu0 0.0
    %274 = vmatpush.msra.mxu0 0.0
    %275 = vmatpush.msra.mxu0 0.0
    %276 = vmatpush.msra.mxu0 %v47
    %277 = vmatmul.f32.gmra.mxu0 %v259
    %v278 = vpop.f32.mrf.mxu0
    %v279 = vadd.f32 0.0, %v278
    %280 = vdwg.mxu0
    %v281 = vld [vmem:[%s5] sm:$0x1]
    %v283 = vperm.slane %v281, 0
    %v285 = vmul.f32 %v252, %v283
    %v286 = vmul.f32 %v279, %v283
    %v289 = vrot.slane %v286, 7
    %v290 = vsel %vm158, %v289, %v285
    %vm292 = vcmask 1041408
    %v293 = vsel %vm292, %v290, 0.0
    %294 = vadd.xlane.f32.xlu0 %v293
    %v295 = vpop.xlane.xlu0 %294
    %v296 = vld [vmem:[#allocation3] sm:$0x1]
    %v298 = vperm.slane %v296, 0
    %v300 = vadd.f32 %v295, %v298
    %vm301 = vcmask 1024
    %302 = vst.msk [vmem:[%s7] sm:$0x3] %vm301, %v300
    // Predicated region
    $region34: #{lit_model_forward.5} parent=1 // pred_check
      _
    $region35: #{lit_model_forward.5} parent=1 // pred_check_branch
      %304 = sbr.rel (0) target = $region37
    $region36: #{lit_model_forward.5} parent=1 // pred_region
      _
    $region37: #{lit_model_forward.5} parent=1 // pred_fallthru
      _
    // Predicated region
    $region38: #{lit_model_forward.5} parent=1 // pred_check
      _
    $region39: #{lit_model_forward.5} parent=1 // pred_check_branch
      %306 = sbr.rel (0) target = $region41
    $region40: #{lit_model_forward.5} parent=1 // pred_region
      _
    $region41: #{lit_model_forward.5} parent=1 // pred_fallthru
      _
    %307 = vsyncpa [#allocation5], 1

// kernel: lit_model_forward.4
$region0: #{lit_model_forward.4}
  #allocation0 [shape = 'u32[]', space=smem, size = 0x4, offset = 0x4, fixed_abs, tag = 'smem constant byte address 0x4 - core index']
  #allocation1 [shape = 'u32[72,128]{1,0:T(1,128)}', space=vmem, size = 0x9000, scoped, tag = 'internal scratch']
  %s0 = inlined_call_operand.vmem [shape: f32[2,8,128], index: 0, kind: input, shape index: {}]
  %s1 = inlined_call_operand.vmem [shape: f32[2,8], index: 1, kind: input, shape index: {}]
  %s2 = inlined_call_operand.vmem [shape: f32[1,128], index: 2, kind: input, shape index: {}]
  %s3 = inlined_call_operand.vmem [shape: f32[1,128], index: 3, kind: input, shape index: {}]
  %s4 = inlined_call_operand.hbm [shape: bf16[128,384], index: 4, kind: input, shape index: {}]
  %s5 = inlined_call_operand.vmem [shape: f32[1,384], index: 5, kind: input, shape index: {}]
  %s6 = inlined_call_operand.hbm [shape: bf16[128,128], index: 6, kind: input, shape index: {}]
  %s7 = inlined_call_operand.vmem [shape: f32[1,128], index: 7, kind: input, shape index: {}]
  %s8 = inlined_call_operand.vmem [shape: f32[1,128], index: 8, kind: input, shape index: {}]
  %s9 = inlined_call_operand.vmem [shape: f32[1,128], index: 9, kind: input, shape index: {}]
  %s10 = inlined_call_operand.hbm [shape: bf16[128,256], index: 10, kind: input, shape index: {}]
  %s11 = inlined_call_operand.vmem [shape: f32[1,256], index: 11, kind: input, shape index: {}]
  %s12 = inlined_call_operand.hbm [shape: bf16[256,128], index: 12, kind: input, shape index: {}]
  %s13 = inlined_call_operand.vmem [shape: f32[1,128], index: 13, kind: input, shape index: {}]
  %s14 = inlined_call_operand.vmem [shape: f32[1,128], index: 14, kind: input, shape index: {}]
  %s15 = inlined_call_operand.vmem [shape: f32[1,128], index: 15, kind: input, shape index: {}]
  %s16 = inlined_call_operand.vmem [shape: f32[2,8,128], index: 16, kind: output, shape index: {}]
  %s17 = sld [smem:[#allocation0]]
  $region90: #{lit_model_forward.4} parent=0
    _
  %s19 = ssub.s32 1, %s17
  %s20 = scalar_select 0, %s19, %s17
  $region1: #{lit_model_forward.4} parent=0
    #allocation2 [shape = 'u8[98304]{0}', space=vmem, size = 0x18000, scoped, tag = 'input window, operand 4, single buffered']
    #allocation3 [shape = 's32[1]{0}', space=sflag, size = 0x4, scoped, tag = 'scoped memory for lit_model_forward.4']
    #allocation4 [shape = 'u8[32768]{0}', space=vmem, size = 0x8000, scoped, tag = 'input window, operand 6, single buffered']
    #allocation5 [shape = 's32[1]{0}', space=sflag, size = 0x4, scoped, tag = 'scoped memory for lit_model_forward.4']
    #allocation6 [shape = 'u8[65536]{0}', space=vmem, size = 0x10000, scoped, tag = 'input window, operand 10, single buffered']
    #allocation7 [shape = 'u8[65536]{0}', space=vmem, size = 0x10000, scoped, tag = 'input window, operand 12, single buffered']
    #allocation8 [shape = 's32[1]{0}', space=sflag, size = 0x4, scoped, tag = 'scoped memory for lit_model_forward.4']
    %21 = vsyncpa [#allocation3], 0
    %22 = vsyncpa [#allocation5], 0
    %23 = vsyncpa [#allocation8], 0
    // Predicated region
    $region2: #{lit_model_forward.4} parent=1 // pred_check
      _
    $region3: #{lit_model_forward.4} parent=1 // pred_check_branch
      %25 = sbr.rel (0) target = $region5
    $region4: #{lit_model_forward.4} parent=1 // pred_region
      _
    $region5: #{lit_model_forward.4} parent=1 // pred_fallthru
      _
    // Predicated region
    $region6: #{lit_model_forward.4} parent=1 // pred_check
      _
    $region7: #{lit_model_forward.4} parent=1 // pred_check_branch
      %27 = sbr.rel (0) target = $region9
    $region8: #{lit_model_forward.4} parent=1 // pred_region
      _
    $region9: #{lit_model_forward.4} parent=1 // pred_fallthru
      _
    // Predicated region
    $region10: #{lit_model_forward.4} parent=1 // pred_check
      _
    $region11: #{lit_model_forward.4} parent=1 // pred_check_branch
      %29 = sbr.rel (0) target = $region13
    $region12: #{lit_model_forward.4} parent=1 // pred_region
      _
    $region13: #{lit_model_forward.4} parent=1 // pred_fallthru
      _
    // Predicated region
    $region14: #{lit_model_forward.4} parent=1 // pred_check
      _
    $region15: #{lit_model_forward.4} parent=1 // pred_check_branch
      %31 = sbr.rel (0) target = $region17
    $region16: #{lit_model_forward.4} parent=1 // pred_region
      _
    $region17: #{lit_model_forward.4} parent=1 // pred_fallthru
      _
    // Predicated region
    $region18: #{lit_model_forward.4} parent=1 // pred_check
      _
    $region19: #{lit_model_forward.4} parent=1 // pred_check_branch
      %33 = sbr.rel (0) target = $region21
    $region20: #{lit_model_forward.4} parent=1 // pred_region
      %35 = vsyncadd [#allocation3], 0
      %s36 = sshll.u32 %s4, 4
      %s37 = int_to_ptr.hbm [resolvable:$true] %s36
      %s38 = sshll.u32 [#allocation2], 4
      %s39 = int_to_ptr.vmem [resolvable:$true] %s38
      %44 = dma.hbm_to_vmem [thread:$0]  %s37, 3072, %s39, [#allocation3], 192, 192, 12
    $region21: #{lit_model_forward.4} parent=1 // pred_fallthru
      _
    // Predicated region
    $region22: #{lit_model_forward.4} parent=1 // pred_check
      _
    $region23: #{lit_model_forward.4} parent=1 // pred_check_branch
      %46 = sbr.rel (0) target = $region25
    $region24: #{lit_model_forward.4} parent=1 // pred_region
      _
    $region25: #{lit_model_forward.4} parent=1 // pred_fallthru
      _
    // Predicated region
    $region26: #{lit_model_forward.4} parent=1 // pred_check
      _
    $region27: #{lit_model_forward.4} parent=1 // pred_check_branch
      %48 = sbr.rel (0) target = $region29
    $region28: #{lit_model_forward.4} parent=1 // pred_region
      %50 = vsyncadd [#allocation5], 0
      %s51 = sshll.u32 %s6, 4
      %s52 = int_to_ptr.hbm [resolvable:$true] %s51
      %s53 = sshll.u32 [#allocation4], 4
      %s54 = int_to_ptr.vmem [resolvable:$true] %s53
      %59 = dma.hbm_to_vmem [thread:$0]  %s52, 1024, %s54, [#allocation5], 64, 64, 4
    $region29: #{lit_model_forward.4} parent=1 // pred_fallthru
      _
    // Predicated region
    $region30: #{lit_model_forward.4} parent=1 // pred_check
      _
    $region31: #{lit_model_forward.4} parent=1 // pred_check_branch
      %61 = sbr.rel (0) target = $region33
    $region32: #{lit_model_forward.4} parent=1 // pred_region
      _
    $region33: #{lit_model_forward.4} parent=1 // pred_fallthru
      _
    // Predicated region
    $region34: #{lit_model_forward.4} parent=1 // pred_check
      _
    $region35: #{lit_model_forward.4} parent=1 // pred_check_branch
      %63 = sbr.rel (0) target = $region37
    $region36: #{lit_model_forward.4} parent=1 // pred_region
      _
    $region37: #{lit_model_forward.4} parent=1 // pred_fallthru
      _
    // Predicated region
    $region38: #{lit_model_forward.4} parent=1 // pred_check
      _
    $region39: #{lit_model_forward.4} parent=1 // pred_check_branch
      %65 = sbr.rel (0) target = $region41
    $region40: #{lit_model_forward.4} parent=1 // pred_region
      _
    $region41: #{lit_model_forward.4} parent=1 // pred_fallthru
      _
    // Predicated region
    $region42: #{lit_model_forward.4} parent=1 // pred_check
      _
    $region43: #{lit_model_forward.4} parent=1 // pred_check_branch
      %67 = sbr.rel (0) target = $region45
    $region44: #{lit_model_forward.4} parent=1 // pred_region
      %69 = vsyncadd [#allocation5], 0
      %s70 = sshll.u32 %s10, 4
      %s71 = int_to_ptr.hbm [resolvable:$true] %s70
      %s72 = sshll.u32 [#allocation6], 4
      %s73 = int_to_ptr.vmem [resolvable:$true] %s72
      %78 = dma.hbm_to_vmem [thread:$0]  %s71, 2048, %s73, [#allocation5], 128, 128, 8
    $region45: #{lit_model_forward.4} parent=1 // pred_fallthru
      _
    // Predicated region
    $region46: #{lit_model_forward.4} parent=1 // pred_check
      _
    $region47: #{lit_model_forward.4} parent=1 // pred_check_branch
      %80 = sbr.rel (0) target = $region49
    $region48: #{lit_model_forward.4} parent=1 // pred_region
      _
    $region49: #{lit_model_forward.4} parent=1 // pred_fallthru
      _
    // Predicated region
    $region50: #{lit_model_forward.4} parent=1 // pred_check
      _
    $region51: #{lit_model_forward.4} parent=1 // pred_check_branch
      %82 = sbr.rel (0) target = $region53
    $region52: #{lit_model_forward.4} parent=1 // pred_region
      %84 = vsyncadd [#allocation8], 0
      %s85 = sshll.u32 %s12, 4
      %s86 = int_to_ptr.hbm [resolvable:$true] %s85
      %s87 = sshll.u32 [#allocation7], 4
      %s88 = int_to_ptr.vmem [resolvable:$true] %s87
      %93 = dma.hbm_to_vmem [thread:$0]  %s86, 2048, %s88, [#allocation8], 64, 64, 4
    $region53: #{lit_model_forward.4} parent=1 // pred_fallthru
      _
    // Predicated region
    $region54: #{lit_model_forward.4} parent=1 // pred_check
      _
    $region55: #{lit_model_forward.4} parent=1 // pred_check_branch
      %95 = sbr.rel (0) target = $region57
    $region56: #{lit_model_forward.4} parent=1 // pred_region
      _
    $region57: #{lit_model_forward.4} parent=1 // pred_fallthru
      _
    // Predicated region
    $region58: #{lit_model_forward.4} parent=1 // pred_check
      _
    $region59: #{lit_model_forward.4} parent=1 // pred_check_branch
      %97 = sbr.rel (0) target = $region61
    $region60: #{lit_model_forward.4} parent=1 // pred_region
      _
    $region61: #{lit_model_forward.4} parent=1 // pred_fallthru
      _
    // Predicated region
    $region62: #{lit_model_forward.4} parent=1 // pred_check
      _
    $region63: #{lit_model_forward.4} parent=1 // pred_check_branch
      %99 = sbr.rel (0) target = $region65
    $region64: #{lit_model_forward.4} parent=1 // pred_region
      _
    $region65: #{lit_model_forward.4} parent=1 // pred_fallthru
      _
    // Predicated region
    $region66: #{lit_model_forward.4} parent=1 // pred_check
      _
    $region67: #{lit_model_forward.4} parent=1 // pred_check_branch
      %101 = sbr.rel (0) target = $region69
    $region68: #{lit_model_forward.4} parent=1 // pred_region
      %103 = dma.done [#allocation3], 3072
    $region69: #{lit_model_forward.4} parent=1 // pred_fallthru
      _
    // Predicated region
    $region70: #{lit_model_forward.4} parent=1 // pred_check
      _
    $region71: #{lit_model_forward.4} parent=1 // pred_check_branch
      %105 = sbr.rel (0) target = $region73
    $region72: #{lit_model_forward.4} parent=1 // pred_region
      %107 = dma.done [#allocation5], 1024
    $region73: #{lit_model_forward.4} parent=1 // pred_fallthru
      _
    // Predicated region
    $region74: #{lit_model_forward.4} parent=1 // pred_check
      _
    $region75: #{lit_model_forward.4} parent=1 // pred_check_branch
      %109 = sbr.rel (0) target = $region77
    $region76: #{lit_model_forward.4} parent=1 // pred_region
      %111 = dma.done [#allocation5], 2048
    $region77: #{lit_model_forward.4} parent=1 // pred_fallthru
      _
    // Predicated region
    $region78: #{lit_model_forward.4} parent=1 // pred_check
      _
    $region79: #{lit_model_forward.4} parent=1 // pred_check_branch
      %113 = sbr.rel (0) target = $region81
    $region80: #{lit_model_forward.4} parent=1 // pred_region
      %115 = dma.done [#allocation8], 2048
    $region81: #{lit_model_forward.4} parent=1 // pred_fallthru
      _
    %v117 = vld [vmem:[%s0] sm:$0xff]
    %v118 = vld [vmem:[%s0 + $0x8] sm:$0xff]
    %v119 = vld [vmem:[%s1] sm:$0x3]
    %v120 = vpack.c.bf16 %v118, %v117
    %v121 = vld [vmem:[#allocation2] sm:$0xff]
    %v122 = vld [vmem:[#allocation2 + $0x8] sm:$0xf]
    %v123 = vld [vmem:[#allocation2 + $0xc] sm:$0xff]
    %v124 = vld [vmem:[#allocation2 + $0x14] sm:$0xf]
    %v125 = vld [vmem:[#allocation2 + $0x18] sm:$0xff]
    %v126 = vld [vmem:[#allocation2 + $0x20] sm:$0xf]
    %v127 = vld [vmem:[#allocation2 + $0x24] sm:$0xff]
    %v128 = vld [vmem:[#allocation2 + $0x2c] sm:$0xf]
    %v129 = vld [vmem:[#allocation2 + $0x30] sm:$0xff]
    %v130 = vld [vmem:[#allocation2 + $0x38] sm:$0xf]
    %v131 = vld [vmem:[#allocation2 + $0x3c] sm:$0xff]
    %v132 = vld [vmem:[#allocation2 + $0x44] sm:$0xf]
    %v133 = vld [vmem:[#allocation2 + $0x48] sm:$0xff]
    %v134 = vld [vmem:[#allocation2 + $0x50] sm:$0xf]
    %v135 = vld [vmem:[#allocation2 + $0x54] sm:$0xff]
    %v136 = vld [vmem:[#allocation2 + $0x5c] sm:$0xf]
    %v137 = vld [vmem:[#allocation2 + $0x60] sm:$0xff]
    %v138 = vld [vmem:[#allocation2 + $0x68] sm:$0xf]
    %v139 = vld [vmem:[#allocation2 + $0x6c] sm:$0xff]
    %v140 = vld [vmem:[#allocation2 + $0x74] sm:$0xf]
    %v141 = vld [vmem:[#allocation2 + $0x78] sm:$0xff]
    %v142 = vld [vmem:[#allocation2 + $0x80] sm:$0xf]
    %v143 = vld [vmem:[#allocation2 + $0x84] sm:$0xff]
    %v144 = vld [vmem:[#allocation2 + $0x8c] sm:$0xf]
    %v145 = vld [vmem:[#allocation2 + $0x90] sm:$0xff]
    %v146 = vld [vmem:[#allocation2 + $0x98] sm:$0xf]
    %v147 = vld [vmem:[#allocation2 + $0x9c] sm:$0xff]
    %v148 = vld [vmem:[#allocation2 + $0xa4] sm:$0xf]
    %v149 = vld [vmem:[#allocation2 + $0xa8] sm:$0xff]
    %v150 = vld [vmem:[#allocation2 + $0xb0] sm:$0xf]
    %v151 = vld [vmem:[#allocation2 + $0xb4] sm:$0xff]
    %v152 = vld [vmem:[#allocation2 + $0xbc] sm:$0xf]
    %v153 = vld [vmem:[%s5] sm:$0x7]
    %v155 = vperm.slane %v153, 0
    %v156 = vperm.slane %v153, 1
    %v157 = vperm.slane %v153, 2
    %v193 = vunpack.c.l.b16 %v121
    %v194 = vunpack.c.h.b16 %v121
    %v195 = vunpack.c.l.b16 %v122
    %v196 = vunpack.c.l.b16 %v123
    %v197 = vunpack.c.h.b16 %v123
    %v198 = vunpack.c.l.b16 %v124
    %v199 = vunpack.c.l.b16 %v125
    %v200 = vunpack.c.h.b16 %v125
    %v201 = vunpack.c.l.b16 %v126
    %v202 = vunpack.c.l.b16 %v127
    %v203 = vunpack.c.h.b16 %v127
    %v204 = vunpack.c.l.b16 %v128
    %v205 = vunpack.c.l.b16 %v129
    %v206 = vunpack.c.h.b16 %v129
    %v207 = vunpack.c.l.b16 %v130
    %v208 = vunpack.c.l.b16 %v131
    %v209 = vunpack.c.h.b16 %v131
    %v210 = vunpack.c.l.b16 %v132
    %v211 = vunpack.c.l.b16 %v133
    %v212 = vunpack.c.h.b16 %v133
    %v213 = vunpack.c.l.b16 %v134
    %v214 = vunpack.c.l.b16 %v135
    %v215 = vunpack.c.h.b16 %v135
    %v216 = vunpack.c.l.b16 %v136
    %v217 = vunpack.c.l.b16 %v137
    %v218 = vunpack.c.h.b16 %v137
    %v219 = vunpack.c.l.b16 %v138
    %v220 = vunpack.c.l.b16 %v139
    %v221 = vunpack.c.h.b16 %v139
    %v222 = vunpack.c.l.b16 %v140
    %v223 = vunpack.c.l.b16 %v141
    %v224 = vunpack.c.h.b16 %v141
    %v225 = vunpack.c.l.b16 %v142
    %v226 = vunpack.c.l.b16 %v143
    %v227 = vunpack.c.h.b16 %v143
    %v228 = vunpack.c.l.b16 %v144
    %v229 = vunpack.c.l.b16 %v145
    %v230 = vunpack.c.h.b16 %v145
    %v231 = vunpack.c.l.b16 %v146
    %v232 = vunpack.c.l.b16 %v147
    %v233 = vunpack.c.h.b16 %v147
    %v234 = vunpack.c.l.b16 %v148
    %v235 = vunpack.c.l.b16 %v149
    %v236 = vunpack.c.h.b16 %v149
    %v237 = vunpack.c.l.b16 %v150
    %v238 = vunpack.c.l.b16 %v151
    %v239 = vunpack.c.h.b16 %v151
    %v240 = vunpack.c.l.b16 %v152
    %v241 = vpack.c.b16 %v196, %v193
    %v242 = vpack.c.b16 %v197, %v194
    %v243 = vpack.c.b16 %v198, %v195
    %v244 = vpack.c.b16 %v202, %v199
    %v245 = vpack.c.b16 %v203, %v200
    %v246 = vpack.c.b16 %v204, %v201
    %v247 = vpack.c.b16 %v208, %v205
    %v248 = vpack.c.b16 %v209, %v206
    %v249 = vpack.c.b16 %v210, %v207
    %v250 = vpack.c.b16 %v214, %v211
    %v251 = vpack.c.b16 %v215, %v212
    %v252 = vpack.c.b16 %v216, %v213
    %v253 = vpack.c.b16 %v220, %v217
    %v254 = vpack.c.b16 %v221, %v218
    %v255 = vpack.c.b16 %v222, %v219
    %v256 = vpack.c.b16 %v226, %v223
    %v257 = vpack.c.b16 %v227, %v224
    %v258 = vpack.c.b16 %v228, %v225
    %v259 = vpack.c.b16 %v232, %v229
    %v260 = vpack.c.b16 %v233, %v230
    %v261 = vpack.c.b16 %v234, %v231
    %v262 = vpack.c.b16 %v238, %v235
    %v263 = vpack.c.b16 %v239, %v236
    %v264 = vpack.c.b16 %v240, %v237
    %289 = vmatpush.bf16.msra.mxu0 %v262
    %290 = vmatpush.bf16.msra.mxu0 %v259
    %291 = vmatpush.bf16.msra.mxu0 %v256
    %292 = vmatpush.bf16.msra.mxu0 %v253
    %293 = vmatpush.bf16.msra.mxu0 %v250
    %294 = vmatpush.bf16.msra.mxu0 %v247
    %295 = vmatpush.bf16.msra.mxu0 %v244
    %296 = vmatpush.bf16.msra.mxu0 %v241
    %297 = vmatmul.bf16.gmra.mxu0 %v120
    %v298 = vpop.f32.mrf.mxu0
    %v299 = vadd.f32 %v155, %v298
    %v300 = vpop.f32.mrf.mxu0
    %v301 = vadd.f32 %v155, %v300
    %302 = vdwg.mxu0
    %303 = vmatpush.bf16.msra.mxu0 %v263
    %304 = vmatpush.bf16.msra.mxu0 %v260
    %305 = vmatpush.bf16.msra.mxu0 %v257
    %306 = vmatpush.bf16.msra.mxu0 %v254
    %307 = vmatpush.bf16.msra.mxu0 %v251
    %308 = vmatpush.bf16.msra.mxu0 %v248
    %309 = vmatpush.bf16.msra.mxu0 %v245
    %310 = vmatpush.bf16.msra.mxu0 %v242
    %311 = vmatmul.bf16.gmra.mxu0 %v120
    %v312 = vpop.f32.mrf.mxu0
    %v313 = vadd.f32 %v156, %v312
    %v314 = vpop.f32.mrf.mxu0
    %v315 = vadd.f32 %v156, %v314
    %316 = vdwg.mxu0
    %317 = vmatpush.bf16.msra.mxu0 %v264
    %318 = vmatpush.bf16.msra.mxu0 %v261
    %319 = vmatpush.bf16.msra.mxu0 %v258
    %320 = vmatpush.bf16.msra.mxu0 %v255
    %321 = vmatpush.bf16.msra.mxu0 %v252
    %322 = vmatpush.bf16.msra.mxu0 %v249
    %323 = vmatpush.bf16.msra.mxu0 %v246
    %324 = vmatpush.bf16.msra.mxu0 %v243
    %325 = vmatmul.bf16.gmra.mxu0 %v120
    %v326 = vpop.f32.mrf.mxu0
    %v327 = vadd.f32 %v157, %v326
    %v328 = vpop.f32.mrf.mxu0
    %v329 = vadd.f32 %v157, %v328
    %330 = vdwg.mxu0
    %v331 = vpack.c.bf16 %v299, %v299
    %v332 = vpack.c.bf16 %v301, %v301
    %v333 = vpack.c.bf16 %v313, %v313
    %v334 = vpack.c.bf16 %v315, %v315
    %v335 = vpack.c.bf16 %v327, %v327
    %v336 = vpack.c.bf16 %v329, %v329
    %v338 = vrot.slane %v119, 1
    %v339 = vperm.slane %v119, 0
    %v340 = vperm.slane %v338, 0
    %vm343 = vcmask 261120
    %v345 = vsel %vm343, %v331, 0
    %v348 = vsel %vm343, %v333, 0
    %350 = vmatpush.bf16.xpose.msra.mxu0 0
    %351 = vmatpush.bf16.xpose.msra.mxu0 0
    %352 = vmatpush.bf16.xpose.msra.mxu0 0
    %353 = vmatpush.bf16.xpose.msra.mxu0 0
    %354 = vmatpush.bf16.xpose.msra.mxu0 0
    %355 = vmatpush.bf16.xpose.msra.mxu0 0
    %356 = vmatpush.bf16.xpose.msra.mxu0 0
    %357 = vmatpush.bf16.xpose.msra.mxu0 %v348
    %358 = vmatmul.bf16.gmra.mxu0 %v345
    %v359 = vpop.f32.mrf.mxu0
    %v360 = vadd.f32 %v339, %v359
    %v361 = vpop.f32.mrf.mxu0
    %362 = vdwg.mxu0
    %v364 = vsel %vm343, %v332, 0
    %v367 = vsel %vm343, %v334, 0
    %369 = vmatpush.bf16.xpose.msra.mxu0 0
    %370 = vmatpush.bf16.xpose.msra.mxu0 0
    %371 = vmatpush.bf16.xpose.msra.mxu0 0
    %372 = vmatpush.bf16.xpose.msra.mxu0 0
    %373 = vmatpush.bf16.xpose.msra.mxu0 0
    %374 = vmatpush.bf16.xpose.msra.mxu0 0
    %375 = vmatpush.bf16.xpose.msra.mxu0 0
    %376 = vmatpush.bf16.xpose.msra.mxu0 %v367
    %377 = vmatmul.bf16.gmra.mxu0 %v364
    %v378 = vpop.f32.mrf.mxu0
    %v379 = vadd.f32 %v340, %v378
    %v380 = vpop.f32.mrf.mxu0
    %381 = vdwg.mxu0
    %vm382 = vcmask 64512
    %v383 = vsel %vm382, %v360, -inf
    %384 = vmax.xlane.f32.xlu0 %v383
    %v385 = vpop.xlane.xlu0 %384
    %v386 = vsel %vm382, %v379, -inf
    %387 = vmax.xlane.f32.xlu0 %v386
    %v388 = vpop.xlane.xlu0 %387
    %v389 = vsub.f32 %v360, %v385
    %v390 = vsub.f32 %v379, %v388
    %v391 = vmul.f32 %v389, 1.442695
    %v392 = vpow.pop %v391
    %v393 = vmul.f32 %v390, 1.442695
    %v394 = vpow.pop %v393
    %v395 = vsel %vm382, %v392, 0.0
    %396 = vadd.xlane.f32.xlu0 %v395
    %v397 = vpop.xlane.xlu0 %396
    %v398 = vsel %vm382, %v394, 0.0
    %399 = vadd.xlane.f32.xlu0 %v398
    %v400 = vpop.xlane.xlu0 %399
    %v401 = vrcp.pop %v397
    %v402 = vmul.f32 %v397, %v401
    %v403 = vsub.f32 1.0, %v402
    %v404 = vmul.f32 %v401, %v403
    %v405 = vadd.f32 %v401, %v404
    %vm406 = vweird.f32 %v397
    %vm407 = vweird.f32 %v401
    %vm408 = vmor %vm406, %vm407
    %v409 = vsel %vm408, %v401, %v405
    %v410 = vand.u32 2147483647, %v397
    %vm411 = vcmp.eq.f32.partialorder %v410, 8.507059e+37
    %v412 = vand.u32 %v397, 2147483648
    %v413 = vor.u32 1.1754944e-38, %v412
    %v414 = vsel %vm411, %v413, %v409
    %v415 = vmul.f32 %v392, %v414
    %v416 = vrcp.pop %v400
    %v417 = vmul.f32 %v400, %v416
    %v418 = vsub.f32 1.0, %v417
    %v419 = vmul.f32 %v416, %v418
    %v420 = vadd.f32 %v416, %v419
    %vm421 = vweird.f32 %v400
    %vm422 = vweird.f32 %v416
    %vm423 = vmor %vm421, %vm422
    %v424 = vsel %vm423, %v416, %v420
    %v425 = vand.u32 2147483647, %v400
    %vm426 = vcmp.eq.f32.partialorder %v425, 8.507059e+37
    %v427 = vand.u32 %v400, 2147483648
    %v428 = vor.u32 1.1754944e-38, %v427
    %v429 = vsel %vm426, %v428, %v424
    %v430 = vmul.f32 %v394, %v429
    %v431 = vpack.c.bf16 %v415, %v415
    %v432 = vpack.c.bf16 %v430, %v430
    %v434 = vsel %vm382, %v431, 0
    %vm436 = vcmask 1043456
    %v438 = vsel %vm436, %v335, 0
    %440 = vmatpush.bf16.msra.mxu0 0
    %441 = vmatpush.bf16.msra.mxu0 0
    %442 = vmatpush.bf16.msra.mxu0 0
    %443 = vmatpush.bf16.msra.mxu0 0
    %444 = vmatpush.bf16.msra.mxu0 0
    %445 = vmatpush.bf16.msra.mxu0 0
    %446 = vmatpush.bf16.msra.mxu0 0
    %447 = vmatpush.bf16.msra.mxu0 %v438
    %448 = vmatmul.bf16.gmra.mxu0 %v434
    %v449 = vpop.f32.mrf.mxu0
    %v450 = vadd.f32 0.0, %v449
    %v451 = vpop.f32.mrf.mxu0
    %452 = vdwg.mxu0
    %v454 = vsel %vm382, %v432, 0
    %v457 = vsel %vm436, %v336, 0
    %459 = vmatpush.bf16.msra.mxu0 0
    %460 = vmatpush.bf16.msra.mxu0 0
    %461 = vmatpush.bf16.msra.mxu0 0
    %462 = vmatpush.bf16.msra.mxu0 0
    %463 = vmatpush.bf16.msra.mxu0 0
    %464 = vmatpush.bf16.msra.mxu0 0
    %465 = vmatpush.bf16.msra.mxu0 0
    %466 = vmatpush.bf16.msra.mxu0 %v457
    %467 = vmatmul.bf16.gmra.mxu0 %v454
    %v468 = vpop.f32.mrf.mxu0
    %v469 = vadd.f32 0.0, %v468
    %v470 = vpop.f32.mrf.mxu0
    %471 = vdwg.mxu0
    %v472 = vpack.c.bf16 %v469, %v450
    %v473 = vld [vmem:[#allocation4] sm:$0xf]
    %v474 = vld [vmem:[#allocation4 + $0x4] sm:$0xf]
    %v475 = vld [vmem:[#allocation4 + $0x8] sm:$0xf]
    %v476 = vld [vmem:[#allocation4 + $0xc] sm:$0xf]
    %v478 = vunpack.c.l.b16 %v331
    %v479 = vpack.c.b16 %v478, %v478
    %480 = vrot.lane.b32.xlu0 %v479, 96
    %v481 = vpop.permute.xlu0 %480
    %v483 = vunpack.c.l.b16 %v333
    %v484 = vpack.c.b16 %v483, %v483
    %485 = vrot.lane.b32.xlu0 %v484, 96
    %v486 = vpop.permute.xlu0 %485
    %v488 = vsel %vm343, %v481, 0
    %v491 = vsel %vm343, %v486, 0
    %493 = vmatpush.bf16.xpose.msra.mxu0 0
    %494 = vmatpush.bf16.xpose.msra.mxu0 0
    %495 = vmatpush.bf16.xpose.msra.mxu0 0
    %496 = vmatpush.bf16.xpose.msra.mxu0 0
    %497 = vmatpush.bf16.xpose.msra.mxu0 0
    %498 = vmatpush.bf16.xpose.msra.mxu0 0
    %499 = vmatpush.bf16.xpose.msra.mxu0 0
    %500 = vmatpush.bf16.xpose.msra.mxu0 %v491
    %501 = vmatmul.bf16.gmra.mxu0 %v488
    %v502 = vpop.f32.mrf.mxu0
    %v503 = vadd.f32 %v339, %v502
    %v504 = vpop.f32.mrf.mxu0
    %505 = vdwg.mxu0
    %v507 = vunpack.c.l.b16 %v332
    %v508 = vpack.c.b16 %v507, %v507
    %509 = vrot.lane.b32.xlu0 %v508, 96
    %v510 = vpop.permute.xlu0 %509
    %v512 = vunpack.c.l.b16 %v334
    %v513 = vpack.c.b16 %v512, %v512
    %514 = vrot.lane.b32.xlu0 %v513, 96
    %v515 = vpop.permute.xlu0 %514
    %v517 = vsel %vm343, %v510, 0
    %v520 = vsel %vm343, %v515, 0
    %522 = vmatpush.bf16.xpose.msra.mxu0 0
    %523 = vmatpush.bf16.xpose.msra.mxu0 0
    %524 = vmatpush.bf16.xpose.msra.mxu0 0
    %525 = vmatpush.bf16.xpose.msra.mxu0 0
    %526 = vmatpush.bf16.xpose.msra.mxu0 0
    %527 = vmatpush.bf16.xpose.msra.mxu0 0
    %528 = vmatpush.bf16.xpose.msra.mxu0 0
    %529 = vmatpush.bf16.xpose.msra.mxu0 %v520
    %530 = vmatmul.bf16.gmra.mxu0 %v517
    %v531 = vpop.f32.mrf.mxu0
    %v532 = vadd.f32 %v340, %v531
    %v533 = vpop.f32.mrf.mxu0
    %534 = vdwg.mxu0
    %v535 = vsel %vm382, %v503, -inf
    %536 = vmax.xlane.f32.xlu0 %v535
    %v537 = vpop.xlane.xlu0 %536
    %v538 = vsel %vm382, %v532, -inf
    %539 = vmax.xlane.f32.xlu0 %v538
    %v540 = vpop.xlane.xlu0 %539
    %v541 = vsub.f32 %v503, %v537
    %v542 = vsub.f32 %v532, %v540
    %v543 = vmul.f32 %v541, 1.442695
    %v544 = vpow.pop %v543
    %v545 = vmul.f32 %v542, 1.442695
    %v546 = vpow.pop %v545
    %v547 = vsel %vm382, %v544, 0.0
    %548 = vadd.xlane.f32.xlu0 %v547
    %v549 = vpop.xlane.xlu0 %548
    %v550 = vsel %vm382, %v546, 0.0
    %551 = vadd.xlane.f32.xlu0 %v550
    %v552 = vpop.xlane.xlu0 %551
    %v553 = vrcp.pop %v549
    %v554 = vmul.f32 %v549, %v553
    %v555 = vsub.f32 1.0, %v554
    %v556 = vmul.f32 %v553, %v555
    %v557 = vadd.f32 %v553, %v556
    %vm558 = vweird.f32 %v549
    %vm559 = vweird.f32 %v553
    %vm560 = vmor %vm558, %vm559
    %v561 = vsel %vm560, %v553, %v557
    %v562 = vand.u32 2147483647, %v549
    %vm563 = vcmp.eq.f32.partialorder %v562, 8.507059e+37
    %v564 = vand.u32 %v549, 2147483648
    %v565 = vor.u32 1.1754944e-38, %v564
    %v566 = vsel %vm563, %v565, %v561
    %v567 = vmul.f32 %v544, %v566
    %v568 = vrcp.pop %v552
    %v569 = vmul.f32 %v552, %v568
    %v570 = vsub.f32 1.0, %v569
    %v571 = vmul.f32 %v568, %v570
    %v572 = vadd.f32 %v568, %v571
    %vm573 = vweird.f32 %v552
    %vm574 = vweird.f32 %v568
    %vm575 = vmor %vm573, %vm574
    %v576 = vsel %vm575, %v568, %v572
    %v577 = vand.u32 2147483647, %v552
    %vm578 = vcmp.eq.f32.partialorder %v577, 8.507059e+37
    %v579 = vand.u32 %v552, 2147483648
    %v580 = vor.u32 1.1754944e-38, %v579
    %v581 = vsel %vm578, %v580, %v576
    %v582 = vmul.f32 %v546, %v581
    %v583 = vpack.c.bf16 %v567, %v567
    %v584 = vpack.c.bf16 %v582, %v582
    %v586 = vunpack.c.l.b16 %v335
    %v587 = vpack.c.b16 %v586, %v586
    %588 = vrot.lane.b32.xlu0 %v587, 96
    %v589 = vpop.permute.xlu0 %588
    %v591 = vsel %vm382, %v583, 0
    %v594 = vsel %vm436, %v589, 0
    %596 = vmatpush.bf16.msra.mxu0 0
    %597 = vmatpush.bf16.msra.mxu0 0
    %598 = vmatpush.bf16.msra.mxu0 0
    %599 = vmatpush.bf16.msra.mxu0 0
    %600 = vmatpush.bf16.msra.mxu0 0
    %601 = vmatpush.bf16.msra.mxu0 0
    %602 = vmatpush.bf16.msra.mxu0 0
    %603 = vmatpush.bf16.msra.mxu0 %v594
    %604 = vmatmul.bf16.gmra.mxu0 %v591
    %v605 = vpop.f32.mrf.mxu0
    %v606 = vadd.f32 0.0, %v605
    %v607 = vpop.f32.mrf.mxu0
    %608 = vdwg.mxu0
    %v610 = vunpack.c.l.b16 %v336
    %v611 = vpack.c.b16 %v610, %v610
    %612 = vrot.lane.b32.xlu0 %v611, 96
    %v613 = vpop.permute.xlu0 %612
    %v615 = vsel %vm382, %v584, 0
    %v618 = vsel %vm436, %v613, 0
    %620 = vmatpush.bf16.msra.mxu0 0
    %621 = vmatpush.bf16.msra.mxu0 0
    %622 = vmatpush.bf16.msra.mxu0 0
    %623 = vmatpush.bf16.msra.mxu0 0
    %624 = vmatpush.bf16.msra.mxu0 0
    %625 = vmatpush.bf16.msra.mxu0 0
    %626 = vmatpush.bf16.msra.mxu0 0
    %627 = vmatpush.bf16.msra.mxu0 %v618
    %628 = vmatmul.bf16.gmra.mxu0 %v615
    %v629 = vpop.f32.mrf.mxu0
    %v630 = vadd.f32 0.0, %v629
    %v631 = vpop.f32.mrf.mxu0
    %632 = vdwg.mxu0
    %v633 = vpack.c.bf16 %v630, %v606
    %v634 = vld [vmem:[#allocation4 + $0x10] sm:$0xf]
    %v635 = vld [vmem:[#allocation4 + $0x14] sm:$0xf]
    %v636 = vld [vmem:[#allocation4 + $0x18] sm:$0xf]
    %v637 = vld [vmem:[#allocation4 + $0x1c] sm:$0xf]
    %v642 = vunpack.c.l.b16 %v634
    %v643 = vunpack.c.l.b16 %v635
    %v644 = vunpack.c.l.b16 %v636
    %v645 = vunpack.c.l.b16 %v637
    %v646 = vpack.c.b16 %v643, %v642
    %v647 = vpack.c.b16 %v645, %v644
    %v651 = vsel %vm343, %v633, 0
    %653 = vmatpush.bf16.msra.mxu0 0
    %654 = vmatpush.bf16.msra.mxu0 0
    %655 = vmatpush.bf16.msra.mxu0 0
    %656 = vmatpush.bf16.msra.mxu0 0
    %657 = vmatpush.bf16.msra.mxu0 0
    %658 = vmatpush.bf16.msra.mxu0 0
    %659 = vmatpush.bf16.msra.mxu0 %v647
    %660 = vmatpush.bf16.msra.mxu0 %v646
    %661 = vmatmul.bf16.gmra.mxu0 %v651
    %v662 = vpop.f32.mrf.mxu0
    %v663 = vadd.f32 0.0, %v662
    %v664 = vpop.f32.mrf.mxu0
    %v665 = vadd.f32 0.0, %v664
    %666 = vdwg.mxu0
    %v671 = vunpack.c.l.b16 %v473
    %v672 = vunpack.c.l.b16 %v474
    %v673 = vunpack.c.l.b16 %v475
    %v674 = vunpack.c.l.b16 %v476
    %v675 = vpack.c.b16 %v672, %v671
    %v676 = vpack.c.b16 %v674, %v673
    %v680 = vsel %vm343, %v472, 0
    %682 = vmatpush.bf16.msra.mxu0 0
    %683 = vmatpush.bf16.msra.mxu0 0
    %684 = vmatpush.bf16.msra.mxu0 0
    %685 = vmatpush.bf16.msra.mxu0 0
    %686 = vmatpush.bf16.msra.mxu0 0
    %687 = vmatpush.bf16.msra.mxu0 0
    %688 = vmatpush.bf16.msra.mxu0 %v676
    %689 = vmatpush.bf16.msra.mxu0 %v675
    %690 = vmatmul.bf16.gmra.mxu0 %v680
    %v691 = vpop.f32.mrf.mxu0
    %v692 = vadd.f32 %v663, %v691
    %v693 = vpop.f32.mrf.mxu0
    %v694 = vadd.f32 %v665, %v693
    %695 = vdwg.mxu0
    %696 = vrot.lane.b32.xlu0 %v479, 64
    %v697 = vpop.permute.xlu0 %696
    %698 = vrot.lane.b32.xlu0 %v484, 64
    %v699 = vpop.permute.xlu0 %698
    %v701 = vsel %vm343, %v697, 0
    %v704 = vsel %vm343, %v699, 0
    %706 = vmatpush.bf16.xpose.msra.mxu0 0
    %707 = vmatpush.bf16.xpose.msra.mxu0 0
    %708 = vmatpush.bf16.xpose.msra.mxu0 0
    %709 = vmatpush.bf16.xpose.msra.mxu0 0
    %710 = vmatpush.bf16.xpose.msra.mxu0 0
    %711 = vmatpush.bf16.xpose.msra.mxu0 0
    %712 = vmatpush.bf16.xpose.msra.mxu0 0
    %713 = vmatpush.bf16.xpose.msra.mxu0 %v704
    %714 = vmatmul.bf16.gmra.mxu0 %v701
    %v715 = vpop.f32.mrf.mxu0
    %v716 = vadd.f32 %v339, %v715
    %v717 = vpop.f32.mrf.mxu0
    %718 = vdwg.mxu0
    %719 = vrot.lane.b32.xlu0 %v508, 64
    %v720 = vpop.permute.xlu0 %719
    %721 = vrot.lane.b32.xlu0 %v513, 64
    %v722 = vpop.permute.xlu0 %721
    %v724 = vsel %vm343, %v720, 0
    %v727 = vsel %vm343, %v722, 0
    %729 = vmatpush.bf16.xpose.msra.mxu0 0
    %730 = vmatpush.bf16.xpose.msra.mxu0 0
    %731 = vmatpush.bf16.xpose.msra.mxu0 0
    %732 = vmatpush.bf16.xpose.msra.mxu0 0
    %733 = vmatpush.bf16.xpose.msra.mxu0 0
    %734 = vmatpush.bf16.xpose.msra.mxu0 0
    %735 = vmatpush.bf16.xpose.msra.mxu0 0
    %736 = vmatpush.bf16.xpose.msra.mxu0 %v727
    %737 = vmatmul.bf16.gmra.mxu0 %v724
    %v738 = vpop.f32.mrf.mxu0
    %v739 = vadd.f32 %v340, %v738
    %v740 = vpop.f32.mrf.mxu0
    %741 = vdwg.mxu0
    %v742 = vsel %vm382, %v716, -inf
    %743 = vmax.xlane.f32.xlu0 %v742
    %v744 = vpop.xlane.xlu0 %743
    %v745 = vsel %vm382, %v739, -inf
    %746 = vmax.xlane.f32.xlu0 %v745
    %v747 = vpop.xlane.xlu0 %746
    %v748 = vsub.f32 %v716, %v744
    %v749 = vsub.f32 %v739, %v747
    %v750 = vmul.f32 %v748, 1.442695
    %v751 = vpow.pop %v750
    %v752 = vmul.f32 %v749, 1.442695
    %v753 = vpow.pop %v752
    %v754 = vsel %vm382, %v751, 0.0
    %755 = vadd.xlane.f32.xlu0 %v754
    %v756 = vpop.xlane.xlu0 %755
    %v757 = vsel %vm382, %v753, 0.0
    %758 = vadd.xlane.f32.xlu0 %v757
    %v759 = vpop.xlane.xlu0 %758
    %v760 = vrcp.pop %v756
    %v761 = vmul.f32 %v756, %v760
    %v762 = vsub.f32 1.0, %v761
    %v763 = vmul.f32 %v760, %v762
    %v764 = vadd.f32 %v760, %v763
    %vm765 = vweird.f32 %v756
    %vm766 = vweird.f32 %v760
    %vm767 = vmor %vm765, %vm766
    %v768 = vsel %vm767, %v760, %v764
    %v769 = vand.u32 2147483647, %v756
    %vm770 = vcmp.eq.f32.partialorder %v769, 8.507059e+37
    %v771 = vand.u32 %v756, 2147483648
    %v772 = vor.u32 1.1754944e-38, %v771
    %v773 = vsel %vm770, %v772, %v768
    %v774 = vmul.f32 %v751, %v773
    %v775 = vrcp.pop %v759
    %v776 = vmul.f32 %v759, %v775
    %v777 = vsub.f32 1.0, %v776
    %v778 = vmul.f32 %v775, %v777
    %v779 = vadd.f32 %v775, %v778
    %vm780 = vweird.f32 %v759
    %vm781 = vweird.f32 %v775
    %vm782 = vmor %vm780, %vm781
    %v783 = vsel %vm782, %v775, %v779
    %v784 = vand.u32 2147483647, %v759
    %vm785 = vcmp.eq.f32.partialorder %v784, 8.507059e+37
    %v786 = vand.u32 %v759, 2147483648
    %v787 = vor.u32 1.1754944e-38, %v786
    %v788 = vsel %vm785, %v787, %v783
    %v789 = vmul.f32 %v753, %v788
    %v790 = vpack.c.bf16 %v774, %v774
    %v791 = vpack.c.bf16 %v789, %v789
    %792 = vrot.lane.b32.xlu0 %v587, 64
    %v793 = vpop.permute.xlu0 %792
    %v795 = vsel %vm382, %v790, 0
    %v798 = vsel %vm436, %v793, 0
    %800 = vmatpush.bf16.msra.mxu0 0
    %801 = vmatpush.bf16.msra.mxu0 0
    %802 = vmatpush.bf16.msra.mxu0 0
    %803 = vmatpush.bf16.msra.mxu0 0
    %804 = vmatpush.bf16.msra.mxu0 0
    %805 = vmatpush.bf16.msra.mxu0 0
    %806 = vmatpush.bf16.msra.mxu0 0
    %807 = vmatpush.bf16.msra.mxu0 %v798
    %808 = vmatmul.bf16.gmra.mxu0 %v795
    %v809 = vpop.f32.mrf.mxu0
    %v810 = vadd.f32 0.0, %v809
    %v811 = vpop.f32.mrf.mxu0
    %812 = vdwg.mxu0
    %813 = vrot.lane.b32.xlu0 %v611, 64
    %v814 = vpop.permute.xlu0 %813
    %v816 = vsel %vm382, %v791, 0
    %v819 = vsel %vm436, %v814, 0
    %821 = vmatpush.bf16.msra.mxu0 0
    %822 = vmatpush.bf16.msra.mxu0 0
    %823 = vmatpush.bf16.msra.mxu0 0
    %824 = vmatpush.bf16.msra.mxu0 0
    %825 = vmatpush.bf16.msra.mxu0 0
    %826 = vmatpush.bf16.msra.mxu0 0
    %827 = vmatpush.bf16.msra.mxu0 0
    %828 = vmatpush.bf16.msra.mxu0 %v819
    %829 = vmatmul.bf16.gmra.mxu0 %v816
    %v830 = vpop.f32.mrf.mxu0
    %v831 = vadd.f32 0.0, %v830
    %v832 = vpop.f32.mrf.mxu0
    %833 = vdwg.mxu0
    %v834 = vpack.c.bf16 %v831, %v810
    %v835 = vld [vmem:[#allocation4 + $0x20] sm:$0xf]
    %v836 = vld [vmem:[#allocation4 + $0x24] sm:$0xf]
    %v837 = vld [vmem:[#allocation4 + $0x28] sm:$0xf]
    %v838 = vld [vmem:[#allocation4 + $0x2c] sm:$0xf]
    %v843 = vunpack.c.l.b16 %v835
    %v844 = vunpack.c.l.b16 %v836
    %v845 = vunpack.c.l.b16 %v837
    %v846 = vunpack.c.l.b16 %v838
    %v847 = vpack.c.b16 %v844, %v843
    %v848 = vpack.c.b16 %v846, %v845
    %v852 = vsel %vm343, %v834, 0
    %854 = vmatpush.bf16.msra.mxu0 0
    %855 = vmatpush.bf16.msra.mxu0 0
    %856 = vmatpush.bf16.msra.mxu0 0
    %857 = vmatpush.bf16.msra.mxu0 0
    %858 = vmatpush.bf16.msra.mxu0 0
    %859 = vmatpush.bf16.msra.mxu0 0
    %860 = vmatpush.bf16.msra.mxu0 %v848
    %861 = vmatpush.bf16.msra.mxu0 %v847
    %862 = vmatmul.bf16.gmra.mxu0 %v852
    %v863 = vpop.f32.mrf.mxu0
    %v864 = vadd.f32 0.0, %v863
    %v865 = vpop.f32.mrf.mxu0
    %v866 = vadd.f32 0.0, %v865
    %867 = vdwg.mxu0
    %v868 = vadd.f32 %v692, %v864
    %v869 = vadd.f32 %v694, %v866
    %870 = vrot.lane.b32.xlu0 %v479, 32
    %v871 = vpop.permute.xlu0 %870
    %872 = vrot.lane.b32.xlu0 %v484, 32
    %v873 = vpop.permute.xlu0 %872
    %v875 = vsel %vm343, %v871, 0
    %v878 = vsel %vm343, %v873, 0
    %880 = vmatpush.bf16.xpose.msra.mxu0 0
    %881 = vmatpush.bf16.xpose.msra.mxu0 0
    %882 = vmatpush.bf16.xpose.msra.mxu0 0
    %883 = vmatpush.bf16.xpose.msra.mxu0 0
    %884 = vmatpush.bf16.xpose.msra.mxu0 0
    %885 = vmatpush.bf16.xpose.msra.mxu0 0
    %886 = vmatpush.bf16.xpose.msra.mxu0 0
    %887 = vmatpush.bf16.xpose.msra.mxu0 %v878
    %888 = vmatmul.bf16.gmra.mxu0 %v875
    %v889 = vpop.f32.mrf.mxu0
    %v890 = vadd.f32 %v339, %v889
    %v891 = vpop.f32.mrf.mxu0
    %892 = vdwg.mxu0
    %893 = vrot.lane.b32.xlu0 %v508, 32
    %v894 = vpop.permute.xlu0 %893
    %895 = vrot.lane.b32.xlu0 %v513, 32
    %v896 = vpop.permute.xlu0 %895
    %v898 = vsel %vm343, %v894, 0
    %v901 = vsel %vm343, %v896, 0
    %903 = vmatpush.bf16.xpose.msra.mxu0 0
    %904 = vmatpush.bf16.xpose.msra.mxu0 0
    %905 = vmatpush.bf16.xpose.msra.mxu0 0
    %906 = vmatpush.bf16.xpose.msra.mxu0 0
    %907 = vmatpush.bf16.xpose.msra.mxu0 0
    %908 = vmatpush.bf16.xpose.msra.mxu0 0
    %909 = vmatpush.bf16.xpose.msra.mxu0 0
    %910 = vmatpush.bf16.xpose.msra.mxu0 %v901
    %911 = vmatmul.bf16.gmra.mxu0 %v898
    %v912 = vpop.f32.mrf.mxu0
    %v913 = vadd.f32 %v340, %v912
    %v914 = vpop.f32.mrf.mxu0
    %915 = vdwg.mxu0
    %v916 = vsel %vm382, %v890, -inf
    %917 = vmax.xlane.f32.xlu0 %v916
    %v918 = vpop.xlane.xlu0 %917
    %v919 = vsel %vm382, %v913, -inf
    %920 = vmax.xlane.f32.xlu0 %v919
    %v921 = vpop.xlane.xlu0 %920
    %v922 = vsub.f32 %v890, %v918
    %v923 = vsub.f32 %v913, %v921
    %v924 = vmul.f32 %v922, 1.442695
    %v925 = vpow.pop %v924
    %v926 = vmul.f32 %v923, 1.442695
    %v927 = vpow.pop %v926
    %v928 = vsel %vm382, %v925, 0.0
    %929 = vadd.xlane.f32.xlu0 %v928
    %v930 = vpop.xlane.xlu0 %929
    %v931 = vsel %vm382, %v927, 0.0
    %932 = vadd.xlane.f32.xlu0 %v931
    %v933 = vpop.xlane.xlu0 %932
    %v934 = vrcp.pop %v930
    %v935 = vmul.f32 %v930, %v934
    %v936 = vsub.f32 1.0, %v935
    %v937 = vmul.f32 %v934, %v936
    %v938 = vadd.f32 %v934, %v937
    %vm939 = vweird.f32 %v930
    %vm940 = vweird.f32 %v934
    %vm941 = vmor %vm939, %vm940
    %v942 = vsel %vm941, %v934, %v938
    %v943 = vand.u32 2147483647, %v930
    %vm944 = vcmp.eq.f32.partialorder %v943, 8.507059e+37
    %v945 = vand.u32 %v930, 2147483648
    %v946 = vor.u32 1.1754944e-38, %v945
    %v947 = vsel %vm944, %v946, %v942
    %v948 = vmul.f32 %v925, %v947
    %v949 = vrcp.pop %v933
    %v950 = vmul.f32 %v933, %v949
    %v951 = vsub.f32 1.0, %v950
    %v952 = vmul.f32 %v949, %v951
    %v953 = vadd.f32 %v949, %v952
    %vm954 = vweird.f32 %v933
    %vm955 = vweird.f32 %v949
    %vm956 = vmor %vm954, %vm955
    %v957 = vsel %vm956, %v949, %v953
    %v958 = vand.u32 2147483647, %v933
    %vm959 = vcmp.eq.f32.partialorder %v958, 8.507059e+37
    %v960 = vand.u32 %v933, 2147483648
    %v961 = vor.u32 1.1754944e-38, %v960
    %v962 = vsel %vm959, %v961, %v957
    %v963 = vmul.f32 %v927, %v962
    %v964 = vpack.c.bf16 %v948, %v948
    %v965 = vpack.c.bf16 %v963, %v963
    %966 = vrot.lane.b32.xlu0 %v587, 32
    %v967 = vpop.permute.xlu0 %966
    %v969 = vsel %vm382, %v964, 0
    %v972 = vsel %vm436, %v967, 0
    %974 = vmatpush.bf16.msra.mxu0 0
    %975 = vmatpush.bf16.msra.mxu0 0
    %976 = vmatpush.bf16.msra.mxu0 0
    %977 = vmatpush.bf16.msra.mxu0 0
    %978 = vmatpush.bf16.msra.mxu0 0
    %979 = vmatpush.bf16.msra.mxu0 0
    %980 = vmatpush.bf16.msra.mxu0 0
    %981 = vmatpush.bf16.msra.mxu0 %v972
    %982 = vmatmul.bf16.gmra.mxu0 %v969
    %v983 = vpop.f32.mrf.mxu0
    %v984 = vadd.f32 0.0, %v983
    %v985 = vpop.f32.mrf.mxu0
    %986 = vdwg.mxu0
    %987 = vrot.lane.b32.xlu0 %v611, 32
    %v988 = vpop.permute.xlu0 %987
    %v990 = vsel %vm382, %v965, 0
    %v993 = vsel %vm436, %v988, 0
    %995 = vmatpush.bf16.msra.mxu0 0
    %996 = vmatpush.bf16.msra.mxu0 0
    %997 = vmatpush.bf16.msra.mxu0 0
    %998 = vmatpush.bf16.msra.mxu0 0
    %999 = vmatpush.bf16.msra.mxu0 0
    %1000 = vmatpush.bf16.msra.mxu0 0
    %1001 = vmatpush.bf16.msra.mxu0 0
    %1002 = vmatpush.bf16.msra.mxu0 %v993
    %1003 = vmatmul.bf16.gmra.mxu0 %v990
    %v1004 = vpop.f32.mrf.mxu0
    %v1005 = vadd.f32 0.0, %v1004
    %v1006 = vpop.f32.mrf.mxu0
    %1007 = vdwg.mxu0
    %v1008 = vpack.c.bf16 %v1005, %v984
    %v1009 = vld [vmem:[#allocation4 + $0x30] sm:$0xf]
    %v1010 = vld [vmem:[#allocation4 + $0x34] sm:$0xf]
    %v1011 = vld [vmem:[#allocation4 + $0x38] sm:$0xf]
    %v1012 = vld [vmem:[#allocation4 + $0x3c] sm:$0xf]
    %v1017 = vunpack.c.l.b16 %v1009
    %v1018 = vunpack.c.l.b16 %v1010
    %v1019 = vunpack.c.l.b16 %v1011
    %v1020 = vunpack.c.l.b16 %v1012
    %v1021 = vpack.c.b16 %v1018, %v1017
    %v1022 = vpack.c.b16 %v1020, %v1019
    %v1026 = vsel %vm343, %v1008, 0
    %1028 = vmatpush.bf16.msra.mxu0 0
    %1029 = vmatpush.bf16.msra.mxu0 0
    %1030 = vmatpush.bf16.msra.mxu0 0
    %1031 = vmatpush.bf16.msra.mxu0 0
    %1032 = vmatpush.bf16.msra.mxu0 0
    %1033 = vmatpush.bf16.msra.mxu0 0
    %1034 = vmatpush.bf16.msra.mxu0 %v1022
    %1035 = vmatpush.bf16.msra.mxu0 %v1021
    %1036 = vmatmul.bf16.gmra.mxu0 %v1026
    %v1037 = vpop.f32.mrf.mxu0
    %v1038 = vadd.f32 0.0, %v1037
    %v1039 = vpop.f32.mrf.mxu0
    %v1040 = vadd.f32 0.0, %v1039
    %1041 = vdwg.mxu0
    %v1042 = vadd.f32 %v868, %v1038
    %v1043 = vadd.f32 %v869, %v1040
    %v1044 = vld [vmem:[%s7] sm:$0x1]
    %v1046 = vperm.slane %v1044, 0
    %v1048 = vadd.f32 %v1042, %v1046
    %v1049 = vadd.f32 %v1043, %v1046
    %v1050 = vadd.f32 %v1048, %v117
    %v1051 = vadd.f32 %v1049, %v118
    %v1052 = vld [vmem:[%s8] sm:$0x1]
    %v1053 = vld [vmem:[%s9] sm:$0x1]
    %1054 = vadd.xlane.f32.xlu0 %v1050
    %v1055 = vpop.xlane.xlu0 %1054
    %1056 = vadd.xlane.f32.xlu0 %v1051
    %v1057 = vpop.xlane.xlu0 %1056
    %v1058 = vrcp.pop 128.0
    %v1059 = vmul.f32 128.0, %v1058
    %v1060 = vsub.f32 1.0, %v1059
    %v1061 = vmul.f32 %v1058, %v1060
    %v1062 = vadd.f32 %v1058, %v1061
    %vm1063 = vweird.f32 %v1058
    %v1064 = vsel %vm1063, %v1058, %v1062
    %v1065 = vmul.f32 %v1055, %v1064
    %v1066 = vmul.f32 %v1057, %v1064
    %v1067 = vsub.f32 %v1050, %v1065
    %v1068 = vsub.f32 %v1051, %v1066
    %v1069 = vmul.f32 %v1067, %v1067
    %v1070 = vmul.f32 %v1068, %v1068
    %1071 = vadd.xlane.f32.xlu0 %v1069
    %v1072 = vpop.xlane.xlu0 %1071
    %1073 = vadd.xlane.f32.xlu0 %v1070
    %v1074 = vpop.xlane.xlu0 %1073
    %v1075 = vmul.f32 %v1072, %v1064
    %v1076 = vmul.f32 %v1074, %v1064
    %v1077 = vadd.f32 %v1075, 1e-07
    %v1078 = vadd.f32 %v1076, 1e-07
    %v1079 = vrsqrt.pop %v1077
    %v1080 = vmul.f32 %v1079, %v1077
    %v1081 = vmul.f32 %v1080, %v1079
    %v1082 = vmul.f32 0.5, %v1081
    %v1083 = vsub.f32 1.5, %v1082
    %v1084 = vmul.f32 %v1079, %v1083
    %vm1085 = vweird.f32 %v1077
    %vm1086 = vweird.f32 %v1079
    %vm1087 = vmor %vm1085, %vm1086
    %v1088 = vsel %vm1087, %v1079, %v1084
    %v1089 = vrsqrt.pop %v1078
    %v1090 = vmul.f32 %v1089, %v1078
    %v1091 = vmul.f32 %v1090, %v1089
    %v1092 = vmul.f32 0.5, %v1091
    %v1093 = vsub.f32 1.5, %v1092
    %v1094 = vmul.f32 %v1089, %v1093
    %vm1095 = vweird.f32 %v1078
    %vm1096 = vweird.f32 %v1089
    %vm1097 = vmor %vm1095, %vm1096
    %v1098 = vsel %vm1097, %v1089, %v1094
    %v1099 = vmul.f32 %v1067, %v1088
    %v1100 = vmul.f32 %v1068, %v1098
    %v1102 = vperm.slane %v1052, 0
    %v1104 = vmul.f32 %v1099, %v1102
    %v1105 = vmul.f32 %v1100, %v1102
    %v1107 = vperm.slane %v1053, 0
    %v1109 = vadd.f32 %v1104, %v1107
    %v1110 = vadd.f32 %v1105, %v1107
    %v1111 = vpack.c.bf16 %v1110, %v1109
    %v1112 = vld [vmem:[#allocation6] sm:$0xff]
    %v1113 = vld [vmem:[#allocation6 + $0x8] sm:$0xff]
    %v1114 = vld [vmem:[#allocation6 + $0x10] sm:$0xff]
    %v1115 = vld [vmem:[#allocation6 + $0x18] sm:$0xff]
    %v1116 = vld [vmem:[#allocation6 + $0x20] sm:$0xff]
    %v1117 = vld [vmem:[#allocation6 + $0x28] sm:$0xff]
    %v1118 = vld [vmem:[#allocation6 + $0x30] sm:$0xff]
    %v1119 = vld [vmem:[#allocation6 + $0x38] sm:$0xff]
    %v1120 = vld [vmem:[#allocation6 + $0x40] sm:$0xff]
    %v1121 = vld [vmem:[#allocation6 + $0x48] sm:$0xff]
    %v1122 = vld [vmem:[#allocation6 + $0x50] sm:$0xff]
    %v1123 = vld [vmem:[#allocation6 + $0x58] sm:$0xff]
    %v1124 = vld [vmem:[#allocation6 + $0x60] sm:$0xff]
    %v1125 = vld [vmem:[#allocation6 + $0x68] sm:$0xff]
    %v1126 = vld [vmem:[#allocation6 + $0x70] sm:$0xff]
    %v1127 = vld [vmem:[#allocation6 + $0x78] sm:$0xff]
    %v1128 = vld [vmem:[%s11] sm:$0x3]
    %v1130 = vperm.slane %v1128, 0
    %v1131 = vperm.slane %v1128, 1
    %v1150 = vunpack.c.l.b16 %v1112
    %v1151 = vunpack.c.h.b16 %v1112
    %v1152 = vunpack.c.l.b16 %v1113
    %v1153 = vunpack.c.h.b16 %v1113
    %v1154 = vunpack.c.l.b16 %v1114
    %v1155 = vunpack.c.h.b16 %v1114
    %v1156 = vunpack.c.l.b16 %v1115
    %v1157 = vunpack.c.h.b16 %v1115
    %v1158 = vunpack.c.l.b16 %v1116
    %v1159 = vunpack.c.h.b16 %v1116
    %v1160 = vunpack.c.l.b16 %v1117
    %v1161 = vunpack.c.h.b16 %v1117
    %v1162 = vunpack.c.l.b16 %v1118
    %v1163 = vunpack.c.h.b16 %v1118
    %v1164 = vunpack.c.l.b16 %v1119
    %v1165 = vunpack.c.h.b16 %v1119
    %v1166 = vunpack.c.l.b16 %v1120
    %v1167 = vunpack.c.h.b16 %v1120
    %v1168 = vunpack.c.l.b16 %v1121
    %v1169 = vunpack.c.h.b16 %v1121
    %v1170 = vunpack.c.l.b16 %v1122
    %v1171 = vunpack.c.h.b16 %v1122
    %v1172 = vunpack.c.l.b16 %v1123
    %v1173 = vunpack.c.h.b16 %v1123
    %v1174 = vunpack.c.l.b16 %v1124
    %v1175 = vunpack.c.h.b16 %v1124
    %v1176 = vunpack.c.l.b16 %v1125
    %v1177 = vunpack.c.h.b16 %v1125
    %v1178 = vunpack.c.l.b16 %v1126
    %v1179 = vunpack.c.h.b16 %v1126
    %v1180 = vunpack.c.l.b16 %v1127
    %v1181 = vunpack.c.h.b16 %v1127
    %v1182 = vpack.c.b16 %v1152, %v1150
    %v1183 = vpack.c.b16 %v1153, %v1151
    %v1184 = vpack.c.b16 %v1156, %v1154
    %v1185 = vpack.c.b16 %v1157, %v1155
    %v1186 = vpack.c.b16 %v1160, %v1158
    %v1187 = vpack.c.b16 %v1161, %v1159
    %v1188 = vpack.c.b16 %v1164, %v1162
    %v1189 = vpack.c.b16 %v1165, %v1163
    %v1190 = vpack.c.b16 %v1168, %v1166
    %v1191 = vpack.c.b16 %v1169, %v1167
    %v1192 = vpack.c.b16 %v1172, %v1170
    %v1193 = vpack.c.b16 %v1173, %v1171
    %v1194 = vpack.c.b16 %v1176, %v1174
    %v1195 = vpack.c.b16 %v1177, %v1175
    %v1196 = vpack.c.b16 %v1180, %v1178
    %v1197 = vpack.c.b16 %v1181, %v1179
    %1214 = vmatpush.bf16.msra.mxu0 %v1196
    %1215 = vmatpush.bf16.msra.mxu0 %v1194
    %1216 = vmatpush.bf16.msra.mxu0 %v1192
    %1217 = vmatpush.bf16.msra.mxu0 %v1190
    %1218 = vmatpush.bf16.msra.mxu0 %v1188
    %1219 = vmatpush.bf16.msra.mxu0 %v1186
    %1220 = vmatpush.bf16.msra.mxu0 %v1184
    %1221 = vmatpush.bf16.msra.mxu0 %v1182
    %1222 = vmatmul.bf16.gmra.mxu0 %v1111
    %v1223 = vpop.f32.mrf.mxu0
    %v1224 = vadd.f32 %v1130, %v1223
    %v1225 = vpop.f32.mrf.mxu0
    %v1226 = vadd.f32 %v1130, %v1225
    %1227 = vdwg.mxu0
    %1228 = vmatpush.bf16.msra.mxu0 %v1197
    %1229 = vmatpush.bf16.msra.mxu0 %v1195
    %1230 = vmatpush.bf16.msra.mxu0 %v1193
    %1231 = vmatpush.bf16.msra.mxu0 %v1191
    %1232 = vmatpush.bf16.msra.mxu0 %v1189
    %1233 = vmatpush.bf16.msra.mxu0 %v1187
    %1234 = vmatpush.bf16.msra.mxu0 %v1185
    %1235 = vmatpush.bf16.msra.mxu0 %v1183
    %1236 = vmatmul.bf16.gmra.mxu0 %v1111
    %v1237 = vpop.f32.mrf.mxu0
    %v1238 = vadd.f32 %v1131, %v1237
    %v1239 = vpop.f32.mrf.mxu0
    %v1240 = vadd.f32 %v1131, %v1239
    %1241 = vdwg.mxu0
    %v1242 = vmul.f32 %v1224, 0.5
    %v1243 = vmul.f32 %v1238, 0.5
    %v1244 = vmul.f32 %v1226, 0.5
    %v1245 = vmul.f32 %v1240, 0.5
    %v1246 = vmul.f32 %v1224, 0.044715
    %v1247 = vmul.f32 %v1238, 0.044715
    %v1248 = vmul.f32 %v1226, 0.044715
    %v1249 = vmul.f32 %v1240, 0.044715
    %v1250 = vmul.f32 %v1246, %v1224
    %v1251 = vmul.f32 %v1247, %v1238
    %v1252 = vmul.f32 %v1248, %v1226
    %v1253 = vmul.f32 %v1249, %v1240
    %v1254 = vmul.f32 %v1250, %v1224
    %v1255 = vmul.f32 %v1251, %v1238
    %v1256 = vmul.f32 %v1252, %v1226
    %v1257 = vmul.f32 %v1253, %v1240
    %v1258 = vadd.f32 %v1224, %v1254
    %v1259 = vadd.f32 %v1238, %v1255
    %v1260 = vadd.f32 %v1226, %v1256
    %v1261 = vadd.f32 %v1240, %v1257
    %v1262 = vmul.f32 %v1258, 0.7978846
    %v1263 = vmul.f32 %v1259, 0.7978846
    %v1264 = vmul.f32 %v1260, 0.7978846
    %v1265 = vmul.f32 %v1261, 0.7978846
    %v1266 = vtanh.pop %v1262
    %v1267 = vtanh.pop %v1263
    %v1268 = vtanh.pop %v1264
    %v1269 = vtanh.pop %v1265
    %v1270 = vadd.f32 %v1266, 1.0
    %v1271 = vadd.f32 %v1267, 1.0
    %v1272 = vadd.f32 %v1268, 1.0
    %v1273 = vadd.f32 %v1269, 1.0
    %v1274 = vmul.f32 %v1242, %v1270
    %v1275 = vmul.f32 %v1243, %v1271
    %v1276 = vmul.f32 %v1244, %v1272
    %v1277 = vmul.f32 %v1245, %v1273
    %v1278 = vpack.c.bf16 %v1276, %v1274
    %v1279 = vpack.c.bf16 %v1277, %v1275
    %v1280 = vld [vmem:[#allocation7] sm:$0xf]
    %v1281 = vld [vmem:[#allocation7 + $0x4] sm:$0xf]
    %v1282 = vld [vmem:[#allocation7 + $0x8] sm:$0xf]
    %v1283 = vld [vmem:[#allocation7 + $0xc] sm:$0xf]
    %v1284 = vld [vmem:[#allocation7 + $0x10] sm:$0xf]
    %v1285 = vld [vmem:[#allocation7 + $0x14] sm:$0xf]
    %v1286 = vld [vmem:[#allocation7 + $0x18] sm:$0xf]
    %v1287 = vld [vmem:[#allocation7 + $0x1c] sm:$0xf]
    %v1288 = vld [vmem:[#allocation7 + $0x20] sm:$0xf]
    %v1289 = vld [vmem:[#allocation7 + $0x24] sm:$0xf]
    %v1290 = vld [vmem:[#allocation7 + $0x28] sm:$0xf]
    %v1291 = vld [vmem:[#allocation7 + $0x2c] sm:$0xf]
    %v1292 = vld [vmem:[#allocation7 + $0x30] sm:$0xf]
    %v1293 = vld [vmem:[#allocation7 + $0x34] sm:$0xf]
    %v1294 = vld [vmem:[#allocation7 + $0x38] sm:$0xf]
    %v1295 = vld [vmem:[#allocation7 + $0x3c] sm:$0xf]
    %v1296 = vld [vmem:[#allocation7 + $0x40] sm:$0xf]
    %v1297 = vld [vmem:[#allocation7 + $0x44] sm:$0xf]
    %v1298 = vld [vmem:[#allocation7 + $0x48] sm:$0xf]
    %v1299 = vld [vmem:[#allocation7 + $0x4c] sm:$0xf]
    %v1300 = vld [vmem:[#allocation7 + $0x50] sm:$0xf]
    %v1301 = vld [vmem:[#allocation7 + $0x54] sm:$0xf]
    %v1302 = vld [vmem:[#allocation7 + $0x58] sm:$0xf]
    %v1303 = vld [vmem:[#allocation7 + $0x5c] sm:$0xf]
    %v1304 = vld [vmem:[#allocation7 + $0x60] sm:$0xf]
    %v1305 = vld [vmem:[#allocation7 + $0x64] sm:$0xf]
    %v1306 = vld [vmem:[#allocation7 + $0x68] sm:$0xf]
    %v1307 = vld [vmem:[#allocation7 + $0x6c] sm:$0xf]
    %v1308 = vld [vmem:[#allocation7 + $0x70] sm:$0xf]
    %v1309 = vld [vmem:[#allocation7 + $0x74] sm:$0xf]
    %v1310 = vld [vmem:[#allocation7 + $0x78] sm:$0xf]
    %v1311 = vld [vmem:[#allocation7 + $0x7c] sm:$0xf]
    %v1312 = vld [vmem:[%s13] sm:$0x1]
    %v1314 = vperm.slane %v1312, 0
    %v1348 = vunpack.c.l.b16 %v1280
    %v1349 = vunpack.c.l.b16 %v1281
    %v1350 = vunpack.c.l.b16 %v1282
    %v1351 = vunpack.c.l.b16 %v1283
    %v1352 = vunpack.c.l.b16 %v1284
    %v1353 = vunpack.c.l.b16 %v1285
    %v1354 = vunpack.c.l.b16 %v1286
    %v1355 = vunpack.c.l.b16 %v1287
    %v1356 = vunpack.c.l.b16 %v1288
    %v1357 = vunpack.c.l.b16 %v1289
    %v1358 = vunpack.c.l.b16 %v1290
    %v1359 = vunpack.c.l.b16 %v1291
    %v1360 = vunpack.c.l.b16 %v1292
    %v1361 = vunpack.c.l.b16 %v1293
    %v1362 = vunpack.c.l.b16 %v1294
    %v1363 = vunpack.c.l.b16 %v1295
    %v1364 = vunpack.c.l.b16 %v1296
    %v1365 = vunpack.c.l.b16 %v1297
    %v1366 = vunpack.c.l.b16 %v1298
    %v1367 = vunpack.c.l.b16 %v1299
    %v1368 = vunpack.c.l.b16 %v1300
    %v1369 = vunpack.c.l.b16 %v1301
    %v1370 = vunpack.c.l.b16 %v1302
    %v1371 = vunpack.c.l.b16 %v1303
    %v1372 = vunpack.c.l.b16 %v1304
    %v1373 = vunpack.c.l.b16 %v1305
    %v1374 = vunpack.c.l.b16 %v1306
    %v1375 = vunpack.c.l.b16 %v1307
    %v1376 = vunpack.c.l.b16 %v1308
    %v1377 = vunpack.c.l.b16 %v1309
    %v1378 = vunpack.c.l.b16 %v1310
    %v1379 = vunpack.c.l.b16 %v1311
    %v1380 = vpack.c.b16 %v1349, %v1348
    %v1381 = vpack.c.b16 %v1351, %v1350
    %v1382 = vpack.c.b16 %v1353, %v1352
    %v1383 = vpack.c.b16 %v1355, %v1354
    %v1384 = vpack.c.b16 %v1357, %v1356
    %v1385 = vpack.c.b16 %v1359, %v1358
    %v1386 = vpack.c.b16 %v1361, %v1360
    %v1387 = vpack.c.b16 %v1363, %v1362
    %v1388 = vpack.c.b16 %v1365, %v1364
    %v1389 = vpack.c.b16 %v1367, %v1366
    %v1390 = vpack.c.b16 %v1369, %v1368
    %v1391 = vpack.c.b16 %v1371, %v1370
    %v1392 = vpack.c.b16 %v1373, %v1372
    %v1393 = vpack.c.b16 %v1375, %v1374
    %v1394 = vpack.c.b16 %v1377, %v1376
    %v1395 = vpack.c.b16 %v1379, %v1378
    %1412 = vmatpush.bf16.msra.mxu0 %v1387
    %1413 = vmatpush.bf16.msra.mxu0 %v1386
    %1414 = vmatpush.bf16.msra.mxu0 %v1385
    %1415 = vmatpush.bf16.msra.mxu0 %v1384
    %1416 = vmatpush.bf16.msra.mxu0 %v1383
    %1417 = vmatpush.bf16.msra.mxu0 %v1382
    %1418 = vmatpush.bf16.msra.mxu0 %v1381
    %1419 = vmatpush.bf16.msra.mxu0 %v1380
    %1420 = vmatmul.bf16.gmra.mxu0 %v1278
    %v1421 = vpop.f32.mrf.mxu0
    %v1422 = vadd.f32 %v1314, %v1421
    %v1423 = vpop.f32.mrf.mxu0
    %v1424 = vadd.f32 %v1314, %v1423
    %1425 = vdwg.mxu0
    %1426 = vmatpush.bf16.msra.mxu0 %v1395
    %1427 = vmatpush.bf16.msra.mxu0 %v1394
    %1428 = vmatpush.bf16.msra.mxu0 %v1393
    %1429 = vmatpush.bf16.msra.mxu0 %v1392
    %1430 = vmatpush.bf16.msra.mxu0 %v1391
    %1431 = vmatpush.bf16.msra.mxu0 %v1390
    %1432 = vmatpush.bf16.msra.mxu0 %v1389
    %1433 = vmatpush.bf16.msra.mxu0 %v1388
    %1434 = vmatmul.bf16.gmra.mxu0 %v1279
    %v1435 = vpop.f32.mrf.mxu0
    %v1436 = vadd.f32 %v1422, %v1435
    %v1437 = vpop.f32.mrf.mxu0
    %v1438 = vadd.f32 %v1424, %v1437
    %1439 = vdwg.mxu0
    %v1440 = vadd.f32 %v1436, %v1109
    %v1441 = vadd.f32 %v1438, %v1110
    %v1442 = vld [vmem:[%s14] sm:$0x1]
    %v1443 = vld [vmem:[%s15] sm:$0x1]
    %1444 = vadd.xlane.f32.xlu0 %v1440
    %v1445 = vpop.xlane.xlu0 %1444
    %1446 = vadd.xlane.f32.xlu0 %v1441
    %v1447 = vpop.xlane.xlu0 %1446
    %v1448 = vmul.f32 %v1445, %v1064
    %v1449 = vmul.f32 %v1447, %v1064
    %v1450 = vsub.f32 %v1440, %v1448
    %v1451 = vsub.f32 %v1441, %v1449
    %v1452 = vmul.f32 %v1450, %v1450
    %v1453 = vmul.f32 %v1451, %v1451
    %1454 = vadd.xlane.f32.xlu0 %v1452
    %v1455 = vpop.xlane.xlu0 %1454
    %1456 = vadd.xlane.f32.xlu0 %v1453
    %v1457 = vpop.xlane.xlu0 %1456
    %v1458 = vmul.f32 %v1455, %v1064
    %v1459 = vmul.f32 %v1457, %v1064
    %v1460 = vadd.f32 %v1458, 1e-07
    %v1461 = vadd.f32 %v1459, 1e-07
    %v1462 = vrsqrt.pop %v1460
    %v1463 = vmul.f32 %v1462, %v1460
    %v1464 = vmul.f32 %v1463, %v1462
    %v1465 = vmul.f32 0.5, %v1464
    %v1466 = vsub.f32 1.5, %v1465
    %v1467 = vmul.f32 %v1462, %v1466
    %vm1468 = vweird.f32 %v1460
    %vm1469 = vweird.f32 %v1462
    %vm1470 = vmor %vm1468, %vm1469
    %v1471 = vsel %vm1470, %v1462, %v1467
    %v1472 = vrsqrt.pop %v1461
    %v1473 = vmul.f32 %v1472, %v1461
    %v1474 = vmul.f32 %v1473, %v1472
    %v1475 = vmul.f32 0.5, %v1474
    %v1476 = vsub.f32 1.5, %v1475
    %v1477 = vmul.f32 %v1472, %v1476
    %vm1478 = vweird.f32 %v1461
    %vm1479 = vweird.f32 %v1472
    %vm1480 = vmor %vm1478, %vm1479
    %v1481 = vsel %vm1480, %v1472, %v1477
    %v1482 = vmul.f32 %v1450, %v1471
    %v1483 = vmul.f32 %v1451, %v1481
    %v1485 = vperm.slane %v1442, 0
    %v1487 = vmul.f32 %v1482, %v1485
    %v1488 = vmul.f32 %v1483, %v1485
    %v1490 = vperm.slane %v1443, 0
    %v1492 = vadd.f32 %v1487, %v1490
    %v1493 = vadd.f32 %v1488, %v1490
    %1494 = vst [vmem:[%s16] sm:$0xff] %v1492
    %1495 = vst [vmem:[%s16 + $0x8] sm:$0xff] %v1493
    // Predicated region
    $region82: #{lit_model_forward.4} parent=1 // pred_check
      _
    $region83: #{lit_model_forward.4} parent=1 // pred_check_branch
      %1497 = sbr.rel (0) target = $region85
    $region84: #{lit_model_forward.4} parent=1 // pred_region
      _
    $region85: #{lit_model_forward.4} parent=1 // pred_fallthru
      _
    // Predicated region
    $region86: #{lit_model_forward.4} parent=1 // pred_check
      _
    $region87: #{lit_model_forward.4} parent=1 // pred_check_branch
      %1499 = sbr.rel (0) target = $region89
    $region88: #{lit_model_forward.4} parent=1 // pred_region
      _
    $region89: #{lit_model_forward.4} parent=1 // pred_fallthru
      _
    %1500 = vsyncpa [#allocation3], 1
    %1501 = vsyncpa [#allocation5], 1
    %1502 = vsyncpa [#allocation8], 1

// kernel: lit_model_forward.3
$region0: #{lit_model_forward.3}
  #allocation0 [shape = 'u32[]', space=smem, size = 0x4, offset = 0x4, fixed_abs, tag = 'smem constant byte address 0x4 - core index']
  #allocation1 [shape = 'u32[72,128]{1,0:T(1,128)}', space=vmem, size = 0x9000, scoped, tag = 'internal scratch']
  %s0 = inlined_call_operand.vmem [shape: f32[2,8,128], index: 0, kind: input, shape index: {}]
  %s1 = inlined_call_operand.vmem [shape: f32[2,8], index: 1, kind: input, shape index: {}]
  %s2 = inlined_call_operand.vmem [shape: f32[1,128], index: 2, kind: input, shape index: {}]
  %s3 = inlined_call_operand.vmem [shape: f32[1,128], index: 3, kind: input, shape index: {}]
  %s4 = inlined_call_operand.vmem [shape: bf16[128,384], index: 4, kind: input, shape index: {}]
  %s5 = inlined_call_operand.vmem [shape: f32[1,384], index: 5, kind: input, shape index: {}]
  %s6 = inlined_call_operand.vmem [shape: bf16[128,128], index: 6, kind: input, shape index: {}]
  %s7 = inlined_call_operand.vmem [shape: f32[1,128], index: 7, kind: input, shape index: {}]
  %s8 = inlined_call_operand.vmem [shape: f32[1,128], index: 8, kind: input, shape index: {}]
  %s9 = inlined_call_operand.vmem [shape: f32[1,128], index: 9, kind: input, shape index: {}]
  %s10 = inlined_call_operand.hbm [shape: bf16[128,256], index: 10, kind: input, shape index: {}]
  %s11 = inlined_call_operand.vmem [shape: f32[1,256], index: 11, kind: input, shape index: {}]
  %s12 = inlined_call_operand.hbm [shape: bf16[256,128], index: 12, kind: input, shape index: {}]
  %s13 = inlined_call_operand.vmem [shape: f32[1,128], index: 13, kind: input, shape index: {}]
  %s14 = inlined_call_operand.vmem [shape: f32[1,128], index: 14, kind: input, shape index: {}]
  %s15 = inlined_call_operand.vmem [shape: f32[1,128], index: 15, kind: input, shape index: {}]
  %s16 = inlined_call_operand.vmem [shape: f32[2,8,128], index: 16, kind: output, shape index: {}]
  %s17 = sld [smem:[#allocation0]]
  $region82: #{lit_model_forward.3} parent=0
    _
  %s19 = ssub.s32 1, %s17
  %s20 = scalar_select 0, %s19, %s17
  $region1: #{lit_model_forward.3} parent=0
    #allocation2 [shape = 'u8[65536]{0}', space=vmem, size = 0x10000, scoped, tag = 'input window, operand 10, single buffered']
    #allocation3 [shape = 's32[1]{0}', space=sflag, size = 0x4, scoped, tag = 'scoped memory for lit_model_forward.3']
    #allocation4 [shape = 'u8[65536]{0}', space=vmem, size = 0x10000, scoped, tag = 'input window, operand 12, single buffered']
    #allocation5 [shape = 's32[1]{0}', space=sflag, size = 0x4, scoped, tag = 'scoped memory for lit_model_forward.3']
    %21 = vsyncpa [#allocation3], 0
    %22 = vsyncpa [#allocation5], 0
    // Predicated region
    $region2: #{lit_model_forward.3} parent=1 // pred_check
      _
    $region3: #{lit_model_forward.3} parent=1 // pred_check_branch
      %24 = sbr.rel (0) target = $region5
    $region4: #{lit_model_forward.3} parent=1 // pred_region
      _
    $region5: #{lit_model_forward.3} parent=1 // pred_fallthru
      _
    // Predicated region
    $region6: #{lit_model_forward.3} parent=1 // pred_check
      _
    $region7: #{lit_model_forward.3} parent=1 // pred_check_branch
      %26 = sbr.rel (0) target = $region9
    $region8: #{lit_model_forward.3} parent=1 // pred_region
      _
    $region9: #{lit_model_forward.3} parent=1 // pred_fallthru
      _
    // Predicated region
    $region10: #{lit_model_forward.3} parent=1 // pred_check
      _
    $region11: #{lit_model_forward.3} parent=1 // pred_check_branch
      %28 = sbr.rel (0) target = $region13
    $region12: #{lit_model_forward.3} parent=1 // pred_region
      _
    $region13: #{lit_model_forward.3} parent=1 // pred_fallthru
      _
    // Predicated region
    $region14: #{lit_model_forward.3} parent=1 // pred_check
      _
    $region15: #{lit_model_forward.3} parent=1 // pred_check_branch
      %30 = sbr.rel (0) target = $region17
    $region16: #{lit_model_forward.3} parent=1 // pred_region
      _
    $region17: #{lit_model_forward.3} parent=1 // pred_fallthru
      _
    // Predicated region
    $region18: #{lit_model_forward.3} parent=1 // pred_check
      _
    $region19: #{lit_model_forward.3} parent=1 // pred_check_branch
      %32 = sbr.rel (0) target = $region21
    $region20: #{lit_model_forward.3} parent=1 // pred_region
      _
    $region21: #{lit_model_forward.3} parent=1 // pred_fallthru
      _
    // Predicated region
    $region22: #{lit_model_forward.3} parent=1 // pred_check
      _
    $region23: #{lit_model_forward.3} parent=1 // pred_check_branch
      %34 = sbr.rel (0) target = $region25
    $region24: #{lit_model_forward.3} parent=1 // pred_region
      _
    $region25: #{lit_model_forward.3} parent=1 // pred_fallthru
      _
    // Predicated region
    $region26: #{lit_model_forward.3} parent=1 // pred_check
      _
    $region27: #{lit_model_forward.3} parent=1 // pred_check_branch
      %36 = sbr.rel (0) target = $region29
    $region28: #{lit_model_forward.3} parent=1 // pred_region
      _
    $region29: #{lit_model_forward.3} parent=1 // pred_fallthru
      _
    // Predicated region
    $region30: #{lit_model_forward.3} parent=1 // pred_check
      _
    $region31: #{lit_model_forward.3} parent=1 // pred_check_branch
      %38 = sbr.rel (0) target = $region33
    $region32: #{lit_model_forward.3} parent=1 // pred_region
      _
    $region33: #{lit_model_forward.3} parent=1 // pred_fallthru
      _
    // Predicated region
    $region34: #{lit_model_forward.3} parent=1 // pred_check
      _
    $region35: #{lit_model_forward.3} parent=1 // pred_check_branch
      %40 = sbr.rel (0) target = $region37
    $region36: #{lit_model_forward.3} parent=1 // pred_region
      _
    $region37: #{lit_model_forward.3} parent=1 // pred_fallthru
      _
    // Predicated region
    $region38: #{lit_model_forward.3} parent=1 // pred_check
      _
    $region39: #{lit_model_forward.3} parent=1 // pred_check_branch
      %42 = sbr.rel (0) target = $region41
    $region40: #{lit_model_forward.3} parent=1 // pred_region
      _
    $region41: #{lit_model_forward.3} parent=1 // pred_fallthru
      _
    // Predicated region
    $region42: #{lit_model_forward.3} parent=1 // pred_check
      _
    $region43: #{lit_model_forward.3} parent=1 // pred_check_branch
      %44 = sbr.rel (0) target = $region45
    $region44: #{lit_model_forward.3} parent=1 // pred_region
      %46 = vsyncadd [#allocation3], 0
      %s47 = sshll.u32 %s10, 4
      %s48 = int_to_ptr.hbm [resolvable:$true] %s47
      %s49 = sshll.u32 [#allocation2], 4
      %s50 = int_to_ptr.vmem [resolvable:$true] %s49
      %55 = dma.hbm_to_vmem [thread:$0]  %s48, 2048, %s50, [#allocation3], 128, 128, 8
    $region45: #{lit_model_forward.3} parent=1 // pred_fallthru
      _
    // Predicated region
    $region46: #{lit_model_forward.3} parent=1 // pred_check
      _
    $region47: #{lit_model_forward.3} parent=1 // pred_check_branch
      %57 = sbr.rel (0) target = $region49
    $region48: #{lit_model_forward.3} parent=1 // pred_region
      _
    $region49: #{lit_model_forward.3} parent=1 // pred_fallthru
      _
    // Predicated region
    $region50: #{lit_model_forward.3} parent=1 // pred_check
      _
    $region51: #{lit_model_forward.3} parent=1 // pred_check_branch
      %59 = sbr.rel (0) target = $region53
    $region52: #{lit_model_forward.3} parent=1 // pred_region
      %61 = vsyncadd [#allocation5], 0
      %s62 = sshll.u32 %s12, 4
      %s63 = int_to_ptr.hbm [resolvable:$true] %s62
      %s64 = sshll.u32 [#allocation4], 4
      %s65 = int_to_ptr.vmem [resolvable:$true] %s64
      %70 = dma.hbm_to_vmem [thread:$0]  %s63, 2048, %s65, [#allocation5], 64, 64, 4
    $region53: #{lit_model_forward.3} parent=1 // pred_fallthru
      _
    // Predicated region
    $region54: #{lit_model_forward.3} parent=1 // pred_check
      _
    $region55: #{lit_model_forward.3} parent=1 // pred_check_branch
      %72 = sbr.rel (0) target = $region57
    $region56: #{lit_model_forward.3} parent=1 // pred_region
      _
    $region57: #{lit_model_forward.3} parent=1 // pred_fallthru
      _
    // Predicated region
    $region58: #{lit_model_forward.3} parent=1 // pred_check
      _
    $region59: #{lit_model_forward.3} parent=1 // pred_check_branch
      %74 = sbr.rel (0) target = $region61
    $region60: #{lit_model_forward.3} parent=1 // pred_region
      _
    $region61: #{lit_model_forward.3} parent=1 // pred_fallthru
      _
    // Predicated region
    $region62: #{lit_model_forward.3} parent=1 // pred_check
      _
    $region63: #{lit_model_forward.3} parent=1 // pred_check_branch
      %76 = sbr.rel (0) target = $region65
    $region64: #{lit_model_forward.3} parent=1 // pred_region
      _
    $region65: #{lit_model_forward.3} parent=1 // pred_fallthru
      _
    // Predicated region
    $region66: #{lit_model_forward.3} parent=1 // pred_check
      _
    $region67: #{lit_model_forward.3} parent=1 // pred_check_branch
      %78 = sbr.rel (0) target = $region69
    $region68: #{lit_model_forward.3} parent=1 // pred_region
      %80 = dma.done [#allocation3], 2048
    $region69: #{lit_model_forward.3} parent=1 // pred_fallthru
      _
    // Predicated region
    $region70: #{lit_model_forward.3} parent=1 // pred_check
      _
    $region71: #{lit_model_forward.3} parent=1 // pred_check_branch
      %82 = sbr.rel (0) target = $region73
    $region72: #{lit_model_forward.3} parent=1 // pred_region
      %84 = dma.done [#allocation5], 2048
    $region73: #{lit_model_forward.3} parent=1 // pred_fallthru
      _
    %v86 = vld [vmem:[%s0] sm:$0xff]
    %v87 = vld [vmem:[%s0 + $0x8] sm:$0xff]
    %v88 = vld [vmem:[%s2] sm:$0x1]
    %v89 = vld [vmem:[%s3] sm:$0x1]
    %90 = vadd.xlane.f32.xlu0 %v86
    %v91 = vpop.xlane.xlu0 %90
    %92 = vadd.xlane.f32.xlu0 %v87
    %v93 = vpop.xlane.xlu0 %92
    %v94 = vrcp.pop 128.0
    %v95 = vmul.f32 128.0, %v94
    %v96 = vsub.f32 1.0, %v95
    %v97 = vmul.f32 %v94, %v96
    %v98 = vadd.f32 %v94, %v97
    %vm99 = vweird.f32 %v94
    %v100 = vsel %vm99, %v94, %v98
    %v101 = vmul.f32 %v91, %v100
    %v102 = vmul.f32 %v93, %v100
    %v103 = vsub.f32 %v86, %v101
    %v104 = vsub.f32 %v87, %v102
    %v105 = vmul.f32 %v103, %v103
    %v106 = vmul.f32 %v104, %v104
    %107 = vadd.xlane.f32.xlu0 %v105
    %v108 = vpop.xlane.xlu0 %107
    %109 = vadd.xlane.f32.xlu0 %v106
    %v110 = vpop.xlane.xlu0 %109
    %v111 = vmul.f32 %v108, %v100
    %v112 = vmul.f32 %v110, %v100
    %v113 = vadd.f32 %v111, 1e-07
    %v114 = vadd.f32 %v112, 1e-07
    %v115 = vrsqrt.pop %v113
    %v116 = vmul.f32 %v115, %v113
    %v117 = vmul.f32 %v116, %v115
    %v118 = vmul.f32 0.5, %v117
    %v119 = vsub.f32 1.5, %v118
    %v120 = vmul.f32 %v115, %v119
    %vm121 = vweird.f32 %v113
    %vm122 = vweird.f32 %v115
    %vm123 = vmor %vm121, %vm122
    %v124 = vsel %vm123, %v115, %v120
    %v125 = vrsqrt.pop %v114
    %v126 = vmul.f32 %v125, %v114
    %v127 = vmul.f32 %v126, %v125
    %v128 = vmul.f32 0.5, %v127
    %v129 = vsub.f32 1.5, %v128
    %v130 = vmul.f32 %v125, %v129
    %vm131 = vweird.f32 %v114
    %vm132 = vweird.f32 %v125
    %vm133 = vmor %vm131, %vm132
    %v134 = vsel %vm133, %v125, %v130
    %v135 = vmul.f32 %v103, %v124
    %v136 = vmul.f32 %v104, %v134
    %v138 = vperm.slane %v88, 0
    %v140 = vmul.f32 %v135, %v138
    %v141 = vmul.f32 %v136, %v138
    %v143 = vperm.slane %v89, 0
    %v145 = vadd.f32 %v140, %v143
    %v146 = vadd.f32 %v141, %v143
    %v147 = vld [vmem:[%s1] sm:$0x3]
    %v148 = vpack.c.bf16 %v146, %v145
    %v149 = vld [vmem:[%s4] sm:$0xff]
    %v150 = vld [vmem:[%s4 + $0x8] sm:$0xf]
    %v151 = vld [vmem:[%s4 + $0xc] sm:$0xff]
    %v152 = vld [vmem:[%s4 + $0x14] sm:$0xf]
    %v153 = vld [vmem:[%s4 + $0x18] sm:$0xff]
    %v154 = vld [vmem:[%s4 + $0x20] sm:$0xf]
    %v155 = vld [vmem:[%s4 + $0x24] sm:$0xff]
    %v156 = vld [vmem:[%s4 + $0x2c] sm:$0xf]
    %v157 = vld [vmem:[%s4 + $0x30] sm:$0xff]
    %v158 = vld [vmem:[%s4 + $0x38] sm:$0xf]
    %v159 = vld [vmem:[%s4 + $0x3c] sm:$0xff]
    %v160 = vld [vmem:[%s4 + $0x44] sm:$0xf]
    %v161 = vld [vmem:[%s4 + $0x48] sm:$0xff]
    %v162 = vld [vmem:[%s4 + $0x50] sm:$0xf]
    %v163 = vld [vmem:[%s4 + $0x54] sm:$0xff]
    %v164 = vld [vmem:[%s4 + $0x5c] sm:$0xf]
    %v165 = vld [vmem:[%s4 + $0x60] sm:$0xff]
    %v166 = vld [vmem:[%s4 + $0x68] sm:$0xf]
    %v167 = vld [vmem:[%s4 + $0x6c] sm:$0xff]
    %v168 = vld [vmem:[%s4 + $0x74] sm:$0xf]
    %v169 = vld [vmem:[%s4 + $0x78] sm:$0xff]
    %v170 = vld [vmem:[%s4 + $0x80] sm:$0xf]
    %v171 = vld [vmem:[%s4 + $0x84] sm:$0xff]
    %v172 = vld [vmem:[%s4 + $0x8c] sm:$0xf]
    %v173 = vld [vmem:[%s4 + $0x90] sm:$0xff]
    %v174 = vld [vmem:[%s4 + $0x98] sm:$0xf]
    %v175 = vld [vmem:[%s4 + $0x9c] sm:$0xff]
    %v176 = vld [vmem:[%s4 + $0xa4] sm:$0xf]
    %v177 = vld [vmem:[%s4 + $0xa8] sm:$0xff]
    %v178 = vld [vmem:[%s4 + $0xb0] sm:$0xf]
    %v179 = vld [vmem:[%s4 + $0xb4] sm:$0xff]
    %v180 = vld [vmem:[%s4 + $0xbc] sm:$0xf]
    %v181 = vld [vmem:[%s5] sm:$0x7]
    %v183 = vperm.slane %v181, 0
    %v184 = vperm.slane %v181, 1
    %v185 = vperm.slane %v181, 2
    %v221 = vunpack.c.l.b16 %v149
    %v222 = vunpack.c.h.b16 %v149
    %v223 = vunpack.c.l.b16 %v150
    %v224 = vunpack.c.l.b16 %v151
    %v225 = vunpack.c.h.b16 %v151
    %v226 = vunpack.c.l.b16 %v152
    %v227 = vunpack.c.l.b16 %v153
    %v228 = vunpack.c.h.b16 %v153
    %v229 = vunpack.c.l.b16 %v154
    %v230 = vunpack.c.l.b16 %v155
    %v231 = vunpack.c.h.b16 %v155
    %v232 = vunpack.c.l.b16 %v156
    %v233 = vunpack.c.l.b16 %v157
    %v234 = vunpack.c.h.b16 %v157
    %v235 = vunpack.c.l.b16 %v158
    %v236 = vunpack.c.l.b16 %v159
    %v237 = vunpack.c.h.b16 %v159
    %v238 = vunpack.c.l.b16 %v160
    %v239 = vunpack.c.l.b16 %v161
    %v240 = vunpack.c.h.b16 %v161
    %v241 = vunpack.c.l.b16 %v162
    %v242 = vunpack.c.l.b16 %v163
    %v243 = vunpack.c.h.b16 %v163
    %v244 = vunpack.c.l.b16 %v164
    %v245 = vunpack.c.l.b16 %v165
    %v246 = vunpack.c.h.b16 %v165
    %v247 = vunpack.c.l.b16 %v166
    %v248 = vunpack.c.l.b16 %v167
    %v249 = vunpack.c.h.b16 %v167
    %v250 = vunpack.c.l.b16 %v168
    %v251 = vunpack.c.l.b16 %v169
    %v252 = vunpack.c.h.b16 %v169
    %v253 = vunpack.c.l.b16 %v170
    %v254 = vunpack.c.l.b16 %v171
    %v255 = vunpack.c.h.b16 %v171
    %v256 = vunpack.c.l.b16 %v172
    %v257 = vunpack.c.l.b16 %v173
    %v258 = vunpack.c.h.b16 %v173
    %v259 = vunpack.c.l.b16 %v174
    %v260 = vunpack.c.l.b16 %v175
    %v261 = vunpack.c.h.b16 %v175
    %v262 = vunpack.c.l.b16 %v176
    %v263 = vunpack.c.l.b16 %v177
    %v264 = vunpack.c.h.b16 %v177
    %v265 = vunpack.c.l.b16 %v178
    %v266 = vunpack.c.l.b16 %v179
    %v267 = vunpack.c.h.b16 %v179
    %v268 = vunpack.c.l.b16 %v180
    %v269 = vpack.c.b16 %v224, %v221
    %v270 = vpack.c.b16 %v225, %v222
    %v271 = vpack.c.b16 %v226, %v223
    %v272 = vpack.c.b16 %v230, %v227
    %v273 = vpack.c.b16 %v231, %v228
    %v274 = vpack.c.b16 %v232, %v229
    %v275 = vpack.c.b16 %v236, %v233
    %v276 = vpack.c.b16 %v237, %v234
    %v277 = vpack.c.b16 %v238, %v235
    %v278 = vpack.c.b16 %v242, %v239
    %v279 = vpack.c.b16 %v243, %v240
    %v280 = vpack.c.b16 %v244, %v241
    %v281 = vpack.c.b16 %v248, %v245
    %v282 = vpack.c.b16 %v249, %v246
    %v283 = vpack.c.b16 %v250, %v247
    %v284 = vpack.c.b16 %v254, %v251
    %v285 = vpack.c.b16 %v255, %v252
    %v286 = vpack.c.b16 %v256, %v253
    %v287 = vpack.c.b16 %v260, %v257
    %v288 = vpack.c.b16 %v261, %v258
    %v289 = vpack.c.b16 %v262, %v259
    %v290 = vpack.c.b16 %v266, %v263
    %v291 = vpack.c.b16 %v267, %v264
    %v292 = vpack.c.b16 %v268, %v265
    %317 = vmatpush.bf16.msra.mxu0 %v290
    %318 = vmatpush.bf16.msra.mxu0 %v287
    %319 = vmatpush.bf16.msra.mxu0 %v284
    %320 = vmatpush.bf16.msra.mxu0 %v281
    %321 = vmatpush.bf16.msra.mxu0 %v278
    %322 = vmatpush.bf16.msra.mxu0 %v275
    %323 = vmatpush.bf16.msra.mxu0 %v272
    %324 = vmatpush.bf16.msra.mxu0 %v269
    %325 = vmatmul.bf16.gmra.mxu0 %v148
    %v326 = vpop.f32.mrf.mxu0
    %v327 = vadd.f32 %v183, %v326
    %v328 = vpop.f32.mrf.mxu0
    %v329 = vadd.f32 %v183, %v328
    %330 = vdwg.mxu0
    %331 = vmatpush.bf16.msra.mxu0 %v291
    %332 = vmatpush.bf16.msra.mxu0 %v288
    %333 = vmatpush.bf16.msra.mxu0 %v285
    %334 = vmatpush.bf16.msra.mxu0 %v282
    %335 = vmatpush.bf16.msra.mxu0 %v279
    %336 = vmatpush.bf16.msra.mxu0 %v276
    %337 = vmatpush.bf16.msra.mxu0 %v273
    %338 = vmatpush.bf16.msra.mxu0 %v270
    %339 = vmatmul.bf16.gmra.mxu0 %v148
    %v340 = vpop.f32.mrf.mxu0
    %v341 = vadd.f32 %v184, %v340
    %v342 = vpop.f32.mrf.mxu0
    %v343 = vadd.f32 %v184, %v342
    %344 = vdwg.mxu0
    %345 = vmatpush.bf16.msra.mxu0 %v292
    %346 = vmatpush.bf16.msra.mxu0 %v289
    %347 = vmatpush.bf16.msra.mxu0 %v286
    %348 = vmatpush.bf16.msra.mxu0 %v283
    %349 = vmatpush.bf16.msra.mxu0 %v280
    %350 = vmatpush.bf16.msra.mxu0 %v277
    %351 = vmatpush.bf16.msra.mxu0 %v274
    %352 = vmatpush.bf16.msra.mxu0 %v271
    %353 = vmatmul.bf16.gmra.mxu0 %v148
    %v354 = vpop.f32.mrf.mxu0
    %v355 = vadd.f32 %v185, %v354
    %v356 = vpop.f32.mrf.mxu0
    %v357 = vadd.f32 %v185, %v356
    %358 = vdwg.mxu0
    %v359 = vpack.c.bf16 %v327, %v327
    %v360 = vpack.c.bf16 %v329, %v329
    %v361 = vpack.c.bf16 %v341, %v341
    %v362 = vpack.c.bf16 %v343, %v343
    %v363 = vpack.c.bf16 %v355, %v355
    %v364 = vpack.c.bf16 %v357, %v357
    %v366 = vrot.slane %v147, 1
    %v367 = vperm.slane %v147, 0
    %v368 = vperm.slane %v366, 0
    %vm371 = vcmask 261120
    %v373 = vsel %vm371, %v359, 0
    %v376 = vsel %vm371, %v361, 0
    %378 = vmatpush.bf16.xpose.msra.mxu0 0
    %379 = vmatpush.bf16.xpose.msra.mxu0 0
    %380 = vmatpush.bf16.xpose.msra.mxu0 0
    %381 = vmatpush.bf16.xpose.msra.mxu0 0
    %382 = vmatpush.bf16.xpose.msra.mxu0 0
    %383 = vmatpush.bf16.xpose.msra.mxu0 0
    %384 = vmatpush.bf16.xpose.msra.mxu0 0
    %385 = vmatpush.bf16.xpose.msra.mxu0 %v376
    %386 = vmatmul.bf16.gmra.mxu0 %v373
    %v387 = vpop.f32.mrf.mxu0
    %v388 = vadd.f32 %v367, %v387
    %v389 = vpop.f32.mrf.mxu0
    %390 = vdwg.mxu0
    %v392 = vsel %vm371, %v360, 0
    %v395 = vsel %vm371, %v362, 0
    %397 = vmatpush.bf16.xpose.msra.mxu0 0
    %398 = vmatpush.bf16.xpose.msra.mxu0 0
    %399 = vmatpush.bf16.xpose.msra.mxu0 0
    %400 = vmatpush.bf16.xpose.msra.mxu0 0
    %401 = vmatpush.bf16.xpose.msra.mxu0 0
    %402 = vmatpush.bf16.xpose.msra.mxu0 0
    %403 = vmatpush.bf16.xpose.msra.mxu0 0
    %404 = vmatpush.bf16.xpose.msra.mxu0 %v395
    %405 = vmatmul.bf16.gmra.mxu0 %v392
    %v406 = vpop.f32.mrf.mxu0
    %v407 = vadd.f32 %v368, %v406
    %v408 = vpop.f32.mrf.mxu0
    %409 = vdwg.mxu0
    %vm410 = vcmask 64512
    %v411 = vsel %vm410, %v388, -inf
    %412 = vmax.xlane.f32.xlu0 %v411
    %v413 = vpop.xlane.xlu0 %412
    %v414 = vsel %vm410, %v407, -inf
    %415 = vmax.xlane.f32.xlu0 %v414
    %v416 = vpop.xlane.xlu0 %415
    %v417 = vsub.f32 %v388, %v413
    %v418 = vsub.f32 %v407, %v416
    %v419 = vmul.f32 %v417, 1.442695
    %v420 = vpow.pop %v419
    %v421 = vmul.f32 %v418, 1.442695
    %v422 = vpow.pop %v421
    %v423 = vsel %vm410, %v420, 0.0
    %424 = vadd.xlane.f32.xlu0 %v423
    %v425 = vpop.xlane.xlu0 %424
    %v426 = vsel %vm410, %v422, 0.0
    %427 = vadd.xlane.f32.xlu0 %v426
    %v428 = vpop.xlane.xlu0 %427
    %v429 = vrcp.pop %v425
    %v430 = vmul.f32 %v425, %v429
    %v431 = vsub.f32 1.0, %v430
    %v432 = vmul.f32 %v429, %v431
    %v433 = vadd.f32 %v429, %v432
    %vm434 = vweird.f32 %v425
    %vm435 = vweird.f32 %v429
    %vm436 = vmor %vm434, %vm435
    %v437 = vsel %vm436, %v429, %v433
    %v438 = vand.u32 2147483647, %v425
    %vm439 = vcmp.eq.f32.partialorder %v438, 8.507059e+37
    %v440 = vand.u32 %v425, 2147483648
    %v441 = vor.u32 1.1754944e-38, %v440
    %v442 = vsel %vm439, %v441, %v437
    %v443 = vmul.f32 %v420, %v442
    %v444 = vrcp.pop %v428
    %v445 = vmul.f32 %v428, %v444
    %v446 = vsub.f32 1.0, %v445
    %v447 = vmul.f32 %v444, %v446
    %v448 = vadd.f32 %v444, %v447
    %vm449 = vweird.f32 %v428
    %vm450 = vweird.f32 %v444
    %vm451 = vmor %vm449, %vm450
    %v452 = vsel %vm451, %v444, %v448
    %v453 = vand.u32 2147483647, %v428
    %vm454 = vcmp.eq.f32.partialorder %v453, 8.507059e+37
    %v455 = vand.u32 %v428, 2147483648
    %v456 = vor.u32 1.1754944e-38, %v455
    %v457 = vsel %vm454, %v456, %v452
    %v458 = vmul.f32 %v422, %v457
    %v459 = vpack.c.bf16 %v443, %v443
    %v460 = vpack.c.bf16 %v458, %v458
    %v462 = vsel %vm410, %v459, 0
    %vm464 = vcmask 1043456
    %v466 = vsel %vm464, %v363, 0
    %468 = vmatpush.bf16.msra.mxu0 0
    %469 = vmatpush.bf16.msra.mxu0 0
    %470 = vmatpush.bf16.msra.mxu0 0
    %471 = vmatpush.bf16.msra.mxu0 0
    %472 = vmatpush.bf16.msra.mxu0 0
    %473 = vmatpush.bf16.msra.mxu0 0
    %474 = vmatpush.bf16.msra.mxu0 0
    %475 = vmatpush.bf16.msra.mxu0 %v466
    %476 = vmatmul.bf16.gmra.mxu0 %v462
    %v477 = vpop.f32.mrf.mxu0
    %v478 = vadd.f32 0.0, %v477
    %v479 = vpop.f32.mrf.mxu0
    %480 = vdwg.mxu0
    %v482 = vsel %vm410, %v460, 0
    %v485 = vsel %vm464, %v364, 0
    %487 = vmatpush.bf16.msra.mxu0 0
    %488 = vmatpush.bf16.msra.mxu0 0
    %489 = vmatpush.bf16.msra.mxu0 0
    %490 = vmatpush.bf16.msra.mxu0 0
    %491 = vmatpush.bf16.msra.mxu0 0
    %492 = vmatpush.bf16.msra.mxu0 0
    %493 = vmatpush.bf16.msra.mxu0 0
    %494 = vmatpush.bf16.msra.mxu0 %v485
    %495 = vmatmul.bf16.gmra.mxu0 %v482
    %v496 = vpop.f32.mrf.mxu0
    %v497 = vadd.f32 0.0, %v496
    %v498 = vpop.f32.mrf.mxu0
    %499 = vdwg.mxu0
    %v500 = vpack.c.bf16 %v497, %v478
    %v501 = vld [vmem:[%s6] sm:$0xf]
    %v502 = vld [vmem:[%s6 + $0x4] sm:$0xf]
    %v503 = vld [vmem:[%s6 + $0x8] sm:$0xf]
    %v504 = vld [vmem:[%s6 + $0xc] sm:$0xf]
    %v506 = vunpack.c.l.b16 %v359
    %v507 = vpack.c.b16 %v506, %v506
    %508 = vrot.lane.b32.xlu0 %v507, 96
    %v509 = vpop.permute.xlu0 %508
    %v511 = vunpack.c.l.b16 %v361
    %v512 = vpack.c.b16 %v511, %v511
    %513 = vrot.lane.b32.xlu0 %v512, 96
    %v514 = vpop.permute.xlu0 %513
    %v516 = vsel %vm371, %v509, 0
    %v519 = vsel %vm371, %v514, 0
    %521 = vmatpush.bf16.xpose.msra.mxu0 0
    %522 = vmatpush.bf16.xpose.msra.mxu0 0
    %523 = vmatpush.bf16.xpose.msra.mxu0 0
    %524 = vmatpush.bf16.xpose.msra.mxu0 0
    %525 = vmatpush.bf16.xpose.msra.mxu0 0
    %526 = vmatpush.bf16.xpose.msra.mxu0 0
    %527 = vmatpush.bf16.xpose.msra.mxu0 0
    %528 = vmatpush.bf16.xpose.msra.mxu0 %v519
    %529 = vmatmul.bf16.gmra.mxu0 %v516
    %v530 = vpop.f32.mrf.mxu0
    %v531 = vadd.f32 %v367, %v530
    %v532 = vpop.f32.mrf.mxu0
    %533 = vdwg.mxu0
    %v535 = vunpack.c.l.b16 %v360
    %v536 = vpack.c.b16 %v535, %v535
    %537 = vrot.lane.b32.xlu0 %v536, 96
    %v538 = vpop.permute.xlu0 %537
    %v540 = vunpack.c.l.b16 %v362
    %v541 = vpack.c.b16 %v540, %v540
    %542 = vrot.lane.b32.xlu0 %v541, 96
    %v543 = vpop.permute.xlu0 %542
    %v545 = vsel %vm371, %v538, 0
    %v548 = vsel %vm371, %v543, 0
    %550 = vmatpush.bf16.xpose.msra.mxu0 0
    %551 = vmatpush.bf16.xpose.msra.mxu0 0
    %552 = vmatpush.bf16.xpose.msra.mxu0 0
    %553 = vmatpush.bf16.xpose.msra.mxu0 0
    %554 = vmatpush.bf16.xpose.msra.mxu0 0
    %555 = vmatpush.bf16.xpose.msra.mxu0 0
    %556 = vmatpush.bf16.xpose.msra.mxu0 0
    %557 = vmatpush.bf16.xpose.msra.mxu0 %v548
    %558 = vmatmul.bf16.gmra.mxu0 %v545
    %v559 = vpop.f32.mrf.mxu0
    %v560 = vadd.f32 %v368, %v559
    %v561 = vpop.f32.mrf.mxu0
    %562 = vdwg.mxu0
    %v563 = vsel %vm410, %v531, -inf
    %564 = vmax.xlane.f32.xlu0 %v563
    %v565 = vpop.xlane.xlu0 %564
    %v566 = vsel %vm410, %v560, -inf
    %567 = vmax.xlane.f32.xlu0 %v566
    %v568 = vpop.xlane.xlu0 %567
    %v569 = vsub.f32 %v531, %v565
    %v570 = vsub.f32 %v560, %v568
    %v571 = vmul.f32 %v569, 1.442695
    %v572 = vpow.pop %v571
    %v573 = vmul.f32 %v570, 1.442695
    %v574 = vpow.pop %v573
    %v575 = vsel %vm410, %v572, 0.0
    %576 = vadd.xlane.f32.xlu0 %v575
    %v577 = vpop.xlane.xlu0 %576
    %v578 = vsel %vm410, %v574, 0.0
    %579 = vadd.xlane.f32.xlu0 %v578
    %v580 = vpop.xlane.xlu0 %579
    %v581 = vrcp.pop %v577
    %v582 = vmul.f32 %v577, %v581
    %v583 = vsub.f32 1.0, %v582
    %v584 = vmul.f32 %v581, %v583
    %v585 = vadd.f32 %v581, %v584
    %vm586 = vweird.f32 %v577
    %vm587 = vweird.f32 %v581
    %vm588 = vmor %vm586, %vm587
    %v589 = vsel %vm588, %v581, %v585
    %v590 = vand.u32 2147483647, %v577
    %vm591 = vcmp.eq.f32.partialorder %v590, 8.507059e+37
    %v592 = vand.u32 %v577, 2147483648
    %v593 = vor.u32 1.1754944e-38, %v592
    %v594 = vsel %vm591, %v593, %v589
    %v595 = vmul.f32 %v572, %v594
    %v596 = vrcp.pop %v580
    %v597 = vmul.f32 %v580, %v596
    %v598 = vsub.f32 1.0, %v597
    %v599 = vmul.f32 %v596, %v598
    %v600 = vadd.f32 %v596, %v599
    %vm601 = vweird.f32 %v580
    %vm602 = vweird.f32 %v596
    %vm603 = vmor %vm601, %vm602
    %v604 = vsel %vm603, %v596, %v600
    %v605 = vand.u32 2147483647, %v580
    %vm606 = vcmp.eq.f32.partialorder %v605, 8.507059e+37
    %v607 = vand.u32 %v580, 2147483648
    %v608 = vor.u32 1.1754944e-38, %v607
    %v609 = vsel %vm606, %v608, %v604
    %v610 = vmul.f32 %v574, %v609
    %v611 = vpack.c.bf16 %v595, %v595
    %v612 = vpack.c.bf16 %v610, %v610
    %v614 = vunpack.c.l.b16 %v363
    %v615 = vpack.c.b16 %v614, %v614
    %616 = vrot.lane.b32.xlu0 %v615, 96
    %v617 = vpop.permute.xlu0 %616
    %v619 = vsel %vm410, %v611, 0
    %v622 = vsel %vm464, %v617, 0
    %624 = vmatpush.bf16.msra.mxu0 0
    %625 = vmatpush.bf16.msra.mxu0 0
    %626 = vmatpush.bf16.msra.mxu0 0
    %627 = vmatpush.bf16.msra.mxu0 0
    %628 = vmatpush.bf16.msra.mxu0 0
    %629 = vmatpush.bf16.msra.mxu0 0
    %630 = vmatpush.bf16.msra.mxu0 0
    %631 = vmatpush.bf16.msra.mxu0 %v622
    %632 = vmatmul.bf16.gmra.mxu0 %v619
    %v633 = vpop.f32.mrf.mxu0
    %v634 = vadd.f32 0.0, %v633
    %v635 = vpop.f32.mrf.mxu0
    %636 = vdwg.mxu0
    %v638 = vunpack.c.l.b16 %v364
    %v639 = vpack.c.b16 %v638, %v638
    %640 = vrot.lane.b32.xlu0 %v639, 96
    %v641 = vpop.permute.xlu0 %640
    %v643 = vsel %vm410, %v612, 0
    %v646 = vsel %vm464, %v641, 0
    %648 = vmatpush.bf16.msra.mxu0 0
    %649 = vmatpush.bf16.msra.mxu0 0
    %650 = vmatpush.bf16.msra.mxu0 0
    %651 = vmatpush.bf16.msra.mxu0 0
    %652 = vmatpush.bf16.msra.mxu0 0
    %653 = vmatpush.bf16.msra.mxu0 0
    %654 = vmatpush.bf16.msra.mxu0 0
    %655 = vmatpush.bf16.msra.mxu0 %v646
    %656 = vmatmul.bf16.gmra.mxu0 %v643
    %v657 = vpop.f32.mrf.mxu0
    %v658 = vadd.f32 0.0, %v657
    %v659 = vpop.f32.mrf.mxu0
    %660 = vdwg.mxu0
    %v661 = vpack.c.bf16 %v658, %v634
    %v662 = vld [vmem:[%s6 + $0x10] sm:$0xf]
    %v663 = vld [vmem:[%s6 + $0x14] sm:$0xf]
    %v664 = vld [vmem:[%s6 + $0x18] sm:$0xf]
    %v665 = vld [vmem:[%s6 + $0x1c] sm:$0xf]
    %v670 = vunpack.c.l.b16 %v662
    %v671 = vunpack.c.l.b16 %v663
    %v672 = vunpack.c.l.b16 %v664
    %v673 = vunpack.c.l.b16 %v665
    %v674 = vpack.c.b16 %v671, %v670
    %v675 = vpack.c.b16 %v673, %v672
    %v679 = vsel %vm371, %v661, 0
    %681 = vmatpush.bf16.msra.mxu0 0
    %682 = vmatpush.bf16.msra.mxu0 0
    %683 = vmatpush.bf16.msra.mxu0 0
    %684 = vmatpush.bf16.msra.mxu0 0
    %685 = vmatpush.bf16.msra.mxu0 0
    %686 = vmatpush.bf16.msra.mxu0 0
    %687 = vmatpush.bf16.msra.mxu0 %v675
    %688 = vmatpush.bf16.msra.mxu0 %v674
    %689 = vmatmul.bf16.gmra.mxu0 %v679
    %v690 = vpop.f32.mrf.mxu0
    %v691 = vadd.f32 0.0, %v690
    %v692 = vpop.f32.mrf.mxu0
    %v693 = vadd.f32 0.0, %v692
    %694 = vdwg.mxu0
    %v699 = vunpack.c.l.b16 %v501
    %v700 = vunpack.c.l.b16 %v502
    %v701 = vunpack.c.l.b16 %v503
    %v702 = vunpack.c.l.b16 %v504
    %v703 = vpack.c.b16 %v700, %v699
    %v704 = vpack.c.b16 %v702, %v701
    %v708 = vsel %vm371, %v500, 0
    %710 = vmatpush.bf16.msra.mxu0 0
    %711 = vmatpush.bf16.msra.mxu0 0
    %712 = vmatpush.bf16.msra.mxu0 0
    %713 = vmatpush.bf16.msra.mxu0 0
    %714 = vmatpush.bf16.msra.mxu0 0
    %715 = vmatpush.bf16.msra.mxu0 0
    %716 = vmatpush.bf16.msra.mxu0 %v704
    %717 = vmatpush.bf16.msra.mxu0 %v703
    %718 = vmatmul.bf16.gmra.mxu0 %v708
    %v719 = vpop.f32.mrf.mxu0
    %v720 = vadd.f32 %v691, %v719
    %v721 = vpop.f32.mrf.mxu0
    %v722 = vadd.f32 %v693, %v721
    %723 = vdwg.mxu0
    %724 = vrot.lane.b32.xlu0 %v507, 64
    %v725 = vpop.permute.xlu0 %724
    %726 = vrot.lane.b32.xlu0 %v512, 64
    %v727 = vpop.permute.xlu0 %726
    %v729 = vsel %vm371, %v725, 0
    %v732 = vsel %vm371, %v727, 0
    %734 = vmatpush.bf16.xpose.msra.mxu0 0
    %735 = vmatpush.bf16.xpose.msra.mxu0 0
    %736 = vmatpush.bf16.xpose.msra.mxu0 0
    %737 = vmatpush.bf16.xpose.msra.mxu0 0
    %738 = vmatpush.bf16.xpose.msra.mxu0 0
    %739 = vmatpush.bf16.xpose.msra.mxu0 0
    %740 = vmatpush.bf16.xpose.msra.mxu0 0
    %741 = vmatpush.bf16.xpose.msra.mxu0 %v732
    %742 = vmatmul.bf16.gmra.mxu0 %v729
    %v743 = vpop.f32.mrf.mxu0
    %v744 = vadd.f32 %v367, %v743
    %v745 = vpop.f32.mrf.mxu0
    %746 = vdwg.mxu0
    %747 = vrot.lane.b32.xlu0 %v536, 64
    %v748 = vpop.permute.xlu0 %747
    %749 = vrot.lane.b32.xlu0 %v541, 64
    %v750 = vpop.permute.xlu0 %749
    %v752 = vsel %vm371, %v748, 0
    %v755 = vsel %vm371, %v750, 0
    %757 = vmatpush.bf16.xpose.msra.mxu0 0
    %758 = vmatpush.bf16.xpose.msra.mxu0 0
    %759 = vmatpush.bf16.xpose.msra.mxu0 0
    %760 = vmatpush.bf16.xpose.msra.mxu0 0
    %761 = vmatpush.bf16.xpose.msra.mxu0 0
    %762 = vmatpush.bf16.xpose.msra.mxu0 0
    %763 = vmatpush.bf16.xpose.msra.mxu0 0
    %764 = vmatpush.bf16.xpose.msra.mxu0 %v755
    %765 = vmatmul.bf16.gmra.mxu0 %v752
    %v766 = vpop.f32.mrf.mxu0
    %v767 = vadd.f32 %v368, %v766
    %v768 = vpop.f32.mrf.mxu0
    %769 = vdwg.mxu0
    %v770 = vsel %vm410, %v744, -inf
    %771 = vmax.xlane.f32.xlu0 %v770
    %v772 = vpop.xlane.xlu0 %771
    %v773 = vsel %vm410, %v767, -inf
    %774 = vmax.xlane.f32.xlu0 %v773
    %v775 = vpop.xlane.xlu0 %774
    %v776 = vsub.f32 %v744, %v772
    %v777 = vsub.f32 %v767, %v775
    %v778 = vmul.f32 %v776, 1.442695
    %v779 = vpow.pop %v778
    %v780 = vmul.f32 %v777, 1.442695
    %v781 = vpow.pop %v780
    %v782 = vsel %vm410, %v779, 0.0
    %783 = vadd.xlane.f32.xlu0 %v782
    %v784 = vpop.xlane.xlu0 %783
    %v785 = vsel %vm410, %v781, 0.0
    %786 = vadd.xlane.f32.xlu0 %v785
    %v787 = vpop.xlane.xlu0 %786
    %v788 = vrcp.pop %v784
    %v789 = vmul.f32 %v784, %v788
    %v790 = vsub.f32 1.0, %v789
    %v791 = vmul.f32 %v788, %v790
    %v792 = vadd.f32 %v788, %v791
    %vm793 = vweird.f32 %v784
    %vm794 = vweird.f32 %v788
    %vm795 = vmor %vm793, %vm794
    %v796 = vsel %vm795, %v788, %v792
    %v797 = vand.u32 2147483647, %v784
    %vm798 = vcmp.eq.f32.partialorder %v797, 8.507059e+37
    %v799 = vand.u32 %v784, 2147483648
    %v800 = vor.u32 1.1754944e-38, %v799
    %v801 = vsel %vm798, %v800, %v796
    %v802 = vmul.f32 %v779, %v801
    %v803 = vrcp.pop %v787
    %v804 = vmul.f32 %v787, %v803
    %v805 = vsub.f32 1.0, %v804
    %v806 = vmul.f32 %v803, %v805
    %v807 = vadd.f32 %v803, %v806
    %vm808 = vweird.f32 %v787
    %vm809 = vweird.f32 %v803
    %vm810 = vmor %vm808, %vm809
    %v811 = vsel %vm810, %v803, %v807
    %v812 = vand.u32 2147483647, %v787
    %vm813 = vcmp.eq.f32.partialorder %v812, 8.507059e+37
    %v814 = vand.u32 %v787, 2147483648
    %v815 = vor.u32 1.1754944e-38, %v814
    %v816 = vsel %vm813, %v815, %v811
    %v817 = vmul.f32 %v781, %v816
    %v818 = vpack.c.bf16 %v802, %v802
    %v819 = vpack.c.bf16 %v817, %v817
    %820 = vrot.lane.b32.xlu0 %v615, 64
    %v821 = vpop.permute.xlu0 %820
    %v823 = vsel %vm410, %v818, 0
    %v826 = vsel %vm464, %v821, 0
    %828 = vmatpush.bf16.msra.mxu0 0
    %829 = vmatpush.bf16.msra.mxu0 0
    %830 = vmatpush.bf16.msra.mxu0 0
    %831 = vmatpush.bf16.msra.mxu0 0
    %832 = vmatpush.bf16.msra.mxu0 0
    %833 = vmatpush.bf16.msra.mxu0 0
    %834 = vmatpush.bf16.msra.mxu0 0
    %835 = vmatpush.bf16.msra.mxu0 %v826
    %836 = vmatmul.bf16.gmra.mxu0 %v823
    %v837 = vpop.f32.mrf.mxu0
    %v838 = vadd.f32 0.0, %v837
    %v839 = vpop.f32.mrf.mxu0
    %840 = vdwg.mxu0
    %841 = vrot.lane.b32.xlu0 %v639, 64
    %v842 = vpop.permute.xlu0 %841
    %v844 = vsel %vm410, %v819, 0
    %v847 = vsel %vm464, %v842, 0
    %849 = vmatpush.bf16.msra.mxu0 0
    %850 = vmatpush.bf16.msra.mxu0 0
    %851 = vmatpush.bf16.msra.mxu0 0
    %852 = vmatpush.bf16.msra.mxu0 0
    %853 = vmatpush.bf16.msra.mxu0 0
    %854 = vmatpush.bf16.msra.mxu0 0
    %855 = vmatpush.bf16.msra.mxu0 0
    %856 = vmatpush.bf16.msra.mxu0 %v847
    %857 = vmatmul.bf16.gmra.mxu0 %v844
    %v858 = vpop.f32.mrf.mxu0
    %v859 = vadd.f32 0.0, %v858
    %v860 = vpop.f32.mrf.mxu0
    %861 = vdwg.mxu0
    %v862 = vpack.c.bf16 %v859, %v838
    %v863 = vld [vmem:[%s6 + $0x20] sm:$0xf]
    %v864 = vld [vmem:[%s6 + $0x24] sm:$0xf]
    %v865 = vld [vmem:[%s6 + $0x28] sm:$0xf]
    %v866 = vld [vmem:[%s6 + $0x2c] sm:$0xf]
    %v871 = vunpack.c.l.b16 %v863
    %v872 = vunpack.c.l.b16 %v864
    %v873 = vunpack.c.l.b16 %v865
    %v874 = vunpack.c.l.b16 %v866
    %v875 = vpack.c.b16 %v872, %v871
    %v876 = vpack.c.b16 %v874, %v873
    %v880 = vsel %vm371, %v862, 0
    %882 = vmatpush.bf16.msra.mxu0 0
    %883 = vmatpush.bf16.msra.mxu0 0
    %884 = vmatpush.bf16.msra.mxu0 0
    %885 = vmatpush.bf16.msra.mxu0 0
    %886 = vmatpush.bf16.msra.mxu0 0
    %887 = vmatpush.bf16.msra.mxu0 0
    %888 = vmatpush.bf16.msra.mxu0 %v876
    %889 = vmatpush.bf16.msra.mxu0 %v875
    %890 = vmatmul.bf16.gmra.mxu0 %v880
    %v891 = vpop.f32.mrf.mxu0
    %v892 = vadd.f32 0.0, %v891
    %v893 = vpop.f32.mrf.mxu0
    %v894 = vadd.f32 0.0, %v893
    %895 = vdwg.mxu0
    %v896 = vadd.f32 %v720, %v892
    %v897 = vadd.f32 %v722, %v894
    %898 = vrot.lane.b32.xlu0 %v507, 32
    %v899 = vpop.permute.xlu0 %898
    %900 = vrot.lane.b32.xlu0 %v512, 32
    %v901 = vpop.permute.xlu0 %900
    %v903 = vsel %vm371, %v899, 0
    %v906 = vsel %vm371, %v901, 0
    %908 = vmatpush.bf16.xpose.msra.mxu0 0
    %909 = vmatpush.bf16.xpose.msra.mxu0 0
    %910 = vmatpush.bf16.xpose.msra.mxu0 0
    %911 = vmatpush.bf16.xpose.msra.mxu0 0
    %912 = vmatpush.bf16.xpose.msra.mxu0 0
    %913 = vmatpush.bf16.xpose.msra.mxu0 0
    %914 = vmatpush.bf16.xpose.msra.mxu0 0
    %915 = vmatpush.bf16.xpose.msra.mxu0 %v906
    %916 = vmatmul.bf16.gmra.mxu0 %v903
    %v917 = vpop.f32.mrf.mxu0
    %v918 = vadd.f32 %v367, %v917
    %v919 = vpop.f32.mrf.mxu0
    %920 = vdwg.mxu0
    %921 = vrot.lane.b32.xlu0 %v536, 32
    %v922 = vpop.permute.xlu0 %921
    %923 = vrot.lane.b32.xlu0 %v541, 32
    %v924 = vpop.permute.xlu0 %923
    %v926 = vsel %vm371, %v922, 0
    %v929 = vsel %vm371, %v924, 0
    %931 = vmatpush.bf16.xpose.msra.mxu0 0
    %932 = vmatpush.bf16.xpose.msra.mxu0 0
    %933 = vmatpush.bf16.xpose.msra.mxu0 0
    %934 = vmatpush.bf16.xpose.msra.mxu0 0
    %935 = vmatpush.bf16.xpose.msra.mxu0 0
    %936 = vmatpush.bf16.xpose.msra.mxu0 0
    %937 = vmatpush.bf16.xpose.msra.mxu0 0
    %938 = vmatpush.bf16.xpose.msra.mxu0 %v929
    %939 = vmatmul.bf16.gmra.mxu0 %v926
    %v940 = vpop.f32.mrf.mxu0
    %v941 = vadd.f32 %v368, %v940
    %v942 = vpop.f32.mrf.mxu0
    %943 = vdwg.mxu0
    %v944 = vsel %vm410, %v918, -inf
    %945 = vmax.xlane.f32.xlu0 %v944
    %v946 = vpop.xlane.xlu0 %945
    %v947 = vsel %vm410, %v941, -inf
    %948 = vmax.xlane.f32.xlu0 %v947
    %v949 = vpop.xlane.xlu0 %948
    %v950 = vsub.f32 %v918, %v946
    %v951 = vsub.f32 %v941, %v949
    %v952 = vmul.f32 %v950, 1.442695
    %v953 = vpow.pop %v952
    %v954 = vmul.f32 %v951, 1.442695
    %v955 = vpow.pop %v954
    %v956 = vsel %vm410, %v953, 0.0
    %957 = vadd.xlane.f32.xlu0 %v956
    %v958 = vpop.xlane.xlu0 %957
    %v959 = vsel %vm410, %v955, 0.0
    %960 = vadd.xlane.f32.xlu0 %v959
    %v961 = vpop.xlane.xlu0 %960
    %v962 = vrcp.pop %v958
    %v963 = vmul.f32 %v958, %v962
    %v964 = vsub.f32 1.0, %v963
    %v965 = vmul.f32 %v962, %v964
    %v966 = vadd.f32 %v962, %v965
    %vm967 = vweird.f32 %v958
    %vm968 = vweird.f32 %v962
    %vm969 = vmor %vm967, %vm968
    %v970 = vsel %vm969, %v962, %v966
    %v971 = vand.u32 2147483647, %v958
    %vm972 = vcmp.eq.f32.partialorder %v971, 8.507059e+37
    %v973 = vand.u32 %v958, 2147483648
    %v974 = vor.u32 1.1754944e-38, %v973
    %v975 = vsel %vm972, %v974, %v970
    %v976 = vmul.f32 %v953, %v975
    %v977 = vrcp.pop %v961
    %v978 = vmul.f32 %v961, %v977
    %v979 = vsub.f32 1.0, %v978
    %v980 = vmul.f32 %v977, %v979
    %v981 = vadd.f32 %v977, %v980
    %vm982 = vweird.f32 %v961
    %vm983 = vweird.f32 %v977
    %vm984 = vmor %vm982, %vm983
    %v985 = vsel %vm984, %v977, %v981
    %v986 = vand.u32 2147483647, %v961
    %vm987 = vcmp.eq.f32.partialorder %v986, 8.507059e+37
    %v988 = vand.u32 %v961, 2147483648
    %v989 = vor.u32 1.1754944e-38, %v988
    %v990 = vsel %vm987, %v989, %v985
    %v991 = vmul.f32 %v955, %v990
    %v992 = vpack.c.bf16 %v976, %v976
    %v993 = vpack.c.bf16 %v991, %v991
    %994 = vrot.lane.b32.xlu0 %v615, 32
    %v995 = vpop.permute.xlu0 %994
    %v997 = vsel %vm410, %v992, 0
    %v1000 = vsel %vm464, %v995, 0
    %1002 = vmatpush.bf16.msra.mxu0 0
    %1003 = vmatpush.bf16.msra.mxu0 0
    %1004 = vmatpush.bf16.msra.mxu0 0
    %1005 = vmatpush.bf16.msra.mxu0 0
    %1006 = vmatpush.bf16.msra.mxu0 0
    %1007 = vmatpush.bf16.msra.mxu0 0
    %1008 = vmatpush.bf16.msra.mxu0 0
    %1009 = vmatpush.bf16.msra.mxu0 %v1000
    %1010 = vmatmul.bf16.gmra.mxu0 %v997
    %v1011 = vpop.f32.mrf.mxu0
    %v1012 = vadd.f32 0.0, %v1011
    %v1013 = vpop.f32.mrf.mxu0
    %1014 = vdwg.mxu0
    %1015 = vrot.lane.b32.xlu0 %v639, 32
    %v1016 = vpop.permute.xlu0 %1015
    %v1018 = vsel %vm410, %v993, 0
    %v1021 = vsel %vm464, %v1016, 0
    %1023 = vmatpush.bf16.msra.mxu0 0
    %1024 = vmatpush.bf16.msra.mxu0 0
    %1025 = vmatpush.bf16.msra.mxu0 0
    %1026 = vmatpush.bf16.msra.mxu0 0
    %1027 = vmatpush.bf16.msra.mxu0 0
    %1028 = vmatpush.bf16.msra.mxu0 0
    %1029 = vmatpush.bf16.msra.mxu0 0
    %1030 = vmatpush.bf16.msra.mxu0 %v1021
    %1031 = vmatmul.bf16.gmra.mxu0 %v1018
    %v1032 = vpop.f32.mrf.mxu0
    %v1033 = vadd.f32 0.0, %v1032
    %v1034 = vpop.f32.mrf.mxu0
    %1035 = vdwg.mxu0
    %v1036 = vpack.c.bf16 %v1033, %v1012
    %v1037 = vld [vmem:[%s6 + $0x30] sm:$0xf]
    %v1038 = vld [vmem:[%s6 + $0x34] sm:$0xf]
    %v1039 = vld [vmem:[%s6 + $0x38] sm:$0xf]
    %v1040 = vld [vmem:[%s6 + $0x3c] sm:$0xf]
    %v1045 = vunpack.c.l.b16 %v1037
    %v1046 = vunpack.c.l.b16 %v1038
    %v1047 = vunpack.c.l.b16 %v1039
    %v1048 = vunpack.c.l.b16 %v1040
    %v1049 = vpack.c.b16 %v1046, %v1045
    %v1050 = vpack.c.b16 %v1048, %v1047
    %v1054 = vsel %vm371, %v1036, 0
    %1056 = vmatpush.bf16.msra.mxu0 0
    %1057 = vmatpush.bf16.msra.mxu0 0
    %1058 = vmatpush.bf16.msra.mxu0 0
    %1059 = vmatpush.bf16.msra.mxu0 0
    %1060 = vmatpush.bf16.msra.mxu0 0
    %1061 = vmatpush.bf16.msra.mxu0 0
    %1062 = vmatpush.bf16.msra.mxu0 %v1050
    %1063 = vmatpush.bf16.msra.mxu0 %v1049
    %1064 = vmatmul.bf16.gmra.mxu0 %v1054
    %v1065 = vpop.f32.mrf.mxu0
    %v1066 = vadd.f32 0.0, %v1065
    %v1067 = vpop.f32.mrf.mxu0
    %v1068 = vadd.f32 0.0, %v1067
    %1069 = vdwg.mxu0
    %v1070 = vadd.f32 %v896, %v1066
    %v1071 = vadd.f32 %v897, %v1068
    %v1072 = vld [vmem:[%s7] sm:$0x1]
    %v1074 = vperm.slane %v1072, 0
    %v1076 = vadd.f32 %v1070, %v1074
    %v1077 = vadd.f32 %v1071, %v1074
    %v1078 = vadd.f32 %v1076, %v145
    %v1079 = vadd.f32 %v1077, %v146
    %v1080 = vld [vmem:[%s8] sm:$0x1]
    %v1081 = vld [vmem:[%s9] sm:$0x1]
    %1082 = vadd.xlane.f32.xlu0 %v1078
    %v1083 = vpop.xlane.xlu0 %1082
    %1084 = vadd.xlane.f32.xlu0 %v1079
    %v1085 = vpop.xlane.xlu0 %1084
    %v1086 = vmul.f32 %v1083, %v100
    %v1087 = vmul.f32 %v1085, %v100
    %v1088 = vsub.f32 %v1078, %v1086
    %v1089 = vsub.f32 %v1079, %v1087
    %v1090 = vmul.f32 %v1088, %v1088
    %v1091 = vmul.f32 %v1089, %v1089
    %1092 = vadd.xlane.f32.xlu0 %v1090
    %v1093 = vpop.xlane.xlu0 %1092
    %1094 = vadd.xlane.f32.xlu0 %v1091
    %v1095 = vpop.xlane.xlu0 %1094
    %v1096 = vmul.f32 %v1093, %v100
    %v1097 = vmul.f32 %v1095, %v100
    %v1098 = vadd.f32 %v1096, 1e-07
    %v1099 = vadd.f32 %v1097, 1e-07
    %v1100 = vrsqrt.pop %v1098
    %v1101 = vmul.f32 %v1100, %v1098
    %v1102 = vmul.f32 %v1101, %v1100
    %v1103 = vmul.f32 0.5, %v1102
    %v1104 = vsub.f32 1.5, %v1103
    %v1105 = vmul.f32 %v1100, %v1104
    %vm1106 = vweird.f32 %v1098
    %vm1107 = vweird.f32 %v1100
    %vm1108 = vmor %vm1106, %vm1107
    %v1109 = vsel %vm1108, %v1100, %v1105
    %v1110 = vrsqrt.pop %v1099
    %v1111 = vmul.f32 %v1110, %v1099
    %v1112 = vmul.f32 %v1111, %v1110
    %v1113 = vmul.f32 0.5, %v1112
    %v1114 = vsub.f32 1.5, %v1113
    %v1115 = vmul.f32 %v1110, %v1114
    %vm1116 = vweird.f32 %v1099
    %vm1117 = vweird.f32 %v1110
    %vm1118 = vmor %vm1116, %vm1117
    %v1119 = vsel %vm1118, %v1110, %v1115
    %v1120 = vmul.f32 %v1088, %v1109
    %v1121 = vmul.f32 %v1089, %v1119
    %v1123 = vperm.slane %v1080, 0
    %v1125 = vmul.f32 %v1120, %v1123
    %v1126 = vmul.f32 %v1121, %v1123
    %v1128 = vperm.slane %v1081, 0
    %v1130 = vadd.f32 %v1125, %v1128
    %v1131 = vadd.f32 %v1126, %v1128
    %v1132 = vpack.c.bf16 %v1131, %v1130
    %v1133 = vld [vmem:[#allocation2] sm:$0xff]
    %v1134 = vld [vmem:[#allocation2 + $0x8] sm:$0xff]
    %v1135 = vld [vmem:[#allocation2 + $0x10] sm:$0xff]
    %v1136 = vld [vmem:[#allocation2 + $0x18] sm:$0xff]
    %v1137 = vld [vmem:[#allocation2 + $0x20] sm:$0xff]
    %v1138 = vld [vmem:[#allocation2 + $0x28] sm:$0xff]
    %v1139 = vld [vmem:[#allocation2 + $0x30] sm:$0xff]
    %v1140 = vld [vmem:[#allocation2 + $0x38] sm:$0xff]
    %v1141 = vld [vmem:[#allocation2 + $0x40] sm:$0xff]
    %v1142 = vld [vmem:[#allocation2 + $0x48] sm:$0xff]
    %v1143 = vld [vmem:[#allocation2 + $0x50] sm:$0xff]
    %v1144 = vld [vmem:[#allocation2 + $0x58] sm:$0xff]
    %v1145 = vld [vmem:[#allocation2 + $0x60] sm:$0xff]
    %v1146 = vld [vmem:[#allocation2 + $0x68] sm:$0xff]
    %v1147 = vld [vmem:[#allocation2 + $0x70] sm:$0xff]
    %v1148 = vld [vmem:[#allocation2 + $0x78] sm:$0xff]
    %v1149 = vld [vmem:[%s11] sm:$0x3]
    %v1151 = vperm.slane %v1149, 0
    %v1152 = vperm.slane %v1149, 1
    %v1171 = vunpack.c.l.b16 %v1133
    %v1172 = vunpack.c.h.b16 %v1133
    %v1173 = vunpack.c.l.b16 %v1134
    %v1174 = vunpack.c.h.b16 %v1134
    %v1175 = vunpack.c.l.b16 %v1135
    %v1176 = vunpack.c.h.b16 %v1135
    %v1177 = vunpack.c.l.b16 %v1136
    %v1178 = vunpack.c.h.b16 %v1136
    %v1179 = vunpack.c.l.b16 %v1137
    %v1180 = vunpack.c.h.b16 %v1137
    %v1181 = vunpack.c.l.b16 %v1138
    %v1182 = vunpack.c.h.b16 %v1138
    %v1183 = vunpack.c.l.b16 %v1139
    %v1184 = vunpack.c.h.b16 %v1139
    %v1185 = vunpack.c.l.b16 %v1140
    %v1186 = vunpack.c.h.b16 %v1140
    %v1187 = vunpack.c.l.b16 %v1141
    %v1188 = vunpack.c.h.b16 %v1141
    %v1189 = vunpack.c.l.b16 %v1142
    %v1190 = vunpack.c.h.b16 %v1142
    %v1191 = vunpack.c.l.b16 %v1143
    %v1192 = vunpack.c.h.b16 %v1143
    %v1193 = vunpack.c.l.b16 %v1144
    %v1194 = vunpack.c.h.b16 %v1144
    %v1195 = vunpack.c.l.b16 %v1145
    %v1196 = vunpack.c.h.b16 %v1145
    %v1197 = vunpack.c.l.b16 %v1146
    %v1198 = vunpack.c.h.b16 %v1146
    %v1199 = vunpack.c.l.b16 %v1147
    %v1200 = vunpack.c.h.b16 %v1147
    %v1201 = vunpack.c.l.b16 %v1148
    %v1202 = vunpack.c.h.b16 %v1148
    %v1203 = vpack.c.b16 %v1173, %v1171
    %v1204 = vpack.c.b16 %v1174, %v1172
    %v1205 = vpack.c.b16 %v1177, %v1175
    %v1206 = vpack.c.b16 %v1178, %v1176
    %v1207 = vpack.c.b16 %v1181, %v1179
    %v1208 = vpack.c.b16 %v1182, %v1180
    %v1209 = vpack.c.b16 %v1185, %v1183
    %v1210 = vpack.c.b16 %v1186, %v1184
    %v1211 = vpack.c.b16 %v1189, %v1187
    %v1212 = vpack.c.b16 %v1190, %v1188
    %v1213 = vpack.c.b16 %v1193, %v1191
    %v1214 = vpack.c.b16 %v1194, %v1192
    %v1215 = vpack.c.b16 %v1197, %v1195
    %v1216 = vpack.c.b16 %v1198, %v1196
    %v1217 = vpack.c.b16 %v1201, %v1199
    %v1218 = vpack.c.b16 %v1202, %v1200
    %1235 = vmatpush.bf16.msra.mxu0 %v1217
    %1236 = vmatpush.bf16.msra.mxu0 %v1215
    %1237 = vmatpush.bf16.msra.mxu0 %v1213
    %1238 = vmatpush.bf16.msra.mxu0 %v1211
    %1239 = vmatpush.bf16.msra.mxu0 %v1209
    %1240 = vmatpush.bf16.msra.mxu0 %v1207
    %1241 = vmatpush.bf16.msra.mxu0 %v1205
    %1242 = vmatpush.bf16.msra.mxu0 %v1203
    %1243 = vmatmul.bf16.gmra.mxu0 %v1132
    %v1244 = vpop.f32.mrf.mxu0
    %v1245 = vadd.f32 %v1151, %v1244
    %v1246 = vpop.f32.mrf.mxu0
    %v1247 = vadd.f32 %v1151, %v1246
    %1248 = vdwg.mxu0
    %1249 = vmatpush.bf16.msra.mxu0 %v1218
    %1250 = vmatpush.bf16.msra.mxu0 %v1216
    %1251 = vmatpush.bf16.msra.mxu0 %v1214
    %1252 = vmatpush.bf16.msra.mxu0 %v1212
    %1253 = vmatpush.bf16.msra.mxu0 %v1210
    %1254 = vmatpush.bf16.msra.mxu0 %v1208
    %1255 = vmatpush.bf16.msra.mxu0 %v1206
    %1256 = vmatpush.bf16.msra.mxu0 %v1204
    %1257 = vmatmul.bf16.gmra.mxu0 %v1132
    %v1258 = vpop.f32.mrf.mxu0
    %v1259 = vadd.f32 %v1152, %v1258
    %v1260 = vpop.f32.mrf.mxu0
    %v1261 = vadd.f32 %v1152, %v1260
    %1262 = vdwg.mxu0
    %v1263 = vmul.f32 %v1245, 0.5
    %v1264 = vmul.f32 %v1259, 0.5
    %v1265 = vmul.f32 %v1247, 0.5
    %v1266 = vmul.f32 %v1261, 0.5
    %v1267 = vmul.f32 %v1245, 0.044715
    %v1268 = vmul.f32 %v1259, 0.044715
    %v1269 = vmul.f32 %v1247, 0.044715
    %v1270 = vmul.f32 %v1261, 0.044715
    %v1271 = vmul.f32 %v1267, %v1245
    %v1272 = vmul.f32 %v1268, %v1259
    %v1273 = vmul.f32 %v1269, %v1247
    %v1274 = vmul.f32 %v1270, %v1261
    %v1275 = vmul.f32 %v1271, %v1245
    %v1276 = vmul.f32 %v1272, %v1259
    %v1277 = vmul.f32 %v1273, %v1247
    %v1278 = vmul.f32 %v1274, %v1261
    %v1279 = vadd.f32 %v1245, %v1275
    %v1280 = vadd.f32 %v1259, %v1276
    %v1281 = vadd.f32 %v1247, %v1277
    %v1282 = vadd.f32 %v1261, %v1278
    %v1283 = vmul.f32 %v1279, 0.7978846
    %v1284 = vmul.f32 %v1280, 0.7978846
    %v1285 = vmul.f32 %v1281, 0.7978846
    %v1286 = vmul.f32 %v1282, 0.7978846
    %v1287 = vtanh.pop %v1283
    %v1288 = vtanh.pop %v1284
    %v1289 = vtanh.pop %v1285
    %v1290 = vtanh.pop %v1286
    %v1291 = vadd.f32 %v1287, 1.0
    %v1292 = vadd.f32 %v1288, 1.0
    %v1293 = vadd.f32 %v1289, 1.0
    %v1294 = vadd.f32 %v1290, 1.0
    %v1295 = vmul.f32 %v1263, %v1291
    %v1296 = vmul.f32 %v1264, %v1292
    %v1297 = vmul.f32 %v1265, %v1293
    %v1298 = vmul.f32 %v1266, %v1294
    %v1299 = vpack.c.bf16 %v1297, %v1295
    %v1300 = vpack.c.bf16 %v1298, %v1296
    %v1301 = vld [vmem:[#allocation4] sm:$0xf]
    %v1302 = vld [vmem:[#allocation4 + $0x4] sm:$0xf]
    %v1303 = vld [vmem:[#allocation4 + $0x8] sm:$0xf]
    %v1304 = vld [vmem:[#allocation4 + $0xc] sm:$0xf]
    %v1305 = vld [vmem:[#allocation4 + $0x10] sm:$0xf]
    %v1306 = vld [vmem:[#allocation4 + $0x14] sm:$0xf]
    %v1307 = vld [vmem:[#allocation4 + $0x18] sm:$0xf]
    %v1308 = vld [vmem:[#allocation4 + $0x1c] sm:$0xf]
    %v1309 = vld [vmem:[#allocation4 + $0x20] sm:$0xf]
    %v1310 = vld [vmem:[#allocation4 + $0x24] sm:$0xf]
    %v1311 = vld [vmem:[#allocation4 + $0x28] sm:$0xf]
    %v1312 = vld [vmem:[#allocation4 + $0x2c] sm:$0xf]
    %v1313 = vld [vmem:[#allocation4 + $0x30] sm:$0xf]
    %v1314 = vld [vmem:[#allocation4 + $0x34] sm:$0xf]
    %v1315 = vld [vmem:[#allocation4 + $0x38] sm:$0xf]
    %v1316 = vld [vmem:[#allocation4 + $0x3c] sm:$0xf]
    %v1317 = vld [vmem:[#allocation4 + $0x40] sm:$0xf]
    %v1318 = vld [vmem:[#allocation4 + $0x44] sm:$0xf]
    %v1319 = vld [vmem:[#allocation4 + $0x48] sm:$0xf]
    %v1320 = vld [vmem:[#allocation4 + $0x4c] sm:$0xf]
    %v1321 = vld [vmem:[#allocation4 + $0x50] sm:$0xf]
    %v1322 = vld [vmem:[#allocation4 + $0x54] sm:$0xf]
    %v1323 = vld [vmem:[#allocation4 + $0x58] sm:$0xf]
    %v1324 = vld [vmem:[#allocation4 + $0x5c] sm:$0xf]
    %v1325 = vld [vmem:[#allocation4 + $0x60] sm:$0xf]
    %v1326 = vld [vmem:[#allocation4 + $0x64] sm:$0xf]
    %v1327 = vld [vmem:[#allocation4 + $0x68] sm:$0xf]
    %v1328 = vld [vmem:[#allocation4 + $0x6c] sm:$0xf]
    %v1329 = vld [vmem:[#allocation4 + $0x70] sm:$0xf]
    %v1330 = vld [vmem:[#allocation4 + $0x74] sm:$0xf]
    %v1331 = vld [vmem:[#allocation4 + $0x78] sm:$0xf]
    %v1332 = vld [vmem:[#allocation4 + $0x7c] sm:$0xf]
    %v1333 = vld [vmem:[%s13] sm:$0x1]
    %v1335 = vperm.slane %v1333, 0
    %v1369 = vunpack.c.l.b16 %v1301
    %v1370 = vunpack.c.l.b16 %v1302
    %v1371 = vunpack.c.l.b16 %v1303
    %v1372 = vunpack.c.l.b16 %v1304
    %v1373 = vunpack.c.l.b16 %v1305
    %v1374 = vunpack.c.l.b16 %v1306
    %v1375 = vunpack.c.l.b16 %v1307
    %v1376 = vunpack.c.l.b16 %v1308
    %v1377 = vunpack.c.l.b16 %v1309
    %v1378 = vunpack.c.l.b16 %v1310
    %v1379 = vunpack.c.l.b16 %v1311
    %v1380 = vunpack.c.l.b16 %v1312
    %v1381 = vunpack.c.l.b16 %v1313
    %v1382 = vunpack.c.l.b16 %v1314
    %v1383 = vunpack.c.l.b16 %v1315
    %v1384 = vunpack.c.l.b16 %v1316
    %v1385 = vunpack.c.l.b16 %v1317
    %v1386 = vunpack.c.l.b16 %v1318
    %v1387 = vunpack.c.l.b16 %v1319
    %v1388 = vunpack.c.l.b16 %v1320
    %v1389 = vunpack.c.l.b16 %v1321
    %v1390 = vunpack.c.l.b16 %v1322
    %v1391 = vunpack.c.l.b16 %v1323
    %v1392 = vunpack.c.l.b16 %v1324
    %v1393 = vunpack.c.l.b16 %v1325
    %v1394 = vunpack.c.l.b16 %v1326
    %v1395 = vunpack.c.l.b16 %v1327
    %v1396 = vunpack.c.l.b16 %v1328
    %v1397 = vunpack.c.l.b16 %v1329
    %v1398 = vunpack.c.l.b16 %v1330
    %v1399 = vunpack.c.l.b16 %v1331
    %v1400 = vunpack.c.l.b16 %v1332
    %v1401 = vpack.c.b16 %v1370, %v1369
    %v1402 = vpack.c.b16 %v1372, %v1371
    %v1403 = vpack.c.b16 %v1374, %v1373
    %v1404 = vpack.c.b16 %v1376, %v1375
    %v1405 = vpack.c.b16 %v1378, %v1377
    %v1406 = vpack.c.b16 %v1380, %v1379
    %v1407 = vpack.c.b16 %v1382, %v1381
    %v1408 = vpack.c.b16 %v1384, %v1383
    %v1409 = vpack.c.b16 %v1386, %v1385
    %v1410 = vpack.c.b16 %v1388, %v1387
    %v1411 = vpack.c.b16 %v1390, %v1389
    %v1412 = vpack.c.b16 %v1392, %v1391
    %v1413 = vpack.c.b16 %v1394, %v1393
    %v1414 = vpack.c.b16 %v1396, %v1395
    %v1415 = vpack.c.b16 %v1398, %v1397
    %v1416 = vpack.c.b16 %v1400, %v1399
    %1433 = vmatpush.bf16.msra.mxu0 %v1408
    %1434 = vmatpush.bf16.msra.mxu0 %v1407
    %1435 = vmatpush.bf16.msra.mxu0 %v1406
    %1436 = vmatpush.bf16.msra.mxu0 %v1405
    %1437 = vmatpush.bf16.msra.mxu0 %v1404
    %1438 = vmatpush.bf16.msra.mxu0 %v1403
    %1439 = vmatpush.bf16.msra.mxu0 %v1402
    %1440 = vmatpush.bf16.msra.mxu0 %v1401
    %1441 = vmatmul.bf16.gmra.mxu0 %v1299
    %v1442 = vpop.f32.mrf.mxu0
    %v1443 = vadd.f32 %v1335, %v1442
    %v1444 = vpop.f32.mrf.mxu0
    %v1445 = vadd.f32 %v1335, %v1444
    %1446 = vdwg.mxu0
    %1447 = vmatpush.bf16.msra.mxu0 %v1416
    %1448 = vmatpush.bf16.msra.mxu0 %v1415
    %1449 = vmatpush.bf16.msra.mxu0 %v1414
    %1450 = vmatpush.bf16.msra.mxu0 %v1413
    %1451 = vmatpush.bf16.msra.mxu0 %v1412
    %1452 = vmatpush.bf16.msra.mxu0 %v1411
    %1453 = vmatpush.bf16.msra.mxu0 %v1410
    %1454 = vmatpush.bf16.msra.mxu0 %v1409
    %1455 = vmatmul.bf16.gmra.mxu0 %v1300
    %v1456 = vpop.f32.mrf.mxu0
    %v1457 = vadd.f32 %v1443, %v1456
    %v1458 = vpop.f32.mrf.mxu0
    %v1459 = vadd.f32 %v1445, %v1458
    %1460 = vdwg.mxu0
    %v1461 = vadd.f32 %v1457, %v1130
    %v1462 = vadd.f32 %v1459, %v1131
    %v1463 = vld [vmem:[%s14] sm:$0x1]
    %v1464 = vld [vmem:[%s15] sm:$0x1]
    %1465 = vadd.xlane.f32.xlu0 %v1461
    %v1466 = vpop.xlane.xlu0 %1465
    %1467 = vadd.xlane.f32.xlu0 %v1462
    %v1468 = vpop.xlane.xlu0 %1467
    %v1469 = vmul.f32 %v1466, %v100
    %v1470 = vmul.f32 %v1468, %v100
    %v1471 = vsub.f32 %v1461, %v1469
    %v1472 = vsub.f32 %v1462, %v1470
    %v1473 = vmul.f32 %v1471, %v1471
    %v1474 = vmul.f32 %v1472, %v1472
    %1475 = vadd.xlane.f32.xlu0 %v1473
    %v1476 = vpop.xlane.xlu0 %1475
    %1477 = vadd.xlane.f32.xlu0 %v1474
    %v1478 = vpop.xlane.xlu0 %1477
    %v1479 = vmul.f32 %v1476, %v100
    %v1480 = vmul.f32 %v1478, %v100
    %v1481 = vadd.f32 %v1479, 1e-07
    %v1482 = vadd.f32 %v1480, 1e-07
    %v1483 = vrsqrt.pop %v1481
    %v1484 = vmul.f32 %v1483, %v1481
    %v1485 = vmul.f32 %v1484, %v1483
    %v1486 = vmul.f32 0.5, %v1485
    %v1487 = vsub.f32 1.5, %v1486
    %v1488 = vmul.f32 %v1483, %v1487
    %vm1489 = vweird.f32 %v1481
    %vm1490 = vweird.f32 %v1483
    %vm1491 = vmor %vm1489, %vm1490
    %v1492 = vsel %vm1491, %v1483, %v1488
    %v1493 = vrsqrt.pop %v1482
    %v1494 = vmul.f32 %v1493, %v1482
    %v1495 = vmul.f32 %v1494, %v1493
    %v1496 = vmul.f32 0.5, %v1495
    %v1497 = vsub.f32 1.5, %v1496
    %v1498 = vmul.f32 %v1493, %v1497
    %vm1499 = vweird.f32 %v1482
    %vm1500 = vweird.f32 %v1493
    %vm1501 = vmor %vm1499, %vm1500
    %v1502 = vsel %vm1501, %v1493, %v1498
    %v1503 = vmul.f32 %v1471, %v1492
    %v1504 = vmul.f32 %v1472, %v1502
    %v1506 = vperm.slane %v1463, 0
    %v1508 = vmul.f32 %v1503, %v1506
    %v1509 = vmul.f32 %v1504, %v1506
    %v1511 = vperm.slane %v1464, 0
    %v1513 = vadd.f32 %v1508, %v1511
    %v1514 = vadd.f32 %v1509, %v1511
    %1515 = vst [vmem:[%s16] sm:$0xff] %v1513
    %1516 = vst [vmem:[%s16 + $0x8] sm:$0xff] %v1514
    // Predicated region
    $region74: #{lit_model_forward.3} parent=1 // pred_check
      _
    $region75: #{lit_model_forward.3} parent=1 // pred_check_branch
      %1518 = sbr.rel (0) target = $region77
    $region76: #{lit_model_forward.3} parent=1 // pred_region
      _
    $region77: #{lit_model_forward.3} parent=1 // pred_fallthru
      _
    // Predicated region
    $region78: #{lit_model_forward.3} parent=1 // pred_check
      _
    $region79: #{lit_model_forward.3} parent=1 // pred_check_branch
      %1520 = sbr.rel (0) target = $region81
    $region80: #{lit_model_forward.3} parent=1 // pred_region
      _
    $region81: #{lit_model_forward.3} parent=1 // pred_fallthru
      _
    %1521 = vsyncpa [#allocation3], 1
    %1522 = vsyncpa [#allocation5], 1

</llo_original>
